<compile_context>
chip_gen: v7x
topology: tpu7x:2x2x1
jax: 0.10.0
libtpu: 0.0.40
codegen_flags: <defaults>
</compile_context>

<pallas_src>
import functools

import jax
import jax.numpy as jnp
from jax.experimental import pallas as pl
from jax.experimental.pallas import tpu as pltpu


# ----------------------------------------------------------------------------
# Small helpers
# ----------------------------------------------------------------------------
def _largest_divisor(n, cap):
    d = max(1, min(int(n), int(cap)))
    while n % d:
        d -= 1
    return d


def _vmem_cap_bytes():
    """Per-generation scoped-VMEM ceiling (v5e/v6e ~112 MiB, v7x ~56 MiB)."""
    try:
        cap = int(pltpu.get_tpu_info().vmem_capacity_bytes)
    except Exception:
        cap = 64 << 20
    return (cap * 7) // 8  # headroom for compiler-internal scratch


def _vmem_limit_bytes(streamed, resident):
    """streamed buffers are double-buffered by the pipeline; resident buffers
    (single-buffered weights, scratch) are counted once."""
    need = 2 * sum(int(b) for b in streamed) + sum(int(b) for b in resident) + (4 << 20)
    return int(min(max(need, 8 << 20), _vmem_cap_bytes()))


def _use_bf16_activations():
    """bf16 EUP exists on v6e/v7x only; keep f32 activations on v5e and unknowns."""
    try:
        kind = jax.devices()[0].device_kind.lower()
    except Exception:
        return False
    return ("v6" in kind) or ("v7" in kind)


# ----------------------------------------------------------------------------
# Kernel A: feature-extractor stand-in fused with the hoisted x @ W_ih matmul,
#           outputs written time-major.
# ----------------------------------------------------------------------------
def feat_gates_kernel(x_ref, wf_ref, bf_ref, wih_ref, bl_ref, feat_ref, gx_ref):
    # x_ref:   (tile_b, 1, HW, C) f32 (channels-last)
    # wf_ref:  (C, F)  bf16 (1/HW folded in)      bf_ref: (1, F)  f32
    # wih_ref: (F, 4F) bf16                       bl_ref: (1, 4F) f32
    # feat_ref:(1, tile_b, F) f32                 gx_ref: (1, tile_b, 4F) bf16
    x = x_ref[:, 0]                                   # (tile_b, HW, C)
    pooled = jnp.sum(x, axis=1)                       # GAP over sublanes; lane-dense in C
    feat = (
        jnp.dot(pooled.astype(jnp.bfloat16), wf_ref[...],
                preferred_element_type=jnp.float32)
        + bf_ref[...]
    )                                                 # (tile_b, F) f32
    feat_ref[0] = feat
    # Hoisted input-hidden gate matmul + folded LSTM biases (b_ih + b_hh).
    gx = (
        jnp.dot(feat.astype(jnp.bfloat16), wih_ref[...],
                preferred_element_type=jnp.float32)
        + bl_ref[...]
    )                                                 # (tile_b, 4F) f32
    gx_ref[0] = gx.astype(gx_ref.dtype)               # stored bf16


def feature_and_input_gates(x_tm, w_feat, b_feat, w_ih, b_lstm):
    """x_tm: (B, T, HW, C) f32.  Returns time-major (T, B, F) f32 and (T, B, 4F) bf16."""
    bsz, t, hw, c = x_tm.shape
    f = w_feat.shape[1]

    resident = (c * f * 2, f * 4, f * 4 * f * 2, 4 * f * 4)

    def streamed(tb):
        return (tb * hw * c * 4, tb * f * 4, tb * 4 * f * 2)

    cap = _vmem_cap_bytes()
    tile_b = _largest_divisor(bsz, 128)
    while tile_b > 1 and (2 * sum(streamed(tile_b)) + sum(resident) + (4 << 20)) > cap:
        tile_b = _largest_divisor(bsz, tile_b - 1)

    vmem_limit = _vmem_limit_bytes(streamed(tile_b), resident)
    grid = (t, bsz // tile_b)

    return pl.pallas_call(
        feat_gates_kernel,
        out_shape=(
            jax.ShapeDtypeStruct((t, bsz, f), jnp.float32),      # feats, time-major
            jax.ShapeDtypeStruct((t, bsz, 4 * f), jnp.bfloat16),  # gates_x, time-major
        ),
        grid=grid,
        in_specs=[
            pl.BlockSpec((tile_b, 1, hw, c), lambda ti, bi: (bi, ti, 0, 0)),
            pl.BlockSpec((c, f), lambda ti, bi: (0, 0),
                         pipeline_mode=pl.Buffered(1)),           # resident weight
            pl.BlockSpec((1, f), lambda ti, bi: (0, 0)),
            pl.BlockSpec((f, 4 * f), lambda ti, bi: (0, 0),
                         pipeline_mode=pl.Buffered(1)),           # resident weight
            pl.BlockSpec((1, 4 * f), lambda ti, bi: (0, 0)),
        ],
        out_specs=(
            pl.BlockSpec((1, tile_b, f), lambda ti, bi: (ti, bi, 0)),
            pl.BlockSpec((1, tile_b, 4 * f), lambda ti, bi: (ti, bi, 0)),
        ),
        compiler_params=pltpu.CompilerParams(
            dimension_semantics=("parallel", "parallel"),
            vmem_limit_bytes=vmem_limit,
        ),
    )(x_tm, w_feat, b_feat, w_ih, b_lstm)


# ----------------------------------------------------------------------------
# Kernel B: TemporalEncoder recurrence — Tb timesteps per grid step + residual
# ----------------------------------------------------------------------------
def lstm_block_kernel(gx_ref, xf_ref, whh_ref, o_ref, h_sc, c_sc, *, act_bf16):
    # gx_ref: (Tb, tile_b, 4F) bf16   xf_ref: (Tb, tile_b, F) f32
    # whh_ref: (F, 4F) bf16 resident  o_ref: (Tb, tile_b, F) f32
    # h_sc / c_sc: (tile_b, F) f32 VMEM scratch, persistent across time blocks.
    f = h_sc.shape[-1]
    tb = gx_ref.shape[0]

    @pl.when(pl.program_id(1) == 0)
    def _():
        h_sc[...] = jnp.zeros_like(h_sc)
        c_sc[...] = jnp.zeros_like(c_sc)

    def step(s, carry):
        h, c = carry
        gates = gx_ref[s].astype(jnp.float32) + jnp.dot(
            h.astype(jnp.bfloat16), whh_ref[...],
            preferred_element_type=jnp.float32,
        )                                                     # (tile_b, 4F) f32
        g = gates.astype(jnp.bfloat16) if act_bf16 else gates
        # PyTorch LSTM gate order: input, forget, cell(g), output.
        # F is a multiple of 128 so these lane slices are aligned vreg views.
        i_g = jax.nn.sigmoid(g[:, 0 * f:1 * f]).astype(jnp.float32)
        f_g = jax.nn.sigmoid(g[:, 1 * f:2 * f]).astype(jnp.float32)
        g_g = jnp.tanh(g[:, 2 * f:3 * f]).astype(jnp.float32)
        o_g = jax.nn.sigmoid(g[:, 3 * f:4 * f]).astype(jnp.float32)
        c_new = f_g * c + i_g * g_g                           # f32 cell math
        t_c = jnp.tanh(c_new.astype(jnp.bfloat16)) if act_bf16 else jnp.tanh(c_new)
        h_new = o_g * t_c.astype(jnp.float32)
        # residual: hidden_size == input feature dim (2048 == 2048 in the original)
        o_ref[s] = h_new + xf_ref[s]
        return h_new, c_new

    h, c = jax.lax.fori_loop(0, tb, step, (h_sc[...], c_sc[...]), unroll=True)
    h_sc[...] = h
    c_sc[...] = c


def temporal_encoder(gx_tm, xf_tm, w_hh):
    """gx_tm: (T, Bp, 4F) bf16, xf_tm: (T, Bp, F) f32 (Bp multiple of 8)."""
    t, bp, f4 = gx_tm.shape
    f = f4 // 4

    tb = _largest_divisor(t, 8)                      # timesteps per grid step
    tile_b = bp // 2 if bp % 16 == 0 else bp         # >=2 batch blocks -> v7x megacore

    vmem_limit = _vmem_limit_bytes(
        streamed=(tb * tile_b * 4 * f * 2,           # gx tile (bf16)
                  tb * tile_b * f * 4,               # xf tile
                  tb * tile_b * f * 4),              # out tile
        resident=(f * 4 * f * 2,                     # w_hh (bf16, single-buffered)
                  2 * tile_b * f * 4),               # h, c scratch
    )

    kernel = functools.partial(lstm_block_kernel, act_bf16=_use_bf16_activations())

    return pl.pallas_call(
        kernel,
        out_shape=jax.ShapeDtypeStruct((t, bp, f), jnp.float32),
        grid=(bp // tile_b, t // tb),
        in_specs=[
            pl.BlockSpec((tb, tile_b, 4 * f), lambda bi, ti: (ti, bi, 0)),
            pl.BlockSpec((tb, tile_b, f), lambda bi, ti: (ti, bi, 0)),
            pl.BlockSpec((f, 4 * f), lambda bi, ti: (0, 0),
                         pipeline_mode=pl.Buffered(1)),       # resident weight
        ],
        out_specs=pl.BlockSpec((tb, tile_b, f), lambda bi, ti: (ti, bi, 0)),
        scratch_shapes=[
            pltpu.VMEM((tile_b, f), jnp.float32),   # h
            pltpu.VMEM((tile_b, f), jnp.float32),   # c
        ],
        compiler_params=pltpu.CompilerParams(
            dimension_semantics=("parallel", "arbitrary"),   # batch parallel, T sequential
            vmem_limit_bytes=vmem_limit,
        ),
    )(gx_tm, xf_tm, w_hh)


# ----------------------------------------------------------------------------
# Full forward (glue in plain JAX, hot paths in Pallas)
# ----------------------------------------------------------------------------
def vibe_lstm_forward(images, params):
    """images: (B, T, C, H, W) float32.  Returns latent features (B, T, F)."""
    B, T, C, H, W = images.shape
    F = params["w_feat"].shape[1]
    HW = H * W

    # hmr.feature_extractor(input.reshape(-1, n, h, w)) stand-in input,
    # channels-last so GAP reduces over sublanes and pooled is lane-dense in C.
    # TODO(synk): full ResNet50 SPIN feature extractor not reproduced.
    x_cl = jnp.transpose(images.reshape(B, T, C, HW), (0, 1, 3, 2))   # (B, T, HW, C)

    # Fold the 1/HW GAP scale into the bf16 projection weight (hoisted, cheap).
    w_feat_scaled = (params["w_feat"].astype(jnp.float32) * (1.0 / HW)).astype(jnp.bfloat16)

    # Kernel A: features + hoisted x@W_ih, emitted time-major (no XLA transposes).
    feats_tm, gx_tm = feature_and_input_gates(
        x_cl, w_feat_scaled, params["b_feat"], params["w_ih"], params["b_lstm"],
    )                                                   # (T, B, F) f32, (T, B, 4F) bf16

    # Pad batch to a multiple of 8 sublanes for the recurrence (padded rows are
    # zeros, stay finite, and are sliced away afterwards).
    B_pad = ((B + 7) // 8) * 8
    if B_pad != B:
        feats_tm = jnp.pad(feats_tm, ((0, 0), (0, B_pad - B), (0, 0)))
        gx_tm = jnp.pad(gx_tm, ((0, 0), (0, B_pad - B), (0, 0)))

    lstm_out = temporal_encoder(gx_tm, feats_tm, params["w_hh"])      # (T, B_pad, F)

    # Back to (B, T, F); this is what would feed the Regressor.
    # TODO(synk): Regressor / SMPL output heads omitted (needs SMPL model + ckpt).
    return jnp.transpose(lstm_out[:, :B], (1, 0, 2))


def init_params(key, c, f):
    k1, k2, k3, k4, k5, k6 = jax.random.split(key, 6)
    scale = 1.0 / jnp.sqrt(f)
    # Matmul weights stored bf16 (MXU fast path, half the VMEM/HBM traffic);
    # biases and all cell math stay f32.
    w_feat = jax.random.uniform(k1, (c, f), jnp.float32, -scale, scale)
    b_feat = jax.random.uniform(k2, (1, f), jnp.float32, -scale, scale)
    # PyTorch nn.LSTM stores weight_ih / weight_hh as (4F, F); we keep the
    # transposed (F, 4F) layout so kernel matmuls are x @ W / h @ W.  A real
    # checkpoint loader must transpose while preserving the i,f,g,o blocks.
    w_ih = jax.random.uniform(k3, (f, 4 * f), jnp.float32, -scale, scale)
    w_hh = jax.random.uniform(k4, (f, 4 * f), jnp.float32, -scale, scale)
    b_ih = jax.random.uniform(k5, (1, 4 * f), jnp.float32, -scale, scale)
    b_hh = jax.random.uniform(k6, (1, 4 * f), jnp.float32, -scale, scale)
    return {
        "w_feat": w_feat.astype(jnp.bfloat16),
        "b_feat": b_feat,
        "w_ih": w_ih.astype(jnp.bfloat16),
        "w_hh": w_hh.astype(jnp.bfloat16),
        "b_lstm": b_ih + b_hh,          # PyTorch applies both biases; folded once
    }


if __name__ == "__main__":
    # Small demo shapes: batch=2, seq=8, channels=4, spatial=16x16.
    # Feature/hidden dim F = 128 (stand-in for 2048) so the last dim is
    # lane-aligned — gate slices and output stores are dense.
    B, T, C, H, W = 2, 8, 4, 16, 16
    F = 128

    key = jax.random.PRNGKey(0)
    k_img, k_params = jax.random.split(key)
    images = jax.random.normal(k_img, (B, T, C, H, W), jnp.float32)
    params = init_params(k_params, C, F)

    out = jax.jit(vibe_lstm_forward)(images, params)
    out = jax.block_until_ready(out)

    assert out.shape == (B, T, F), out.shape
    assert bool(jnp.all(jnp.isfinite(out)))
    print("KERNEL_OK")
</pallas_src>

<mosaic_0001>
module attributes {stable_mosaic.version = 11 : i64} {
  func.func @feat_gates_kernel(%arg0: i32, %arg1: i32, %arg2: memref<2x1x256x4xf32, #tpu.memory_space<vmem>>, %arg3: memref<4x128xbf16, #tpu.memory_space<vmem>>, %arg4: memref<1x128xf32, #tpu.memory_space<vmem>>, %arg5: memref<128x512xbf16, #tpu.memory_space<vmem>>, %arg6: memref<1x512xf32, #tpu.memory_space<vmem>>, %arg7: memref<1x2x128xf32, #tpu.memory_space<vmem>>, %arg8: memref<1x2x512xbf16, #tpu.memory_space<vmem>>) attributes {dimension_semantics = [#tpu.dimension_semantics<parallel>, #tpu.dimension_semantics<parallel>], iteration_bounds = array<i64: 8, 1>, scalar_prefetch = 0 : i64, scratch_operands = 0 : i64, tpu.core_type = #tpu.core_type<tc>, window_params = [{transform_indices = @transform_0, window_bounds = array<i64: 2, 1, 256, 4>}, {pipeline_mode = #tpu.pipeline_mode<synchronous>, transform_indices = @transform_1, window_bounds = array<i64: 4, 128>}, {pipeline_mode = #tpu.pipeline_mode<synchronous>, transform_indices = @transform_2, window_bounds = array<i64: 1, 128>}, {pipeline_mode = #tpu.pipeline_mode<synchronous>, transform_indices = @transform_3, window_bounds = array<i64: 128, 512>}, {pipeline_mode = #tpu.pipeline_mode<synchronous>, transform_indices = @transform_4, window_bounds = array<i64: 1, 512>}, {transform_indices = @transform_5, window_bounds = array<i64: 1, 2, 128>}, {transform_indices = @transform_6, window_bounds = array<i64: 1, 2, 512>}]} {
    %c0 = arith.constant 0 : index
    %c0_0 = arith.constant 0 : index
    %c0_1 = arith.constant 0 : index
    %c0_2 = arith.constant 0 : index
    %0 = vector.load %arg2[%c0, %c0_0, %c0_1, %c0_2] : memref<2x1x256x4xf32, #tpu.memory_space<vmem>>, vector<2x1x256x4xf32>
    %1 = vector.shape_cast %0 : vector<2x1x256x4xf32> to vector<2x256x4xf32>
    %cst = arith.constant dense<0.000000e+00> : vector<2x4xf32>
    %2 = vector.multi_reduction <add>, %1, %cst [1] : vector<2x256x4xf32> to vector<2x4xf32>
    %3 = arith.truncf %2 : vector<2x4xf32> to vector<2x4xbf16>
    %c0_3 = arith.constant 0 : index
    %c0_4 = arith.constant 0 : index
    %4 = vector.load %arg3[%c0_3, %c0_4] : memref<4x128xbf16, #tpu.memory_space<vmem>>, vector<4x128xbf16>
    %cst_5 = arith.constant dense<0.000000e+00> : vector<2x128xf32>
    %5 = tpu.matmul %3, %4, %cst_5 {dimension_numbers = #tpu.dot_dimension_numbers<[1], [0], [0], [1], [0, 0, 1, 1], [], []>} : vector<2x4xbf16>, vector<4x128xbf16>, vector<2x128xf32> -> vector<2x128xf32>
    %c0_6 = arith.constant 0 : index
    %c0_7 = arith.constant 0 : index
    %6 = vector.load %arg4[%c0_6, %c0_7] : memref<1x128xf32, #tpu.memory_space<vmem>>, vector<1x128xf32>
    %7 = vector.broadcast %6 : vector<1x128xf32> to vector<2x128xf32>
    %8 = arith.addf %5, %7 : vector<2x128xf32>
    %c0_8 = arith.constant 0 : index
    %c0_9 = arith.constant 0 : index
    %c0_10 = arith.constant 0 : index
    %9 = vector.load %arg7[%c0_8, %c0_9, %c0_10] : memref<1x2x128xf32, #tpu.memory_space<vmem>>, vector<1x2x128xf32>
    %10 = vector.shape_cast %9 : vector<1x2x128xf32> to vector<2x128xf32>
    %11 = vector.shape_cast %8 : vector<2x128xf32> to vector<1x2x128xf32>
    tpu.vector_store %arg7[%c0_8, %c0_9, %c0_10], %11 {strides = array<i32>} : memref<1x2x128xf32, #tpu.memory_space<vmem>>, vector<1x2x128xf32>,
    %12 = arith.truncf %8 : vector<2x128xf32> to vector<2x128xbf16>
    %c0_11 = arith.constant 0 : index
    %c0_12 = arith.constant 0 : index
    %13 = vector.load %arg5[%c0_11, %c0_12] : memref<128x512xbf16, #tpu.memory_space<vmem>>, vector<128x512xbf16>
    %cst_13 = arith.constant dense<0.000000e+00> : vector<2x512xf32>
    %14 = tpu.matmul %12, %13, %cst_13 {dimension_numbers = #tpu.dot_dimension_numbers<[1], [0], [0], [1], [0, 0, 1, 1], [], []>} : vector<2x128xbf16>, vector<128x512xbf16>, vector<2x512xf32> -> vector<2x512xf32>
    %c0_14 = arith.constant 0 : index
    %c0_15 = arith.constant 0 : index
    %15 = vector.load %arg6[%c0_14, %c0_15] : memref<1x512xf32, #tpu.memory_space<vmem>>, vector<1x512xf32>
    %16 = vector.broadcast %15 : vector<1x512xf32> to vector<2x512xf32>
    %17 = arith.addf %14, %16 : vector<2x512xf32>
    %18 = arith.truncf %17 : vector<2x512xf32> to vector<2x512xbf16>
    %c0_16 = arith.constant 0 : index
    %c0_17 = arith.constant 0 : index
    %c0_18 = arith.constant 0 : index
    %19 = vector.load %arg8[%c0_16, %c0_17, %c0_18] : memref<1x2x512xbf16, #tpu.memory_space<vmem>>, vector<1x2x512xbf16>
    %20 = vector.shape_cast %19 : vector<1x2x512xbf16> to vector<2x512xbf16>
    %21 = vector.shape_cast %18 : vector<2x512xbf16> to vector<1x2x512xbf16>
    tpu.vector_store %arg8[%c0_16, %c0_17, %c0_18], %21 {strides = array<i32>} : memref<1x2x512xbf16, #tpu.memory_space<vmem>>, vector<1x2x512xbf16>,
    return
  }
  func.func @transform_0(%arg0: i32, %arg1: i32) -> (i32, i32, i32, i32) {
    %c0_i32 = arith.constant 0 : i32
    %c0_i32_0 = arith.constant 0 : i32
    %c0_i32_1 = arith.constant 0 : i32
    return %arg1, %arg0, %c0_i32, %c0_i32_0 : i32, i32, i32, i32
  }
  func.func @transform_1(%arg0: i32, %arg1: i32) -> (i32, i32) {
    %c0_i32 = arith.constant 0 : i32
    %c0_i32_0 = arith.constant 0 : i32
    %c0_i32_1 = arith.constant 0 : i32
    return %c0_i32, %c0_i32_0 : i32, i32
  }
  func.func @transform_2(%arg0: i32, %arg1: i32) -> (i32, i32) {
    %c0_i32 = arith.constant 0 : i32
    %c0_i32_0 = arith.constant 0 : i32
    %c0_i32_1 = arith.constant 0 : i32
    return %c0_i32, %c0_i32_0 : i32, i32
  }
  func.func @transform_3(%arg0: i32, %arg1: i32) -> (i32, i32) {
    %c0_i32 = arith.constant 0 : i32
    %c0_i32_0 = arith.constant 0 : i32
    %c0_i32_1 = arith.constant 0 : i32
    return %c0_i32, %c0_i32_0 : i32, i32
  }
  func.func @transform_4(%arg0: i32, %arg1: i32) -> (i32, i32) {
    %c0_i32 = arith.constant 0 : i32
    %c0_i32_0 = arith.constant 0 : i32
    %c0_i32_1 = arith.constant 0 : i32
    return %c0_i32, %c0_i32_0 : i32, i32
  }
  func.func @transform_5(%arg0: i32, %arg1: i32) -> (i32, i32, i32) {
    %c0_i32 = arith.constant 0 : i32
    %c0_i32_0 = arith.constant 0 : i32
    return %arg0, %arg1, %c0_i32 : i32, i32, i32
  }
  func.func @transform_6(%arg0: i32, %arg1: i32) -> (i32, i32, i32) {
    %c0_i32 = arith.constant 0 : i32
    %c0_i32_0 = arith.constant 0 : i32
    return %arg0, %arg1, %c0_i32 : i32, i32, i32
  }
}

module attributes {stable_mosaic.version = 11 : i64} {
  func.func @lstm_block_kernel(%arg0: i32, %arg1: i32, %arg2: memref<8x8x512xbf16, #tpu.memory_space<vmem>>, %arg3: memref<8x8x128xf32, #tpu.memory_space<vmem>>, %arg4: memref<128x512xbf16, #tpu.memory_space<vmem>>, %arg5: memref<8x8x128xf32, #tpu.memory_space<vmem>>, %arg6: memref<8x128xf32, #tpu.memory_space<vmem>>, %arg7: memref<8x128xf32, #tpu.memory_space<vmem>>) attributes {dimension_semantics = [#tpu.dimension_semantics<parallel>, #tpu.dimension_semantics<arbitrary>], iteration_bounds = array<i64: 1, 1>, scalar_prefetch = 0 : i64, scratch_operands = 2 : i64, tpu.core_type = #tpu.core_type<tc>, window_params = [{transform_indices = @transform_0, window_bounds = array<i64: 8, 8, 512>}, {transform_indices = @transform_1, window_bounds = array<i64: 8, 8, 128>}, {pipeline_mode = #tpu.pipeline_mode<synchronous>, transform_indices = @transform_2, window_bounds = array<i64: 128, 512>}, {transform_indices = @transform_3, window_bounds = array<i64: 8, 8, 128>}]} {
    %c0_i32 = arith.constant 0 : i32
    %0 = arith.cmpi eq, %arg1, %c0_i32 : i32
    %1 = arith.extui %0 : i1 to i32
    %c0_i32_0 = arith.constant 0 : i32
    %2 = arith.cmpi ne, %1, %c0_i32_0 : i32
    scf.if %2 {
      %cst_104 = arith.constant 0.000000e+00 : f32
      %335 = vector.broadcast %cst_104 : f32 to vector<8x128xf32>
      %c0_105 = arith.constant 0 : index
      %c0_106 = arith.constant 0 : index
      %336 = vector.load %arg6[%c0_105, %c0_106] : memref<8x128xf32, #tpu.memory_space<vmem>>, vector<8x128xf32>
      tpu.vector_store %arg6[%c0_105, %c0_106], %335 {strides = array<i32>} : memref<8x128xf32, #tpu.memory_space<vmem>>, vector<8x128xf32>,
      %cst_107 = arith.constant 0.000000e+00 : f32
      %337 = vector.broadcast %cst_107 : f32 to vector<8x128xf32>
      %c0_108 = arith.constant 0 : index
      %c0_109 = arith.constant 0 : index
      %338 = vector.load %arg7[%c0_108, %c0_109] : memref<8x128xf32, #tpu.memory_space<vmem>>, vector<8x128xf32>
      tpu.vector_store %arg7[%c0_108, %c0_109], %337 {strides = array<i32>} : memref<8x128xf32, #tpu.memory_space<vmem>>, vector<8x128xf32>,
    } else {
    }
    %c0 = arith.constant 0 : index
    %c0_1 = arith.constant 0 : index
    %3 = vector.load %arg6[%c0, %c0_1] : memref<8x128xf32, #tpu.memory_space<vmem>>, vector<8x128xf32>
    %c0_2 = arith.constant 0 : index
    %c0_3 = arith.constant 0 : index
    %4 = vector.load %arg7[%c0_2, %c0_3] : memref<8x128xf32, #tpu.memory_space<vmem>>, vector<8x128xf32>
    %c0_i32_4 = arith.constant 0 : i32
    %5 = arith.index_cast %c0_i32_4 : i32 to index
    %c0_5 = arith.constant 0 : index
    %c0_6 = arith.constant 0 : index
    %6 = vector.load %arg2[%5, %c0_5, %c0_6] : memref<8x8x512xbf16, #tpu.memory_space<vmem>>, vector<1x8x512xbf16>
    %7 = vector.shape_cast %6 : vector<1x8x512xbf16> to vector<8x512xbf16>
    %8 = arith.extf %7 : vector<8x512xbf16> to vector<8x512xf32>
    %9 = arith.truncf %3 : vector<8x128xf32> to vector<8x128xbf16>
    %c0_7 = arith.constant 0 : index
    %c0_8 = arith.constant 0 : index
    %10 = vector.load %arg4[%c0_7, %c0_8] : memref<128x512xbf16, #tpu.memory_space<vmem>>, vector<128x512xbf16>
    %cst = arith.constant dense<0.000000e+00> : vector<8x512xf32>
    %11 = tpu.matmul %9, %10, %cst {dimension_numbers = #tpu.dot_dimension_numbers<[1], [0], [0], [1], [0, 0, 1, 1], [], []>} : vector<8x128xbf16>, vector<128x512xbf16>, vector<8x512xf32> -> vector<8x512xf32>
    %12 = arith.addf %8, %11 : vector<8x512xf32>
    %13 = vector.extract_strided_slice %12 {offsets = [0, 0], sizes = [8, 128], strides = [1, 1]} : vector<8x512xf32> to vector<8x128xf32>
    %14 = arith.negf %13 : vector<8x128xf32>
    %15 = math.exp %14 : vector<8x128xf32>
    %cst_9 = arith.constant 1.000000e+00 : f32
    %16 = vector.broadcast %cst_9 : f32 to vector<8x128xf32>
    %17 = arith.addf %16, %15 : vector<8x128xf32>
    %18 = arith.divf %16, %17 : vector<8x128xf32>
    %19 = vector.extract_strided_slice %12 {offsets = [0, 128], sizes = [8, 128], strides = [1, 1]} : vector<8x512xf32> to vector<8x128xf32>
    %20 = arith.negf %19 : vector<8x128xf32>
    %21 = math.exp %20 : vector<8x128xf32>
    %cst_10 = arith.constant 1.000000e+00 : f32
    %22 = vector.broadcast %cst_10 : f32 to vector<8x128xf32>
    %23 = arith.addf %22, %21 : vector<8x128xf32>
    %24 = arith.divf %22, %23 : vector<8x128xf32>
    %25 = vector.extract_strided_slice %12 {offsets = [0, 256], sizes = [8, 128], strides = [1, 1]} : vector<8x512xf32> to vector<8x128xf32>
    %26 = math.tanh %25 : vector<8x128xf32>
    %27 = vector.extract_strided_slice %12 {offsets = [0, 384], sizes = [8, 128], strides = [1, 1]} : vector<8x512xf32> to vector<8x128xf32>
    %28 = arith.negf %27 : vector<8x128xf32>
    %29 = math.exp %28 : vector<8x128xf32>
    %cst_11 = arith.constant 1.000000e+00 : f32
    %30 = vector.broadcast %cst_11 : f32 to vector<8x128xf32>
    %31 = arith.addf %30, %29 : vector<8x128xf32>
    %32 = arith.divf %30, %31 : vector<8x128xf32>
    %33 = arith.mulf %24, %4 : vector<8x128xf32>
    %34 = arith.mulf %18, %26 : vector<8x128xf32>
    %35 = arith.addf %33, %34 : vector<8x128xf32>
    %36 = math.tanh %35 : vector<8x128xf32>
    %37 = arith.mulf %32, %36 : vector<8x128xf32>
    %38 = arith.index_cast %c0_i32_4 : i32 to index
    %c0_12 = arith.constant 0 : index
    %c0_13 = arith.constant 0 : index
    %39 = vector.load %arg3[%38, %c0_12, %c0_13] : memref<8x8x128xf32, #tpu.memory_space<vmem>>, vector<1x8x128xf32>
    %40 = vector.shape_cast %39 : vector<1x8x128xf32> to vector<8x128xf32>
    %41 = arith.addf %37, %40 : vector<8x128xf32>
    %42 = arith.index_cast %c0_i32_4 : i32 to index
    %c0_14 = arith.constant 0 : index
    %c0_15 = arith.constant 0 : index
    %43 = vector.load %arg5[%42, %c0_14, %c0_15] : memref<8x8x128xf32, #tpu.memory_space<vmem>>, vector<1x8x128xf32>
    %44 = vector.shape_cast %43 : vector<1x8x128xf32> to vector<8x128xf32>
    %45 = vector.shape_cast %41 : vector<8x128xf32> to vector<1x8x128xf32>
    tpu.vector_store %arg5[%42, %c0_14, %c0_15], %45 {strides = array<i32>} : memref<8x8x128xf32, #tpu.memory_space<vmem>>, vector<1x8x128xf32>,
    %c1_i32 = arith.constant 1 : i32
    %46 = arith.index_cast %c1_i32 : i32 to index
    %c0_16 = arith.constant 0 : index
    %c0_17 = arith.constant 0 : index
    %47 = vector.load %arg2[%46, %c0_16, %c0_17] : memref<8x8x512xbf16, #tpu.memory_space<vmem>>, vector<1x8x512xbf16>
    %48 = vector.shape_cast %47 : vector<1x8x512xbf16> to vector<8x512xbf16>
    %49 = arith.extf %48 : vector<8x512xbf16> to vector<8x512xf32>
    %50 = arith.truncf %37 : vector<8x128xf32> to vector<8x128xbf16>
    %c0_18 = arith.constant 0 : index
    %c0_19 = arith.constant 0 : index
    %51 = vector.load %arg4[%c0_18, %c0_19] : memref<128x512xbf16, #tpu.memory_space<vmem>>, vector<128x512xbf16>
    %cst_20 = arith.constant dense<0.000000e+00> : vector<8x512xf32>
    %52 = tpu.matmul %50, %51, %cst_20 {dimension_numbers = #tpu.dot_dimension_numbers<[1], [0], [0], [1], [0, 0, 1, 1], [], []>} : vector<8x128xbf16>, vector<128x512xbf16>, vector<8x512xf32> -> vector<8x512xf32>
    %53 = arith.addf %49, %52 : vector<8x512xf32>
    %54 = vector.extract_strided_slice %53 {offsets = [0, 0], sizes = [8, 128], strides = [1, 1]} : vector<8x512xf32> to vector<8x128xf32>
    %55 = arith.negf %54 : vector<8x128xf32>
    %56 = math.exp %55 : vector<8x128xf32>
    %cst_21 = arith.constant 1.000000e+00 : f32
    %57 = vector.broadcast %cst_21 : f32 to vector<8x128xf32>
    %58 = arith.addf %57, %56 : vector<8x128xf32>
    %59 = arith.divf %57, %58 : vector<8x128xf32>
    %60 = vector.extract_strided_slice %53 {offsets = [0, 128], sizes = [8, 128], strides = [1, 1]} : vector<8x512xf32> to vector<8x128xf32>
    %61 = arith.negf %60 : vector<8x128xf32>
    %62 = math.exp %61 : vector<8x128xf32>
    %cst_22 = arith.constant 1.000000e+00 : f32
    %63 = vector.broadcast %cst_22 : f32 to vector<8x128xf32>
    %64 = arith.addf %63, %62 : vector<8x128xf32>
    %65 = arith.divf %63, %64 : vector<8x128xf32>
    %66 = vector.extract_strided_slice %53 {offsets = [0, 256], sizes = [8, 128], strides = [1, 1]} : vector<8x512xf32> to vector<8x128xf32>
    %67 = math.tanh %66 : vector<8x128xf32>
    %68 = vector.extract_strided_slice %53 {offsets = [0, 384], sizes = [8, 128], strides = [1, 1]} : vector<8x512xf32> to vector<8x128xf32>
    %69 = arith.negf %68 : vector<8x128xf32>
    %70 = math.exp %69 : vector<8x128xf32>
    %cst_23 = arith.constant 1.000000e+00 : f32
    %71 = vector.broadcast %cst_23 : f32 to vector<8x128xf32>
    %72 = arith.addf %71, %70 : vector<8x128xf32>
    %73 = arith.divf %71, %72 : vector<8x128xf32>
    %74 = arith.mulf %65, %35 : vector<8x128xf32>
    %75 = arith.mulf %59, %67 : vector<8x128xf32>
    %76 = arith.addf %74, %75 : vector<8x128xf32>
    %77 = math.tanh %76 : vector<8x128xf32>
    %78 = arith.mulf %73, %77 : vector<8x128xf32>
    %79 = arith.index_cast %c1_i32 : i32 to index
    %c0_24 = arith.constant 0 : index
    %c0_25 = arith.constant 0 : index
    %80 = vector.load %arg3[%79, %c0_24, %c0_25] : memref<8x8x128xf32, #tpu.memory_space<vmem>>, vector<1x8x128xf32>
    %81 = vector.shape_cast %80 : vector<1x8x128xf32> to vector<8x128xf32>
    %82 = arith.addf %78, %81 : vector<8x128xf32>
    %83 = arith.index_cast %c1_i32 : i32 to index
    %c0_26 = arith.constant 0 : index
    %c0_27 = arith.constant 0 : index
    %84 = vector.load %arg5[%83, %c0_26, %c0_27] : memref<8x8x128xf32, #tpu.memory_space<vmem>>, vector<1x8x128xf32>
    %85 = vector.shape_cast %84 : vector<1x8x128xf32> to vector<8x128xf32>
    %86 = vector.shape_cast %82 : vector<8x128xf32> to vector<1x8x128xf32>
    tpu.vector_store %arg5[%83, %c0_26, %c0_27], %86 {strides = array<i32>} : memref<8x8x128xf32, #tpu.memory_space<vmem>>, vector<1x8x128xf32>,
    %c2_i32 = arith.constant 2 : i32
    %87 = arith.index_cast %c2_i32 : i32 to index
    %c0_28 = arith.constant 0 : index
    %c0_29 = arith.constant 0 : index
    %88 = vector.load %arg2[%87, %c0_28, %c0_29] : memref<8x8x512xbf16, #tpu.memory_space<vmem>>, vector<1x8x512xbf16>
    %89 = vector.shape_cast %88 : vector<1x8x512xbf16> to vector<8x512xbf16>
    %90 = arith.extf %89 : vector<8x512xbf16> to vector<8x512xf32>
    %91 = arith.truncf %78 : vector<8x128xf32> to vector<8x128xbf16>
    %c0_30 = arith.constant 0 : index
    %c0_31 = arith.constant 0 : index
    %92 = vector.load %arg4[%c0_30, %c0_31] : memref<128x512xbf16, #tpu.memory_space<vmem>>, vector<128x512xbf16>
    %cst_32 = arith.constant dense<0.000000e+00> : vector<8x512xf32>
    %93 = tpu.matmul %91, %92, %cst_32 {dimension_numbers = #tpu.dot_dimension_numbers<[1], [0], [0], [1], [0, 0, 1, 1], [], []>} : vector<8x128xbf16>, vector<128x512xbf16>, vector<8x512xf32> -> vector<8x512xf32>
    %94 = arith.addf %90, %93 : vector<8x512xf32>
    %95 = vector.extract_strided_slice %94 {offsets = [0, 0], sizes = [8, 128], strides = [1, 1]} : vector<8x512xf32> to vector<8x128xf32>
    %96 = arith.negf %95 : vector<8x128xf32>
    %97 = math.exp %96 : vector<8x128xf32>
    %cst_33 = arith.constant 1.000000e+00 : f32
    %98 = vector.broadcast %cst_33 : f32 to vector<8x128xf32>
    %99 = arith.addf %98, %97 : vector<8x128xf32>
    %100 = arith.divf %98, %99 : vector<8x128xf32>
    %101 = vector.extract_strided_slice %94 {offsets = [0, 128], sizes = [8, 128], strides = [1, 1]} : vector<8x512xf32> to vector<8x128xf32>
    %102 = arith.negf %101 : vector<8x128xf32>
    %103 = math.exp %102 : vector<8x128xf32>
    %cst_34 = arith.constant 1.000000e+00 : f32
    %104 = vector.broadcast %cst_34 : f32 to vector<8x128xf32>
    %105 = arith.addf %104, %103 : vector<8x128xf32>
    %106 = arith.divf %104, %105 : vector<8x128xf32>
    %107 = vector.extract_strided_slice %94 {offsets = [0, 256], sizes = [8, 128], strides = [1, 1]} : vector<8x512xf32> to vector<8x128xf32>
    %108 = math.tanh %107 : vector<8x128xf32>
    %109 = vector.extract_strided_slice %94 {offsets = [0, 384], sizes = [8, 128], strides = [1, 1]} : vector<8x512xf32> to vector<8x128xf32>
    %110 = arith.negf %109 : vector<8x128xf32>
    %111 = math.exp %110 : vector<8x128xf32>
    %cst_35 = arith.constant 1.000000e+00 : f32
    %112 = vector.broadcast %cst_35 : f32 to vector<8x128xf32>
    %113 = arith.addf %112, %111 : vector<8x128xf32>
    %114 = arith.divf %112, %113 : vector<8x128xf32>
    %115 = arith.mulf %106, %76 : vector<8x128xf32>
    %116 = arith.mulf %100, %108 : vector<8x128xf32>
    %117 = arith.addf %115, %116 : vector<8x128xf32>
    %118 = math.tanh %117 : vector<8x128xf32>
    %119 = arith.mulf %114, %118 : vector<8x128xf32>
    %120 = arith.index_cast %c2_i32 : i32 to index
    %c0_36 = arith.constant 0 : index
    %c0_37 = arith.constant 0 : index
    %121 = vector.load %arg3[%120, %c0_36, %c0_37] : memref<8x8x128xf32, #tpu.memory_space<vmem>>, vector<1x8x128xf32>
    %122 = vector.shape_cast %121 : vector<1x8x128xf32> to vector<8x128xf32>
    %123 = arith.addf %119, %122 : vector<8x128xf32>
    %124 = arith.index_cast %c2_i32 : i32 to index
    %c0_38 = arith.constant 0 : index
    %c0_39 = arith.constant 0 : index
    %125 = vector.load %arg5[%124, %c0_38, %c0_39] : memref<8x8x128xf32, #tpu.memory_space<vmem>>, vector<1x8x128xf32>
    %126 = vector.shape_cast %125 : vector<1x8x128xf32> to vector<8x128xf32>
    %127 = vector.shape_cast %123 : vector<8x128xf32> to vector<1x8x128xf32>
    tpu.vector_store %arg5[%124, %c0_38, %c0_39], %127 {strides = array<i32>} : memref<8x8x128xf32, #tpu.memory_space<vmem>>, vector<1x8x128xf32>,
    %c3_i32 = arith.constant 3 : i32
    %128 = arith.index_cast %c3_i32 : i32 to index
    %c0_40 = arith.constant 0 : index
    %c0_41 = arith.constant 0 : index
    %129 = vector.load %arg2[%128, %c0_40, %c0_41] : memref<8x8x512xbf16, #tpu.memory_space<vmem>>, vector<1x8x512xbf16>
    %130 = vector.shape_cast %129 : vector<1x8x512xbf16> to vector<8x512xbf16>
    %131 = arith.extf %130 : vector<8x512xbf16> to vector<8x512xf32>
    %132 = arith.truncf %119 : vector<8x128xf32> to vector<8x128xbf16>
    %c0_42 = arith.constant 0 : index
    %c0_43 = arith.constant 0 : index
    %133 = vector.load %arg4[%c0_42, %c0_43] : memref<128x512xbf16, #tpu.memory_space<vmem>>, vector<128x512xbf16>
    %cst_44 = arith.constant dense<0.000000e+00> : vector<8x512xf32>
    %134 = tpu.matmul %132, %133, %cst_44 {dimension_numbers = #tpu.dot_dimension_numbers<[1], [0], [0], [1], [0, 0, 1, 1], [], []>} : vector<8x128xbf16>, vector<128x512xbf16>, vector<8x512xf32> -> vector<8x512xf32>
    %135 = arith.addf %131, %134 : vector<8x512xf32>
    %136 = vector.extract_strided_slice %135 {offsets = [0, 0], sizes = [8, 128], strides = [1, 1]} : vector<8x512xf32> to vector<8x128xf32>
    %137 = arith.negf %136 : vector<8x128xf32>
    %138 = math.exp %137 : vector<8x128xf32>
    %cst_45 = arith.constant 1.000000e+00 : f32
    %139 = vector.broadcast %cst_45 : f32 to vector<8x128xf32>
    %140 = arith.addf %139, %138 : vector<8x128xf32>
    %141 = arith.divf %139, %140 : vector<8x128xf32>
    %142 = vector.extract_strided_slice %135 {offsets = [0, 128], sizes = [8, 128], strides = [1, 1]} : vector<8x512xf32> to vector<8x128xf32>
    %143 = arith.negf %142 : vector<8x128xf32>
    %144 = math.exp %143 : vector<8x128xf32>
    %cst_46 = arith.constant 1.000000e+00 : f32
    %145 = vector.broadcast %cst_46 : f32 to vector<8x128xf32>
    %146 = arith.addf %145, %144 : vector<8x128xf32>
    %147 = arith.divf %145, %146 : vector<8x128xf32>
    %148 = vector.extract_strided_slice %135 {offsets = [0, 256], sizes = [8, 128], strides = [1, 1]} : vector<8x512xf32> to vector<8x128xf32>
    %149 = math.tanh %148 : vector<8x128xf32>
    %150 = vector.extract_strided_slice %135 {offsets = [0, 384], sizes = [8, 128], strides = [1, 1]} : vector<8x512xf32> to vector<8x128xf32>
    %151 = arith.negf %150 : vector<8x128xf32>
    %152 = math.exp %151 : vector<8x128xf32>
    %cst_47 = arith.constant 1.000000e+00 : f32
    %153 = vector.broadcast %cst_47 : f32 to vector<8x128xf32>
    %154 = arith.addf %153, %152 : vector<8x128xf32>
    %155 = arith.divf %153, %154 : vector<8x128xf32>
    %156 = arith.mulf %147, %117 : vector<8x128xf32>
    %157 = arith.mulf %141, %149 : vector<8x128xf32>
    %158 = arith.addf %156, %157 : vector<8x128xf32>
    %159 = math.tanh %158 : vector<8x128xf32>
    %160 = arith.mulf %155, %159 : vector<8x128xf32>
    %161 = arith.index_cast %c3_i32 : i32 to index
    %c0_48 = arith.constant 0 : index
    %c0_49 = arith.constant 0 : index
    %162 = vector.load %arg3[%161, %c0_48, %c0_49] : memref<8x8x128xf32, #tpu.memory_space<vmem>>, vector<1x8x128xf32>
    %163 = vector.shape_cast %162 : vector<1x8x128xf32> to vector<8x128xf32>
    %164 = arith.addf %160, %163 : vector<8x128xf32>
    %165 = arith.index_cast %c3_i32 : i32 to index
    %c0_50 = arith.constant 0 : index
    %c0_51 = arith.constant 0 : index
    %166 = vector.load %arg5[%165, %c0_50, %c0_51] : memref<8x8x128xf32, #tpu.memory_space<vmem>>, vector<1x8x128xf32>
    %167 = vector.shape_cast %166 : vector<1x8x128xf32> to vector<8x128xf32>
    %168 = vector.shape_cast %164 : vector<8x128xf32> to vector<1x8x128xf32>
    tpu.vector_store %arg5[%165, %c0_50, %c0_51], %168 {strides = array<i32>} : memref<8x8x128xf32, #tpu.memory_space<vmem>>, vector<1x8x128xf32>,
    %c4_i32 = arith.constant 4 : i32
    %169 = arith.index_cast %c4_i32 : i32 to index
    %c0_52 = arith.constant 0 : index
    %c0_53 = arith.constant 0 : index
    %170 = vector.load %arg2[%169, %c0_52, %c0_53] : memref<8x8x512xbf16, #tpu.memory_space<vmem>>, vector<1x8x512xbf16>
    %171 = vector.shape_cast %170 : vector<1x8x512xbf16> to vector<8x512xbf16>
    %172 = arith.extf %171 : vector<8x512xbf16> to vector<8x512xf32>
    %173 = arith.truncf %160 : vector<8x128xf32> to vector<8x128xbf16>
    %c0_54 = arith.constant 0 : index
    %c0_55 = arith.constant 0 : index
    %174 = vector.load %arg4[%c0_54, %c0_55] : memref<128x512xbf16, #tpu.memory_space<vmem>>, vector<128x512xbf16>
    %cst_56 = arith.constant dense<0.000000e+00> : vector<8x512xf32>
    %175 = tpu.matmul %173, %174, %cst_56 {dimension_numbers = #tpu.dot_dimension_numbers<[1], [0], [0], [1], [0, 0, 1, 1], [], []>} : vector<8x128xbf16>, vector<128x512xbf16>, vector<8x512xf32> -> vector<8x512xf32>
    %176 = arith.addf %172, %175 : vector<8x512xf32>
    %177 = vector.extract_strided_slice %176 {offsets = [0, 0], sizes = [8, 128], strides = [1, 1]} : vector<8x512xf32> to vector<8x128xf32>
    %178 = arith.negf %177 : vector<8x128xf32>
    %179 = math.exp %178 : vector<8x128xf32>
    %cst_57 = arith.constant 1.000000e+00 : f32
    %180 = vector.broadcast %cst_57 : f32 to vector<8x128xf32>
    %181 = arith.addf %180, %179 : vector<8x128xf32>
    %182 = arith.divf %180, %181 : vector<8x128xf32>
    %183 = vector.extract_strided_slice %176 {offsets = [0, 128], sizes = [8, 128], strides = [1, 1]} : vector<8x512xf32> to vector<8x128xf32>
    %184 = arith.negf %183 : vector<8x128xf32>
    %185 = math.exp %184 : vector<8x128xf32>
    %cst_58 = arith.constant 1.000000e+00 : f32
    %186 = vector.broadcast %cst_58 : f32 to vector<8x128xf32>
    %187 = arith.addf %186, %185 : vector<8x128xf32>
    %188 = arith.divf %186, %187 : vector<8x128xf32>
    %189 = vector.extract_strided_slice %176 {offsets = [0, 256], sizes = [8, 128], strides = [1, 1]} : vector<8x512xf32> to vector<8x128xf32>
    %190 = math.tanh %189 : vector<8x128xf32>
    %191 = vector.extract_strided_slice %176 {offsets = [0, 384], sizes = [8, 128], strides = [1, 1]} : vector<8x512xf32> to vector<8x128xf32>
    %192 = arith.negf %191 : vector<8x128xf32>
    %193 = math.exp %192 : vector<8x128xf32>
    %cst_59 = arith.constant 1.000000e+00 : f32
    %194 = vector.broadcast %cst_59 : f32 to vector<8x128xf32>
    %195 = arith.addf %194, %193 : vector<8x128xf32>
    %196 = arith.divf %194, %195 : vector<8x128xf32>
    %197 = arith.mulf %188, %158 : vector<8x128xf32>
    %198 = arith.mulf %182, %190 : vector<8x128xf32>
    %199 = arith.addf %197, %198 : vector<8x128xf32>
    %200 = math.tanh %199 : vector<8x128xf32>
    %201 = arith.mulf %196, %200 : vector<8x128xf32>
    %202 = arith.index_cast %c4_i32 : i32 to index
    %c0_60 = arith.constant 0 : index
    %c0_61 = arith.constant 0 : index
    %203 = vector.load %arg3[%202, %c0_60, %c0_61] : memref<8x8x128xf32, #tpu.memory_space<vmem>>, vector<1x8x128xf32>
    %204 = vector.shape_cast %203 : vector<1x8x128xf32> to vector<8x128xf32>
    %205 = arith.addf %201, %204 : vector<8x128xf32>
    %206 = arith.index_cast %c4_i32 : i32 to index
    %c0_62 = arith.constant 0 : index
    %c0_63 = arith.constant 0 : index
    %207 = vector.load %arg5[%206, %c0_62, %c0_63] : memref<8x8x128xf32, #tpu.memory_space<vmem>>, vector<1x8x128xf32>
    %208 = vector.shape_cast %207 : vector<1x8x128xf32> to vector<8x128xf32>
    %209 = vector.shape_cast %205 : vector<8x128xf32> to vector<1x8x128xf32>
    tpu.vector_store %arg5[%206, %c0_62, %c0_63], %209 {strides = array<i32>} : memref<8x8x128xf32, #tpu.memory_space<vmem>>, vector<1x8x128xf32>,
    %c5_i32 = arith.constant 5 : i32
    %210 = arith.index_cast %c5_i32 : i32 to index
    %c0_64 = arith.constant 0 : index
    %c0_65 = arith.constant 0 : index
    %211 = vector.load %arg2[%210, %c0_64, %c0_65] : memref<8x8x512xbf16, #tpu.memory_space<vmem>>, vector<1x8x512xbf16>
    %212 = vector.shape_cast %211 : vector<1x8x512xbf16> to vector<8x512xbf16>
    %213 = arith.extf %212 : vector<8x512xbf16> to vector<8x512xf32>
    %214 = arith.truncf %201 : vector<8x128xf32> to vector<8x128xbf16>
    %c0_66 = arith.constant 0 : index
    %c0_67 = arith.constant 0 : index
    %215 = vector.load %arg4[%c0_66, %c0_67] : memref<128x512xbf16, #tpu.memory_space<vmem>>, vector<128x512xbf16>
    %cst_68 = arith.constant dense<0.000000e+00> : vector<8x512xf32>
    %216 = tpu.matmul %214, %215, %cst_68 {dimension_numbers = #tpu.dot_dimension_numbers<[1], [0], [0], [1], [0, 0, 1, 1], [], []>} : vector<8x128xbf16>, vector<128x512xbf16>, vector<8x512xf32> -> vector<8x512xf32>
    %217 = arith.addf %213, %216 : vector<8x512xf32>
    %218 = vector.extract_strided_slice %217 {offsets = [0, 0], sizes = [8, 128], strides = [1, 1]} : vector<8x512xf32> to vector<8x128xf32>
    %219 = arith.negf %218 : vector<8x128xf32>
    %220 = math.exp %219 : vector<8x128xf32>
    %cst_69 = arith.constant 1.000000e+00 : f32
    %221 = vector.broadcast %cst_69 : f32 to vector<8x128xf32>
    %222 = arith.addf %221, %220 : vector<8x128xf32>
    %223 = arith.divf %221, %222 : vector<8x128xf32>
    %224 = vector.extract_strided_slice %217 {offsets = [0, 128], sizes = [8, 128], strides = [1, 1]} : vector<8x512xf32> to vector<8x128xf32>
    %225 = arith.negf %224 : vector<8x128xf32>
    %226 = math.exp %225 : vector<8x128xf32>
    %cst_70 = arith.constant 1.000000e+00 : f32
    %227 = vector.broadcast %cst_70 : f32 to vector<8x128xf32>
    %228 = arith.addf %227, %226 : vector<8x128xf32>
    %229 = arith.divf %227, %228 : vector<8x128xf32>
    %230 = vector.extract_strided_slice %217 {offsets = [0, 256], sizes = [8, 128], strides = [1, 1]} : vector<8x512xf32> to vector<8x128xf32>
    %231 = math.tanh %230 : vector<8x128xf32>
    %232 = vector.extract_strided_slice %217 {offsets = [0, 384], sizes = [8, 128], strides = [1, 1]} : vector<8x512xf32> to vector<8x128xf32>
    %233 = arith.negf %232 : vector<8x128xf32>
    %234 = math.exp %233 : vector<8x128xf32>
    %cst_71 = arith.constant 1.000000e+00 : f32
    %235 = vector.broadcast %cst_71 : f32 to vector<8x128xf32>
    %236 = arith.addf %235, %234 : vector<8x128xf32>
    %237 = arith.divf %235, %236 : vector<8x128xf32>
    %238 = arith.mulf %229, %199 : vector<8x128xf32>
    %239 = arith.mulf %223, %231 : vector<8x128xf32>
    %240 = arith.addf %238, %239 : vector<8x128xf32>
    %241 = math.tanh %240 : vector<8x128xf32>
    %242 = arith.mulf %237, %241 : vector<8x128xf32>
    %243 = arith.index_cast %c5_i32 : i32 to index
    %c0_72 = arith.constant 0 : index
    %c0_73 = arith.constant 0 : index
    %244 = vector.load %arg3[%243, %c0_72, %c0_73] : memref<8x8x128xf32, #tpu.memory_space<vmem>>, vector<1x8x128xf32>
    %245 = vector.shape_cast %244 : vector<1x8x128xf32> to vector<8x128xf32>
    %246 = arith.addf %242, %245 : vector<8x128xf32>
    %247 = arith.index_cast %c5_i32 : i32 to index
    %c0_74 = arith.constant 0 : index
    %c0_75 = arith.constant 0 : index
    %248 = vector.load %arg5[%247, %c0_74, %c0_75] : memref<8x8x128xf32, #tpu.memory_space<vmem>>, vector<1x8x128xf32>
    %249 = vector.shape_cast %248 : vector<1x8x128xf32> to vector<8x128xf32>
    %250 = vector.shape_cast %246 : vector<8x128xf32> to vector<1x8x128xf32>
    tpu.vector_store %arg5[%247, %c0_74, %c0_75], %250 {strides = array<i32>} : memref<8x8x128xf32, #tpu.memory_space<vmem>>, vector<1x8x128xf32>,
    %c6_i32 = arith.constant 6 : i32
    %251 = arith.index_cast %c6_i32 : i32 to index
    %c0_76 = arith.constant 0 : index
    %c0_77 = arith.constant 0 : index
    %252 = vector.load %arg2[%251, %c0_76, %c0_77] : memref<8x8x512xbf16, #tpu.memory_space<vmem>>, vector<1x8x512xbf16>
    %253 = vector.shape_cast %252 : vector<1x8x512xbf16> to vector<8x512xbf16>
    %254 = arith.extf %253 : vector<8x512xbf16> to vector<8x512xf32>
    %255 = arith.truncf %242 : vector<8x128xf32> to vector<8x128xbf16>
    %c0_78 = arith.constant 0 : index
    %c0_79 = arith.constant 0 : index
    %256 = vector.load %arg4[%c0_78, %c0_79] : memref<128x512xbf16, #tpu.memory_space<vmem>>, vector<128x512xbf16>
    %cst_80 = arith.constant dense<0.000000e+00> : vector<8x512xf32>
    %257 = tpu.matmul %255, %256, %cst_80 {dimension_numbers = #tpu.dot_dimension_numbers<[1], [0], [0], [1], [0, 0, 1, 1], [], []>} : vector<8x128xbf16>, vector<128x512xbf16>, vector<8x512xf32> -> vector<8x512xf32>
    %258 = arith.addf %254, %257 : vector<8x512xf32>
    %259 = vector.extract_strided_slice %258 {offsets = [0, 0], sizes = [8, 128], strides = [1, 1]} : vector<8x512xf32> to vector<8x128xf32>
    %260 = arith.negf %259 : vector<8x128xf32>
    %261 = math.exp %260 : vector<8x128xf32>
    %cst_81 = arith.constant 1.000000e+00 : f32
    %262 = vector.broadcast %cst_81 : f32 to vector<8x128xf32>
    %263 = arith.addf %262, %261 : vector<8x128xf32>
    %264 = arith.divf %262, %263 : vector<8x128xf32>
    %265 = vector.extract_strided_slice %258 {offsets = [0, 128], sizes = [8, 128], strides = [1, 1]} : vector<8x512xf32> to vector<8x128xf32>
    %266 = arith.negf %265 : vector<8x128xf32>
    %267 = math.exp %266 : vector<8x128xf32>
    %cst_82 = arith.constant 1.000000e+00 : f32
    %268 = vector.broadcast %cst_82 : f32 to vector<8x128xf32>
    %269 = arith.addf %268, %267 : vector<8x128xf32>
    %270 = arith.divf %268, %269 : vector<8x128xf32>
    %271 = vector.extract_strided_slice %258 {offsets = [0, 256], sizes = [8, 128], strides = [1, 1]} : vector<8x512xf32> to vector<8x128xf32>
    %272 = math.tanh %271 : vector<8x128xf32>
    %273 = vector.extract_strided_slice %258 {offsets = [0, 384], sizes = [8, 128], strides = [1, 1]} : vector<8x512xf32> to vector<8x128xf32>
    %274 = arith.negf %273 : vector<8x128xf32>
    %275 = math.exp %274 : vector<8x128xf32>
    %cst_83 = arith.constant 1.000000e+00 : f32
    %276 = vector.broadcast %cst_83 : f32 to vector<8x128xf32>
    %277 = arith.addf %276, %275 : vector<8x128xf32>
    %278 = arith.divf %276, %277 : vector<8x128xf32>
    %279 = arith.mulf %270, %240 : vector<8x128xf32>
    %280 = arith.mulf %264, %272 : vector<8x128xf32>
    %281 = arith.addf %279, %280 : vector<8x128xf32>
    %282 = math.tanh %281 : vector<8x128xf32>
    %283 = arith.mulf %278, %282 : vector<8x128xf32>
    %284 = arith.index_cast %c6_i32 : i32 to index
    %c0_84 = arith.constant 0 : index
    %c0_85 = arith.constant 0 : index
    %285 = vector.load %arg3[%284, %c0_84, %c0_85] : memref<8x8x128xf32, #tpu.memory_space<vmem>>, vector<1x8x128xf32>
    %286 = vector.shape_cast %285 : vector<1x8x128xf32> to vector<8x128xf32>
    %287 = arith.addf %283, %286 : vector<8x128xf32>
    %288 = arith.index_cast %c6_i32 : i32 to index
    %c0_86 = arith.constant 0 : index
    %c0_87 = arith.constant 0 : index
    %289 = vector.load %arg5[%288, %c0_86, %c0_87] : memref<8x8x128xf32, #tpu.memory_space<vmem>>, vector<1x8x128xf32>
    %290 = vector.shape_cast %289 : vector<1x8x128xf32> to vector<8x128xf32>
    %291 = vector.shape_cast %287 : vector<8x128xf32> to vector<1x8x128xf32>
    tpu.vector_store %arg5[%288, %c0_86, %c0_87], %291 {strides = array<i32>} : memref<8x8x128xf32, #tpu.memory_space<vmem>>, vector<1x8x128xf32>,
    %c7_i32 = arith.constant 7 : i32
    %292 = arith.index_cast %c7_i32 : i32 to index
    %c0_88 = arith.constant 0 : index
    %c0_89 = arith.constant 0 : index
    %293 = vector.load %arg2[%292, %c0_88, %c0_89] : memref<8x8x512xbf16, #tpu.memory_space<vmem>>, vector<1x8x512xbf16>
    %294 = vector.shape_cast %293 : vector<1x8x512xbf16> to vector<8x512xbf16>
    %295 = arith.extf %294 : vector<8x512xbf16> to vector<8x512xf32>
    %296 = arith.truncf %283 : vector<8x128xf32> to vector<8x128xbf16>
    %c0_90 = arith.constant 0 : index
    %c0_91 = arith.constant 0 : index
    %297 = vector.load %arg4[%c0_90, %c0_91] : memref<128x512xbf16, #tpu.memory_space<vmem>>, vector<128x512xbf16>
    %cst_92 = arith.constant dense<0.000000e+00> : vector<8x512xf32>
    %298 = tpu.matmul %296, %297, %cst_92 {dimension_numbers = #tpu.dot_dimension_numbers<[1], [0], [0], [1], [0, 0, 1, 1], [], []>} : vector<8x128xbf16>, vector<128x512xbf16>, vector<8x512xf32> -> vector<8x512xf32>
    %299 = arith.addf %295, %298 : vector<8x512xf32>
    %300 = vector.extract_strided_slice %299 {offsets = [0, 0], sizes = [8, 128], strides = [1, 1]} : vector<8x512xf32> to vector<8x128xf32>
    %301 = arith.negf %300 : vector<8x128xf32>
    %302 = math.exp %301 : vector<8x128xf32>
    %cst_93 = arith.constant 1.000000e+00 : f32
    %303 = vector.broadcast %cst_93 : f32 to vector<8x128xf32>
    %304 = arith.addf %303, %302 : vector<8x128xf32>
    %305 = arith.divf %303, %304 : vector<8x128xf32>
    %306 = vector.extract_strided_slice %299 {offsets = [0, 128], sizes = [8, 128], strides = [1, 1]} : vector<8x512xf32> to vector<8x128xf32>
    %307 = arith.negf %306 : vector<8x128xf32>
    %308 = math.exp %307 : vector<8x128xf32>
    %cst_94 = arith.constant 1.000000e+00 : f32
    %309 = vector.broadcast %cst_94 : f32 to vector<8x128xf32>
    %310 = arith.addf %309, %308 : vector<8x128xf32>
    %311 = arith.divf %309, %310 : vector<8x128xf32>
    %312 = vector.extract_strided_slice %299 {offsets = [0, 256], sizes = [8, 128], strides = [1, 1]} : vector<8x512xf32> to vector<8x128xf32>
    %313 = math.tanh %312 : vector<8x128xf32>
    %314 = vector.extract_strided_slice %299 {offsets = [0, 384], sizes = [8, 128], strides = [1, 1]} : vector<8x512xf32> to vector<8x128xf32>
    %315 = arith.negf %314 : vector<8x128xf32>
    %316 = math.exp %315 : vector<8x128xf32>
    %cst_95 = arith.constant 1.000000e+00 : f32
    %317 = vector.broadcast %cst_95 : f32 to vector<8x128xf32>
    %318 = arith.addf %317, %316 : vector<8x128xf32>
    %319 = arith.divf %317, %318 : vector<8x128xf32>
    %320 = arith.mulf %311, %281 : vector<8x128xf32>
    %321 = arith.mulf %305, %313 : vector<8x128xf32>
    %322 = arith.addf %320, %321 : vector<8x128xf32>
    %323 = math.tanh %322 : vector<8x128xf32>
    %324 = arith.mulf %319, %323 : vector<8x128xf32>
    %325 = arith.index_cast %c7_i32 : i32 to index
    %c0_96 = arith.constant 0 : index
    %c0_97 = arith.constant 0 : index
    %326 = vector.load %arg3[%325, %c0_96, %c0_97] : memref<8x8x128xf32, #tpu.memory_space<vmem>>, vector<1x8x128xf32>
    %327 = vector.shape_cast %326 : vector<1x8x128xf32> to vector<8x128xf32>
    %328 = arith.addf %324, %327 : vector<8x128xf32>
    %329 = arith.index_cast %c7_i32 : i32 to index
    %c0_98 = arith.constant 0 : index
    %c0_99 = arith.constant 0 : index
    %330 = vector.load %arg5[%329, %c0_98, %c0_99] : memref<8x8x128xf32, #tpu.memory_space<vmem>>, vector<1x8x128xf32>
    %331 = vector.shape_cast %330 : vector<1x8x128xf32> to vector<8x128xf32>
    %332 = vector.shape_cast %328 : vector<8x128xf32> to vector<1x8x128xf32>
    tpu.vector_store %arg5[%329, %c0_98, %c0_99], %332 {strides = array<i32>} : memref<8x8x128xf32, #tpu.memory_space<vmem>>, vector<1x8x128xf32>,
    %c8_i32 = arith.constant 8 : i32
    %c0_100 = arith.constant 0 : index
    %c0_101 = arith.constant 0 : index
    %333 = vector.load %arg6[%c0_100, %c0_101] : memref<8x128xf32, #tpu.memory_space<vmem>>, vector<8x128xf32>
    tpu.vector_store %arg6[%c0_100, %c0_101], %324 {strides = array<i32>} : memref<8x128xf32, #tpu.memory_space<vmem>>, vector<8x128xf32>,
    %c0_102 = arith.constant 0 : index
    %c0_103 = arith.constant 0 : index
    %334 = vector.load %arg7[%c0_102, %c0_103] : memref<8x128xf32, #tpu.memory_space<vmem>>, vector<8x128xf32>
    tpu.vector_store %arg7[%c0_102, %c0_103], %322 {strides = array<i32>} : memref<8x128xf32, #tpu.memory_space<vmem>>, vector<8x128xf32>,
    return
  }
  func.func @transform_0(%arg0: i32, %arg1: i32) -> (i32, i32, i32) {
    %c0_i32 = arith.constant 0 : i32
    %c0_i32_0 = arith.constant 0 : i32
    return %arg1, %arg0, %c0_i32 : i32, i32, i32
  }
  func.func @transform_1(%arg0: i32, %arg1: i32) -> (i32, i32, i32) {
    %c0_i32 = arith.constant 0 : i32
    %c0_i32_0 = arith.constant 0 : i32
    return %arg1, %arg0, %c0_i32 : i32, i32, i32
  }
  func.func @transform_2(%arg0: i32, %arg1: i32) -> (i32, i32) {
    %c0_i32 = arith.constant 0 : i32
    %c0_i32_0 = arith.constant 0 : i32
    %c0_i32_1 = arith.constant 0 : i32
    return %c0_i32, %c0_i32_0 : i32, i32
  }
  func.func @transform_3(%arg0: i32, %arg1: i32) -> (i32, i32, i32) {
    %c0_i32 = arith.constant 0 : i32
    %c0_i32_0 = arith.constant 0 : i32
    return %arg1, %arg0, %c0_i32 : i32, i32, i32
  }
}

</mosaic_0001>

<llo_original>
// kernel: vibe_lstm_forward.2
$region0: #{vibe_lstm_forward.2}
  #allocation0 [shape = 'u32[]', space=smem, size = 0x4, offset = 0x4, fixed_abs, tag = 'smem constant byte address 0x4 - core index']
  #allocation1 [shape = 'u32[144,128]{1,0:T(1,128)}', space=vmem, size = 0x12000, scoped, tag = 'internal scratch']
  %s0 = inlined_call_operand.vmem [shape: f32[2,8,256,4], index: 0, kind: input, shape index: {}]
  %s1 = inlined_call_operand.vmem [shape: bf16[4,128], index: 1, kind: input, shape index: {}]
  %s2 = inlined_call_operand.vmem [shape: f32[1,128], index: 2, kind: input, shape index: {}]
  %s3 = inlined_call_operand.vmem [shape: bf16[128,512], index: 3, kind: input, shape index: {}]
  %s4 = inlined_call_operand.vmem [shape: f32[1,512], index: 4, kind: input, shape index: {}]
  %s5 = inlined_call_operand.vmem [shape: f32[8,2,128], index: 5, kind: output, shape index: {0}]
  %s6 = inlined_call_operand.vmem [shape: bf16[8,2,512], index: 6, kind: output, shape index: {1}]
  %7 = xla_tuple %s5, %s6
  %s8 = sld [smem:[#allocation0]]
  $region99: #{vibe_lstm_forward.2} parent=0
    _
  %s10 = ssub.s32 1, %s8
  %s11 = scalar_select 0, %s10, %s8
  $region1: #{vibe_lstm_forward.2} parent=0
    #allocation2 [shape = 'u8[524288]{0}', space=vmem, size = 0x80000, scoped, tag = 'input window, operand 0']
    loop: start=0, step=1, limit=10
    $region2: #{vibe_lstm_forward.2} parent=1 // loop_pre_header
      _
    $region3: #{vibe_lstm_forward.2} parent=1 // loop_header
      %s13 = sphi 0, %s17
      %p14 = scmp.ge.s32.totalorder %s13, 10
      %s20 = sphi 0, %s32
      %s21 = sphi 0, %s28
      %s22 = sphi 0, %s20
      %s23 = sphi 0, %s21
      %s24 = sphi 0, %s22
      %s25 = sphi 0, %s23
      %s37 = sphi 0, %s39
      %s40 = sphi 0, %s37
      %s41 = sphi 0, %s40
      %s57 = sphi 0, %s41
      %s61 = sphi 0, %s61
      %s63 = sphi 0, %s61
      %s64 = sphi 0, %s63
      %s78 = sphi 0, %s64
      %s82 = sphi 0, %s82
      %s84 = sphi 0, %s82
      %s85 = sphi 0, %s84
      %s99 = sphi 0, %s85
      %s103 = sphi 0, %s103
      %s105 = sphi 0, %s103
      %s106 = sphi 0, %s105
      %s120 = sphi 0, %s106
      %s124 = sphi 0, %s124
      %s126 = sphi 0, %s124
      %s127 = sphi 0, %s126
      %s141 = sphi 0, %s127
      %s149 = sphi 0, %s151
      %s152 = sphi 0, %s149
      %s153 = sphi 0, %s152
      %s169 = sphi 0, %s153
      %s177 = sphi 0, %s179
      %s180 = sphi 0, %s177
      %s181 = sphi 0, %s180
      %s197 = sphi 0, %s181
    $region4: #{vibe_lstm_forward.2} parent=1 // loop_header_branch
      %16 = sbr.rel (%p14) target = $region8
    $region5: #{vibe_lstm_forward.2} parent=1 // loop_body
      %s18 = ssub.s32 %s13, 1
      %s19 = ssub.s32 %s13, 2
      %s26 = sadd.s32 1, %s21
      %p27 = scmp.ge.s32.totalorder %s26, 1
      %s28 = scalar_select %p27, 0, %s26
      %s29 = sadd.s32 1, %s20
      %s30 = scalar_select %p27, %s29, %s20
      %p31 = scmp.ge.s32.totalorder %s30, 8
      %s32 = scalar_select %p31, 0, %s30
      %s33 = ssub.s32 %s21, %s28
      %s34 = ssub.s32 %s20, %s32
      %s35 = sor.u32 %s33, %s34
      %p36 = scmp.eq.s32.totalorder %s35, 0
      %s38 = sadd.s32 %s37, 1
      %s39 = scalar_select %p36, %s37, %s38
      %p42 = pneg %p36
      %p43 = scmp.eq.s32.totalorder %s13, 7
      %p44 = por %p42, %p43
      %p45 = scmp.ne.s32.totalorder %s37, %s40
      %p46 = scmp.eq.s32.totalorder %s13, 0
      %p47 = por %p45, %p46
      %p48 = scmp.ne.s32.totalorder %s37, %s40
      %p49 = scmp.eq.s32.totalorder %s18, 7
      %p50 = por %p48, %p49
      %p51 = scmp.ne.s32.totalorder %s40, %s41
      %p52 = scmp.eq.s32.totalorder %s18, 0
      %p53 = por %p51, %p52
      %p54 = scmp.ne.s32.totalorder %s40, %s41
      %p55 = scmp.eq.s32.totalorder %s19, 7
      %p56 = por %p54, %p55
      %p58 = scmp.ne.s32.totalorder %s41, %s57
      %p59 = scmp.eq.s32.totalorder %s19, 0
      %p60 = por %p58, %p59
      %s62 = sadd.s32 %s61, 1
      %p65 = scmp.eq.s32.totalorder %s13, 7
      %p66 = scmp.ne.s32.totalorder %s61, %s63
      %p67 = scmp.eq.s32.totalorder %s13, 0
      %p68 = por %p66, %p67
      %p69 = scmp.ne.s32.totalorder %s61, %s63
      %p70 = scmp.eq.s32.totalorder %s18, 7
      %p71 = por %p69, %p70
      %p72 = scmp.ne.s32.totalorder %s63, %s64
      %p73 = scmp.eq.s32.totalorder %s18, 0
      %p74 = por %p72, %p73
      %p75 = scmp.ne.s32.totalorder %s63, %s64
      %p76 = scmp.eq.s32.totalorder %s19, 7
      %p77 = por %p75, %p76
      %p79 = scmp.ne.s32.totalorder %s64, %s78
      %p80 = scmp.eq.s32.totalorder %s19, 0
      %p81 = por %p79, %p80
      %s83 = sadd.s32 %s82, 1
      %p86 = scmp.eq.s32.totalorder %s13, 7
      %p87 = scmp.ne.s32.totalorder %s82, %s84
      %p88 = scmp.eq.s32.totalorder %s13, 0
      %p89 = por %p87, %p88
      %p90 = scmp.ne.s32.totalorder %s82, %s84
      %p91 = scmp.eq.s32.totalorder %s18, 7
      %p92 = por %p90, %p91
      %p93 = scmp.ne.s32.totalorder %s84, %s85
      %p94 = scmp.eq.s32.totalorder %s18, 0
      %p95 = por %p93, %p94
      %p96 = scmp.ne.s32.totalorder %s84, %s85
      %p97 = scmp.eq.s32.totalorder %s19, 7
      %p98 = por %p96, %p97
      %p100 = scmp.ne.s32.totalorder %s85, %s99
      %p101 = scmp.eq.s32.totalorder %s19, 0
      %p102 = por %p100, %p101
      %s104 = sadd.s32 %s103, 1
      %p107 = scmp.eq.s32.totalorder %s13, 7
      %p108 = scmp.ne.s32.totalorder %s103, %s105
      %p109 = scmp.eq.s32.totalorder %s13, 0
      %p110 = por %p108, %p109
      %p111 = scmp.ne.s32.totalorder %s103, %s105
      %p112 = scmp.eq.s32.totalorder %s18, 7
      %p113 = por %p111, %p112
      %p114 = scmp.ne.s32.totalorder %s105, %s106
      %p115 = scmp.eq.s32.totalorder %s18, 0
      %p116 = por %p114, %p115
      %p117 = scmp.ne.s32.totalorder %s105, %s106
      %p118 = scmp.eq.s32.totalorder %s19, 7
      %p119 = por %p117, %p118
      %p121 = scmp.ne.s32.totalorder %s106, %s120
      %p122 = scmp.eq.s32.totalorder %s19, 0
      %p123 = por %p121, %p122
      %s125 = sadd.s32 %s124, 1
      %p128 = scmp.eq.s32.totalorder %s13, 7
      %p129 = scmp.ne.s32.totalorder %s124, %s126
      %p130 = scmp.eq.s32.totalorder %s13, 0
      %p131 = por %p129, %p130
      %p132 = scmp.ne.s32.totalorder %s124, %s126
      %p133 = scmp.eq.s32.totalorder %s18, 7
      %p134 = por %p132, %p133
      %p135 = scmp.ne.s32.totalorder %s126, %s127
      %p136 = scmp.eq.s32.totalorder %s18, 0
      %p137 = por %p135, %p136
      %p138 = scmp.ne.s32.totalorder %s126, %s127
      %p139 = scmp.eq.s32.totalorder %s19, 7
      %p140 = por %p138, %p139
      %p142 = scmp.ne.s32.totalorder %s127, %s141
      %p143 = scmp.eq.s32.totalorder %s19, 0
      %p144 = por %p142, %p143
      %s145 = ssub.s32 %s20, %s32
      %s146 = ssub.s32 %s21, %s28
      %s147 = sor.u32 %s145, %s146
      %p148 = scmp.eq.s32.totalorder %s147, 0
      %s150 = sadd.s32 %s149, 1
      %s151 = scalar_select %p148, %s149, %s150
      %p154 = pneg %p148
      %p155 = scmp.eq.s32.totalorder %s13, 7
      %p156 = por %p154, %p155
      %p157 = scmp.ne.s32.totalorder %s149, %s152
      %p158 = scmp.eq.s32.totalorder %s13, 0
      %p159 = por %p157, %p158
      %p160 = scmp.ne.s32.totalorder %s149, %s152
      %p161 = scmp.eq.s32.totalorder %s18, 7
      %p162 = por %p160, %p161
      %p163 = scmp.ne.s32.totalorder %s152, %s153
      %p164 = scmp.eq.s32.totalorder %s18, 0
      %p165 = por %p163, %p164
      %p166 = scmp.ne.s32.totalorder %s152, %s153
      %p167 = scmp.eq.s32.totalorder %s19, 7
      %p168 = por %p166, %p167
      %p170 = scmp.ne.s32.totalorder %s153, %s169
      %p171 = scmp.eq.s32.totalorder %s19, 0
      %p172 = por %p170, %p171
      %s173 = ssub.s32 %s20, %s32
      %s174 = ssub.s32 %s21, %s28
      %s175 = sor.u32 %s173, %s174
      %p176 = scmp.eq.s32.totalorder %s175, 0
      %s178 = sadd.s32 %s177, 1
      %s179 = scalar_select %p176, %s177, %s178
      %p182 = pneg %p176
      %p183 = scmp.eq.s32.totalorder %s13, 7
      %p184 = por %p182, %p183
      %p185 = scmp.ne.s32.totalorder %s177, %s180
      %p186 = scmp.eq.s32.totalorder %s13, 0
      %p187 = por %p185, %p186
      %p188 = scmp.ne.s32.totalorder %s177, %s180
      %p189 = scmp.eq.s32.totalorder %s18, 7
      %p190 = por %p188, %p189
      %p191 = scmp.ne.s32.totalorder %s180, %s181
      %p192 = scmp.eq.s32.totalorder %s18, 0
      %p193 = por %p191, %p192
      %p194 = scmp.ne.s32.totalorder %s180, %s181
      %p195 = scmp.eq.s32.totalorder %s19, 7
      %p196 = por %p194, %p195
      %p198 = scmp.ne.s32.totalorder %s181, %s197
      %p199 = scmp.eq.s32.totalorder %s19, 0
      %p200 = por %p198, %p199
      %p201 = scmp.le.s32.totalorder 1, %s13
      %p202 = scmp.lt.s32.totalorder %s13, 9
      %p203 = pnand %p201, %p202
      %p204 = pneg %p203
      // Predicated region
      $region9: #{vibe_lstm_forward.2} parent=5 // pred_check
        _
      $region10: #{vibe_lstm_forward.2} parent=5 // pred_check_branch
        %206 = sbr.rel (%p203) target = $region12
      $region11: #{vibe_lstm_forward.2} parent=5 // pred_region
        %s207 = ssub.s32 %s13, 1
        // Predicated region
        $region13: #{vibe_lstm_forward.2} parent=11 // pred_check
          %p208 = pneg %p74
        $region14: #{vibe_lstm_forward.2} parent=11 // pred_check_branch
          %210 = sbr.rel (%p208) target = $region16
        $region15: #{vibe_lstm_forward.2} parent=11 // pred_region
          _
        $region16: #{vibe_lstm_forward.2} parent=11 // pred_fallthru
          _
        // Predicated region
        $region17: #{vibe_lstm_forward.2} parent=11 // pred_check
          %p211 = pneg %p95
        $region18: #{vibe_lstm_forward.2} parent=11 // pred_check_branch
          %213 = sbr.rel (%p211) target = $region20
        $region19: #{vibe_lstm_forward.2} parent=11 // pred_region
          _
        $region20: #{vibe_lstm_forward.2} parent=11 // pred_fallthru
          _
        // Predicated region
        $region21: #{vibe_lstm_forward.2} parent=11 // pred_check
          %p214 = pneg %p116
        $region22: #{vibe_lstm_forward.2} parent=11 // pred_check_branch
          %216 = sbr.rel (%p214) target = $region24
        $region23: #{vibe_lstm_forward.2} parent=11 // pred_region
          _
        $region24: #{vibe_lstm_forward.2} parent=11 // pred_fallthru
          _
        // Predicated region
        $region25: #{vibe_lstm_forward.2} parent=11 // pred_check
          %p217 = pneg %p137
        $region26: #{vibe_lstm_forward.2} parent=11 // pred_check_branch
          %219 = sbr.rel (%p217) target = $region28
        $region27: #{vibe_lstm_forward.2} parent=11 // pred_region
          _
        $region28: #{vibe_lstm_forward.2} parent=11 // pred_fallthru
          _
      $region12: #{vibe_lstm_forward.2} parent=5 // pred_fallthru
        _
      %p220 = scmp.lt.s32.totalorder %s13, 8
      // Predicated region
      $region29: #{vibe_lstm_forward.2} parent=5 // pred_check
        %p221 = pneg %p220
      $region30: #{vibe_lstm_forward.2} parent=5 // pred_check_branch
        %223 = sbr.rel (%p221) target = $region32
      $region31: #{vibe_lstm_forward.2} parent=5 // pred_region
        // Predicated region
        $region33: #{vibe_lstm_forward.2} parent=31 // pred_check
          %p224 = pneg %p47
        $region34: #{vibe_lstm_forward.2} parent=31 // pred_check_branch
          %226 = sbr.rel (%p224) target = $region36
        $region35: #{vibe_lstm_forward.2} parent=31 // pred_region
          %s227 = sand.u32 %s37, 1
          %s228 = sand.u32 %s37, 1
          %s229 = smul.addr %s228, 512
          %s230 = scalar_lea.vmem [#allocation2], %s229
          %s231 = smul.u32 2, %s21
          %s232 = smul.addr %s20, 32
          %s233 = smul.addr %s231, 256
          %s234 = sadd.s32 %s232, %s233
          %s235 = smul.addr %s234, 8
          %s236 = scalar_lea.vmem %s0, %s235
          // Predicated region
          $region37: #{vibe_lstm_forward.2} parent=35 // pred_check
            _
          $region38: #{vibe_lstm_forward.2} parent=35 // pred_check_branch
            %238 = sbr.rel (0) target = $region40
          $region39: #{vibe_lstm_forward.2} parent=35 // pred_region
            // Predicated region
            $region41: #{vibe_lstm_forward.2} parent=39 // pred_check
              _
            $region42: #{vibe_lstm_forward.2} parent=39 // pred_check_branch
              %240 = sbr.rel (0) target = $region44
            $region43: #{vibe_lstm_forward.2} parent=39 // pred_region
              // Predicated region
              $region56: #{vibe_lstm_forward.2} parent=43 // pred_check
                _
              $region57: #{vibe_lstm_forward.2} parent=43 // pred_check_branch
                %381 = sbr.rel (0) target = $region59
              $region58: #{vibe_lstm_forward.2} parent=43 // pred_region
                loop: start=0, step=1, limit=1
                $region60: #{vibe_lstm_forward.2} parent=58 // loop_pre_header
                  _
                $region61: #{vibe_lstm_forward.2} parent=58 // loop_header
                  %s383 = sphi 0, %s387
                  %p384 = scmp.ge.s32.totalorder %s383, 1
                  %s388 = sphi %s236, %s236
                  %s389 = sphi %s230, %s230
                $region62: #{vibe_lstm_forward.2} parent=58 // loop_header_branch
                  %386 = sbr.rel (%p384) target = $region66
                $region63: #{vibe_lstm_forward.2} parent=58 // loop_body
                  %v390 = vld [vmem:[%s388] sm:$0xff]
                  %391 = vst [vmem:[%s389] sm:$0xff] %v390
                  %v392 = vld [vmem:[%s388 + $0x8] sm:$0xff]
                  %393 = vst [vmem:[%s389 + $0x8] sm:$0xff] %v392
                  %v394 = vld [vmem:[%s388 + $0x10] sm:$0xff]
                  %395 = vst [vmem:[%s389 + $0x10] sm:$0xff] %v394
                  %v396 = vld [vmem:[%s388 + $0x18] sm:$0xff]
                  %397 = vst [vmem:[%s389 + $0x18] sm:$0xff] %v396
                  %v398 = vld [vmem:[%s388 + $0x20] sm:$0xff]
                  %399 = vst [vmem:[%s389 + $0x20] sm:$0xff] %v398
                  %v400 = vld [vmem:[%s388 + $0x28] sm:$0xff]
                  %401 = vst [vmem:[%s389 + $0x28] sm:$0xff] %v400
                  %v402 = vld [vmem:[%s388 + $0x30] sm:$0xff]
                  %403 = vst [vmem:[%s389 + $0x30] sm:$0xff] %v402
                  %v404 = vld [vmem:[%s388 + $0x38] sm:$0xff]
                  %405 = vst [vmem:[%s389 + $0x38] sm:$0xff] %v404
                  %v406 = vld [vmem:[%s388 + $0x40] sm:$0xff]
                  %407 = vst [vmem:[%s389 + $0x40] sm:$0xff] %v406
                  %v408 = vld [vmem:[%s388 + $0x48] sm:$0xff]
                  %409 = vst [vmem:[%s389 + $0x48] sm:$0xff] %v408
                  %v410 = vld [vmem:[%s388 + $0x50] sm:$0xff]
                  %411 = vst [vmem:[%s389 + $0x50] sm:$0xff] %v410
                  %v412 = vld [vmem:[%s388 + $0x58] sm:$0xff]
                  %413 = vst [vmem:[%s389 + $0x58] sm:$0xff] %v412
                  %v414 = vld [vmem:[%s388 + $0x60] sm:$0xff]
                  %415 = vst [vmem:[%s389 + $0x60] sm:$0xff] %v414
                  %v416 = vld [vmem:[%s388 + $0x68] sm:$0xff]
                  %417 = vst [vmem:[%s389 + $0x68] sm:$0xff] %v416
                  %v418 = vld [vmem:[%s388 + $0x70] sm:$0xff]
                  %419 = vst [vmem:[%s389 + $0x70] sm:$0xff] %v418
                  %v420 = vld [vmem:[%s388 + $0x78] sm:$0xff]
                  %421 = vst [vmem:[%s389 + $0x78] sm:$0xff] %v420
                  %v422 = vld [vmem:[%s388 + $0x80] sm:$0xff]
                  %423 = vst [vmem:[%s389 + $0x80] sm:$0xff] %v422
                  %v424 = vld [vmem:[%s388 + $0x88] sm:$0xff]
                  %425 = vst [vmem:[%s389 + $0x88] sm:$0xff] %v424
                  %v426 = vld [vmem:[%s388 + $0x90] sm:$0xff]
                  %427 = vst [vmem:[%s389 + $0x90] sm:$0xff] %v426
                  %v428 = vld [vmem:[%s388 + $0x98] sm:$0xff]
                  %429 = vst [vmem:[%s389 + $0x98] sm:$0xff] %v428
                  %v430 = vld [vmem:[%s388 + $0xa0] sm:$0xff]
                  %431 = vst [vmem:[%s389 + $0xa0] sm:$0xff] %v430
                  %v432 = vld [vmem:[%s388 + $0xa8] sm:$0xff]
                  %433 = vst [vmem:[%s389 + $0xa8] sm:$0xff] %v432
                  %v434 = vld [vmem:[%s388 + $0xb0] sm:$0xff]
                  %435 = vst [vmem:[%s389 + $0xb0] sm:$0xff] %v434
                  %v436 = vld [vmem:[%s388 + $0xb8] sm:$0xff]
                  %437 = vst [vmem:[%s389 + $0xb8] sm:$0xff] %v436
                  %v438 = vld [vmem:[%s388 + $0xc0] sm:$0xff]
                  %439 = vst [vmem:[%s389 + $0xc0] sm:$0xff] %v438
                  %v440 = vld [vmem:[%s388 + $0xc8] sm:$0xff]
                  %441 = vst [vmem:[%s389 + $0xc8] sm:$0xff] %v440
                  %v442 = vld [vmem:[%s388 + $0xd0] sm:$0xff]
                  %443 = vst [vmem:[%s389 + $0xd0] sm:$0xff] %v442
                  %v444 = vld [vmem:[%s388 + $0xd8] sm:$0xff]
                  %445 = vst [vmem:[%s389 + $0xd8] sm:$0xff] %v444
                  %v446 = vld [vmem:[%s388 + $0xe0] sm:$0xff]
                  %447 = vst [vmem:[%s389 + $0xe0] sm:$0xff] %v446
                  %v448 = vld [vmem:[%s388 + $0xe8] sm:$0xff]
                  %449 = vst [vmem:[%s389 + $0xe8] sm:$0xff] %v448
                  %v450 = vld [vmem:[%s388 + $0xf0] sm:$0xff]
                  %451 = vst [vmem:[%s389 + $0xf0] sm:$0xff] %v450
                  %v452 = vld [vmem:[%s388 + $0xf8] sm:$0xff]
                  %453 = vst [vmem:[%s389 + $0xf8] sm:$0xff] %v452
                  %v454 = vld [vmem:[%s388 + $0x800] sm:$0xff]
                  %455 = vst [vmem:[%s389 + $0x100] sm:$0xff] %v454
                  %v456 = vld [vmem:[%s388 + $0x808] sm:$0xff]
                  %457 = vst [vmem:[%s389 + $0x108] sm:$0xff] %v456
                  %v458 = vld [vmem:[%s388 + $0x810] sm:$0xff]
                  %459 = vst [vmem:[%s389 + $0x110] sm:$0xff] %v458
                  %v460 = vld [vmem:[%s388 + $0x818] sm:$0xff]
                  %461 = vst [vmem:[%s389 + $0x118] sm:$0xff] %v460
                  %v462 = vld [vmem:[%s388 + $0x820] sm:$0xff]
                  %463 = vst [vmem:[%s389 + $0x120] sm:$0xff] %v462
                  %v464 = vld [vmem:[%s388 + $0x828] sm:$0xff]
                  %465 = vst [vmem:[%s389 + $0x128] sm:$0xff] %v464
                  %v466 = vld [vmem:[%s388 + $0x830] sm:$0xff]
                  %467 = vst [vmem:[%s389 + $0x130] sm:$0xff] %v466
                  %v468 = vld [vmem:[%s388 + $0x838] sm:$0xff]
                  %469 = vst [vmem:[%s389 + $0x138] sm:$0xff] %v468
                  %v470 = vld [vmem:[%s388 + $0x840] sm:$0xff]
                  %471 = vst [vmem:[%s389 + $0x140] sm:$0xff] %v470
                  %v472 = vld [vmem:[%s388 + $0x848] sm:$0xff]
                  %473 = vst [vmem:[%s389 + $0x148] sm:$0xff] %v472
                  %v474 = vld [vmem:[%s388 + $0x850] sm:$0xff]
                  %475 = vst [vmem:[%s389 + $0x150] sm:$0xff] %v474
                  %v476 = vld [vmem:[%s388 + $0x858] sm:$0xff]
                  %477 = vst [vmem:[%s389 + $0x158] sm:$0xff] %v476
                  %v478 = vld [vmem:[%s388 + $0x860] sm:$0xff]
                  %479 = vst [vmem:[%s389 + $0x160] sm:$0xff] %v478
                  %v480 = vld [vmem:[%s388 + $0x868] sm:$0xff]
                  %481 = vst [vmem:[%s389 + $0x168] sm:$0xff] %v480
                  %v482 = vld [vmem:[%s388 + $0x870] sm:$0xff]
                  %483 = vst [vmem:[%s389 + $0x170] sm:$0xff] %v482
                  %v484 = vld [vmem:[%s388 + $0x878] sm:$0xff]
                  %485 = vst [vmem:[%s389 + $0x178] sm:$0xff] %v484
                  %v486 = vld [vmem:[%s388 + $0x880] sm:$0xff]
                  %487 = vst [vmem:[%s389 + $0x180] sm:$0xff] %v486
                  %v488 = vld [vmem:[%s388 + $0x888] sm:$0xff]
                  %489 = vst [vmem:[%s389 + $0x188] sm:$0xff] %v488
                  %v490 = vld [vmem:[%s388 + $0x890] sm:$0xff]
                  %491 = vst [vmem:[%s389 + $0x190] sm:$0xff] %v490
                  %v492 = vld [vmem:[%s388 + $0x898] sm:$0xff]
                  %493 = vst [vmem:[%s389 + $0x198] sm:$0xff] %v492
                  %v494 = vld [vmem:[%s388 + $0x8a0] sm:$0xff]
                  %495 = vst [vmem:[%s389 + $0x1a0] sm:$0xff] %v494
                  %v496 = vld [vmem:[%s388 + $0x8a8] sm:$0xff]
                  %497 = vst [vmem:[%s389 + $0x1a8] sm:$0xff] %v496
                  %v498 = vld [vmem:[%s388 + $0x8b0] sm:$0xff]
                  %499 = vst [vmem:[%s389 + $0x1b0] sm:$0xff] %v498
                  %v500 = vld [vmem:[%s388 + $0x8b8] sm:$0xff]
                  %501 = vst [vmem:[%s389 + $0x1b8] sm:$0xff] %v500
                  %v502 = vld [vmem:[%s388 + $0x8c0] sm:$0xff]
                  %503 = vst [vmem:[%s389 + $0x1c0] sm:$0xff] %v502
                  %v504 = vld [vmem:[%s388 + $0x8c8] sm:$0xff]
                  %505 = vst [vmem:[%s389 + $0x1c8] sm:$0xff] %v504
                  %v506 = vld [vmem:[%s388 + $0x8d0] sm:$0xff]
                  %507 = vst [vmem:[%s389 + $0x1d0] sm:$0xff] %v506
                  %v508 = vld [vmem:[%s388 + $0x8d8] sm:$0xff]
                  %509 = vst [vmem:[%s389 + $0x1d8] sm:$0xff] %v508
                  %v510 = vld [vmem:[%s388 + $0x8e0] sm:$0xff]
                  %511 = vst [vmem:[%s389 + $0x1e0] sm:$0xff] %v510
                  %v512 = vld [vmem:[%s388 + $0x8e8] sm:$0xff]
                  %513 = vst [vmem:[%s389 + $0x1e8] sm:$0xff] %v512
                  %v514 = vld [vmem:[%s388 + $0x8f0] sm:$0xff]
                  %515 = vst [vmem:[%s389 + $0x1f0] sm:$0xff] %v514
                  %v516 = vld [vmem:[%s388 + $0x8f8] sm:$0xff]
                  %517 = vst [vmem:[%s389 + $0x1f8] sm:$0xff] %v516
                $region64: #{vibe_lstm_forward.2} parent=58 // loop_footer
                  %s387 = sadd.s32 1, %s383
                $region65: #{vibe_lstm_forward.2} parent=58 // loop_footer_branch
                  %382 = sbr.rel target = $region61
                $region66: #{vibe_lstm_forward.2} parent=58 // loop_exit
                  _
              $region59: #{vibe_lstm_forward.2} parent=43 // pred_fallthru
                _
              // Predicated region
              $region67: #{vibe_lstm_forward.2} parent=43 // pred_check
                _
              $region68: #{vibe_lstm_forward.2} parent=43 // pred_check_branch
                %519 = sbr.rel target = $region70
              $region69: #{vibe_lstm_forward.2} parent=43 // pred_region
                _
              $region70: #{vibe_lstm_forward.2} parent=43 // pred_fallthru
                _
            $region44: #{vibe_lstm_forward.2} parent=39 // pred_fallthru
              _
            // Predicated region
            $region45: #{vibe_lstm_forward.2} parent=39 // pred_check
              _
            $region46: #{vibe_lstm_forward.2} parent=39 // pred_check_branch
              %242 = sbr.rel target = $region48
            $region47: #{vibe_lstm_forward.2} parent=39 // pred_region
              loop: start=0, step=1, limit=1
              $region49: #{vibe_lstm_forward.2} parent=47 // loop_pre_header
                _
              $region50: #{vibe_lstm_forward.2} parent=47 // loop_header
                %s245 = sphi 0, %s249
                %p246 = scmp.ge.s32.totalorder %s245, 1
                %s250 = sphi %s236, %s236
                %s251 = sphi %s230, %s230
              $region51: #{vibe_lstm_forward.2} parent=47 // loop_header_branch
                %248 = sbr.rel (%p246) target = $region55
              $region52: #{vibe_lstm_forward.2} parent=47 // loop_body
                %v252 = vld [vmem:[%s250] sm:$0xff]
                %253 = vst [vmem:[%s251] sm:$0xff] %v252
                %v254 = vld [vmem:[%s250 + $0x8] sm:$0xff]
                %255 = vst [vmem:[%s251 + $0x8] sm:$0xff] %v254
                %v256 = vld [vmem:[%s250 + $0x10] sm:$0xff]
                %257 = vst [vmem:[%s251 + $0x10] sm:$0xff] %v256
                %v258 = vld [vmem:[%s250 + $0x18] sm:$0xff]
                %259 = vst [vmem:[%s251 + $0x18] sm:$0xff] %v258
                %v260 = vld [vmem:[%s250 + $0x20] sm:$0xff]
                %261 = vst [vmem:[%s251 + $0x20] sm:$0xff] %v260
                %v262 = vld [vmem:[%s250 + $0x28] sm:$0xff]
                %263 = vst [vmem:[%s251 + $0x28] sm:$0xff] %v262
                %v264 = vld [vmem:[%s250 + $0x30] sm:$0xff]
                %265 = vst [vmem:[%s251 + $0x30] sm:$0xff] %v264
                %v266 = vld [vmem:[%s250 + $0x38] sm:$0xff]
                %267 = vst [vmem:[%s251 + $0x38] sm:$0xff] %v266
                %v268 = vld [vmem:[%s250 + $0x40] sm:$0xff]
                %269 = vst [vmem:[%s251 + $0x40] sm:$0xff] %v268
                %v270 = vld [vmem:[%s250 + $0x48] sm:$0xff]
                %271 = vst [vmem:[%s251 + $0x48] sm:$0xff] %v270
                %v272 = vld [vmem:[%s250 + $0x50] sm:$0xff]
                %273 = vst [vmem:[%s251 + $0x50] sm:$0xff] %v272
                %v274 = vld [vmem:[%s250 + $0x58] sm:$0xff]
                %275 = vst [vmem:[%s251 + $0x58] sm:$0xff] %v274
                %v276 = vld [vmem:[%s250 + $0x60] sm:$0xff]
                %277 = vst [vmem:[%s251 + $0x60] sm:$0xff] %v276
                %v278 = vld [vmem:[%s250 + $0x68] sm:$0xff]
                %279 = vst [vmem:[%s251 + $0x68] sm:$0xff] %v278
                %v280 = vld [vmem:[%s250 + $0x70] sm:$0xff]
                %281 = vst [vmem:[%s251 + $0x70] sm:$0xff] %v280
                %v282 = vld [vmem:[%s250 + $0x78] sm:$0xff]
                %283 = vst [vmem:[%s251 + $0x78] sm:$0xff] %v282
                %v284 = vld [vmem:[%s250 + $0x80] sm:$0xff]
                %285 = vst [vmem:[%s251 + $0x80] sm:$0xff] %v284
                %v286 = vld [vmem:[%s250 + $0x88] sm:$0xff]
                %287 = vst [vmem:[%s251 + $0x88] sm:$0xff] %v286
                %v288 = vld [vmem:[%s250 + $0x90] sm:$0xff]
                %289 = vst [vmem:[%s251 + $0x90] sm:$0xff] %v288
                %v290 = vld [vmem:[%s250 + $0x98] sm:$0xff]
                %291 = vst [vmem:[%s251 + $0x98] sm:$0xff] %v290
                %v292 = vld [vmem:[%s250 + $0xa0] sm:$0xff]
                %293 = vst [vmem:[%s251 + $0xa0] sm:$0xff] %v292
                %v294 = vld [vmem:[%s250 + $0xa8] sm:$0xff]
                %295 = vst [vmem:[%s251 + $0xa8] sm:$0xff] %v294
                %v296 = vld [vmem:[%s250 + $0xb0] sm:$0xff]
                %297 = vst [vmem:[%s251 + $0xb0] sm:$0xff] %v296
                %v298 = vld [vmem:[%s250 + $0xb8] sm:$0xff]
                %299 = vst [vmem:[%s251 + $0xb8] sm:$0xff] %v298
                %v300 = vld [vmem:[%s250 + $0xc0] sm:$0xff]
                %301 = vst [vmem:[%s251 + $0xc0] sm:$0xff] %v300
                %v302 = vld [vmem:[%s250 + $0xc8] sm:$0xff]
                %303 = vst [vmem:[%s251 + $0xc8] sm:$0xff] %v302
                %v304 = vld [vmem:[%s250 + $0xd0] sm:$0xff]
                %305 = vst [vmem:[%s251 + $0xd0] sm:$0xff] %v304
                %v306 = vld [vmem:[%s250 + $0xd8] sm:$0xff]
                %307 = vst [vmem:[%s251 + $0xd8] sm:$0xff] %v306
                %v308 = vld [vmem:[%s250 + $0xe0] sm:$0xff]
                %309 = vst [vmem:[%s251 + $0xe0] sm:$0xff] %v308
                %v310 = vld [vmem:[%s250 + $0xe8] sm:$0xff]
                %311 = vst [vmem:[%s251 + $0xe8] sm:$0xff] %v310
                %v312 = vld [vmem:[%s250 + $0xf0] sm:$0xff]
                %313 = vst [vmem:[%s251 + $0xf0] sm:$0xff] %v312
                %v314 = vld [vmem:[%s250 + $0xf8] sm:$0xff]
                %315 = vst [vmem:[%s251 + $0xf8] sm:$0xff] %v314
                %v316 = vld [vmem:[%s250 + $0x800] sm:$0xff]
                %317 = vst [vmem:[%s251 + $0x100] sm:$0xff] %v316
                %v318 = vld [vmem:[%s250 + $0x808] sm:$0xff]
                %319 = vst [vmem:[%s251 + $0x108] sm:$0xff] %v318
                %v320 = vld [vmem:[%s250 + $0x810] sm:$0xff]
                %321 = vst [vmem:[%s251 + $0x110] sm:$0xff] %v320
                %v322 = vld [vmem:[%s250 + $0x818] sm:$0xff]
                %323 = vst [vmem:[%s251 + $0x118] sm:$0xff] %v322
                %v324 = vld [vmem:[%s250 + $0x820] sm:$0xff]
                %325 = vst [vmem:[%s251 + $0x120] sm:$0xff] %v324
                %v326 = vld [vmem:[%s250 + $0x828] sm:$0xff]
                %327 = vst [vmem:[%s251 + $0x128] sm:$0xff] %v326
                %v328 = vld [vmem:[%s250 + $0x830] sm:$0xff]
                %329 = vst [vmem:[%s251 + $0x130] sm:$0xff] %v328
                %v330 = vld [vmem:[%s250 + $0x838] sm:$0xff]
                %331 = vst [vmem:[%s251 + $0x138] sm:$0xff] %v330
                %v332 = vld [vmem:[%s250 + $0x840] sm:$0xff]
                %333 = vst [vmem:[%s251 + $0x140] sm:$0xff] %v332
                %v334 = vld [vmem:[%s250 + $0x848] sm:$0xff]
                %335 = vst [vmem:[%s251 + $0x148] sm:$0xff] %v334
                %v336 = vld [vmem:[%s250 + $0x850] sm:$0xff]
                %337 = vst [vmem:[%s251 + $0x150] sm:$0xff] %v336
                %v338 = vld [vmem:[%s250 + $0x858] sm:$0xff]
                %339 = vst [vmem:[%s251 + $0x158] sm:$0xff] %v338
                %v340 = vld [vmem:[%s250 + $0x860] sm:$0xff]
                %341 = vst [vmem:[%s251 + $0x160] sm:$0xff] %v340
                %v342 = vld [vmem:[%s250 + $0x868] sm:$0xff]
                %343 = vst [vmem:[%s251 + $0x168] sm:$0xff] %v342
                %v344 = vld [vmem:[%s250 + $0x870] sm:$0xff]
                %345 = vst [vmem:[%s251 + $0x170] sm:$0xff] %v344
                %v346 = vld [vmem:[%s250 + $0x878] sm:$0xff]
                %347 = vst [vmem:[%s251 + $0x178] sm:$0xff] %v346
                %v348 = vld [vmem:[%s250 + $0x880] sm:$0xff]
                %349 = vst [vmem:[%s251 + $0x180] sm:$0xff] %v348
                %v350 = vld [vmem:[%s250 + $0x888] sm:$0xff]
                %351 = vst [vmem:[%s251 + $0x188] sm:$0xff] %v350
                %v352 = vld [vmem:[%s250 + $0x890] sm:$0xff]
                %353 = vst [vmem:[%s251 + $0x190] sm:$0xff] %v352
                %v354 = vld [vmem:[%s250 + $0x898] sm:$0xff]
                %355 = vst [vmem:[%s251 + $0x198] sm:$0xff] %v354
                %v356 = vld [vmem:[%s250 + $0x8a0] sm:$0xff]
                %357 = vst [vmem:[%s251 + $0x1a0] sm:$0xff] %v356
                %v358 = vld [vmem:[%s250 + $0x8a8] sm:$0xff]
                %359 = vst [vmem:[%s251 + $0x1a8] sm:$0xff] %v358
                %v360 = vld [vmem:[%s250 + $0x8b0] sm:$0xff]
                %361 = vst [vmem:[%s251 + $0x1b0] sm:$0xff] %v360
                %v362 = vld [vmem:[%s250 + $0x8b8] sm:$0xff]
                %363 = vst [vmem:[%s251 + $0x1b8] sm:$0xff] %v362
                %v364 = vld [vmem:[%s250 + $0x8c0] sm:$0xff]
                %365 = vst [vmem:[%s251 + $0x1c0] sm:$0xff] %v364
                %v366 = vld [vmem:[%s250 + $0x8c8] sm:$0xff]
                %367 = vst [vmem:[%s251 + $0x1c8] sm:$0xff] %v366
                %v368 = vld [vmem:[%s250 + $0x8d0] sm:$0xff]
                %369 = vst [vmem:[%s251 + $0x1d0] sm:$0xff] %v368
                %v370 = vld [vmem:[%s250 + $0x8d8] sm:$0xff]
                %371 = vst [vmem:[%s251 + $0x1d8] sm:$0xff] %v370
                %v372 = vld [vmem:[%s250 + $0x8e0] sm:$0xff]
                %373 = vst [vmem:[%s251 + $0x1e0] sm:$0xff] %v372
                %v374 = vld [vmem:[%s250 + $0x8e8] sm:$0xff]
                %375 = vst [vmem:[%s251 + $0x1e8] sm:$0xff] %v374
                %v376 = vld [vmem:[%s250 + $0x8f0] sm:$0xff]
                %377 = vst [vmem:[%s251 + $0x1f0] sm:$0xff] %v376
                %v378 = vld [vmem:[%s250 + $0x8f8] sm:$0xff]
                %379 = vst [vmem:[%s251 + $0x1f8] sm:$0xff] %v378
              $region53: #{vibe_lstm_forward.2} parent=47 // loop_footer
                %s249 = sadd.s32 1, %s245
              $region54: #{vibe_lstm_forward.2} parent=47 // loop_footer_branch
                %244 = sbr.rel target = $region50
              $region55: #{vibe_lstm_forward.2} parent=47 // loop_exit
                _
            $region48: #{vibe_lstm_forward.2} parent=39 // pred_fallthru
              _
          $region40: #{vibe_lstm_forward.2} parent=35 // pred_fallthru
            _
          %520 = vnop
        $region36: #{vibe_lstm_forward.2} parent=31 // pred_fallthru
          _
      $region32: #{vibe_lstm_forward.2} parent=5 // pred_fallthru
        _
      %p521 = scmp.le.s32.totalorder 1, %s13
      %p522 = scmp.lt.s32.totalorder %s13, 9
      %p523 = pnand %p521, %p522
      %p524 = pneg %p523
      // Predicated region
      $region71: #{vibe_lstm_forward.2} parent=5 // pred_check
        _
      $region72: #{vibe_lstm_forward.2} parent=5 // pred_check_branch
        %526 = sbr.rel (%p523) target = $region74
      $region73: #{vibe_lstm_forward.2} parent=5 // pred_region
        %s527 = ssub.s32 %s13, 1
        %s528 = sand.u32 %s40, 1
        %s529 = sand.u32 %s40, 1
        %s530 = smul.addr %s529, 512
        %s531 = scalar_lea.vmem [#allocation2], %s530
        // Predicated region
        $region75: #{vibe_lstm_forward.2} parent=73 // pred_check
          %p532 = pneg %p53
        $region76: #{vibe_lstm_forward.2} parent=73 // pred_check_branch
          %534 = sbr.rel (%p532) target = $region78
        $region77: #{vibe_lstm_forward.2} parent=73 // pred_region
          _
        $region78: #{vibe_lstm_forward.2} parent=73 // pred_fallthru
          _
        %s535 = sand.u32 %s40, 1
        %s536 = sand.u32 %s40, 1
        %s537 = smul.addr %s536, 512
        %s538 = scalar_lea.vmem [#allocation2], %s537
        %p539 = pneg %p53
        %p540 = pneg %p50
        %p541 = pneg %p74
        %p542 = pneg %p71
        %p543 = pneg %p95
        %p544 = pneg %p92
        %p545 = pneg %p116
        %p546 = pneg %p113
        %p547 = pneg %p137
        %p548 = pneg %p134
        %p549 = pneg %p165
        %p550 = pneg %p162
        %p551 = scmp.lt.s32.totalorder %s22, 7
        %s552 = scalar_select %p551, %s22, 7
        %p553 = scmp.lt.s32.totalorder %s23, 0
        %s554 = scalar_select %p553, %s23, 0
        %s555 = sadd.s32 %s554, %s552
        %s556 = smul.addr %s555, 2
        %s557 = scalar_lea.vmem %s5, %s556
        %p558 = pneg %p193
        %p559 = pneg %p190
        %p560 = scmp.lt.s32.totalorder %s22, 7
        %s561 = scalar_select %p560, %s22, 7
        %p562 = scmp.lt.s32.totalorder %s23, 0
        %s563 = scalar_select %p562, %s23, 0
        %s564 = smul.addr %s563, 4
        %s565 = smul.addr %s561, 4
        %s566 = sadd.s32 %s564, %s565
        %s567 = scalar_lea.vmem %s6, %s566
        %s568 = smul.u32 2, %s23
        %p569 = scmp.lt.s32.totalorder %s22, 7
        %s570 = scalar_select %p569, %s22, 7
        %p571 = scmp.lt.s32.totalorder %s23, 0
        %s572 = scalar_select %p571, %s23, 0
        %s573 = sadd.s32 %s572, %s570
        %s574 = smul.addr %s573, 2
        %s575 = scalar_lea.vmem %s5, %s574
        %p576 = scmp.lt.s32.totalorder %s22, 7
        %s577 = scalar_select %p576, %s22, 7
        %p578 = scmp.lt.s32.totalorder %s23, 0
        %s579 = scalar_select %p578, %s23, 0
        %s580 = smul.addr %s579, 4
        %s581 = smul.addr %s577, 4
        %s582 = sadd.s32 %s580, %s581
        %s583 = scalar_lea.vmem %s6, %s582
        %v585 = vld [vmem:[%s531] sm:$0xff]
        %v586 = vld [vmem:[%s531 + $0x8] sm:$0xff]
        %v587 = vld [vmem:[%s531 + $0x10] sm:$0xff]
        %v588 = vld [vmem:[%s531 + $0x18] sm:$0xff]
        %v589 = vld [vmem:[%s531 + $0x20] sm:$0xff]
        %v590 = vld [vmem:[%s531 + $0x28] sm:$0xff]
        %v591 = vld [vmem:[%s531 + $0x30] sm:$0xff]
        %v592 = vld [vmem:[%s531 + $0x38] sm:$0xff]
        %v593 = vld [vmem:[%s531 + $0x40] sm:$0xff]
        %v594 = vld [vmem:[%s531 + $0x48] sm:$0xff]
        %v595 = vld [vmem:[%s531 + $0x50] sm:$0xff]
        %v596 = vld [vmem:[%s531 + $0x58] sm:$0xff]
        %v597 = vld [vmem:[%s531 + $0x60] sm:$0xff]
        %v598 = vld [vmem:[%s531 + $0x68] sm:$0xff]
        %v599 = vld [vmem:[%s531 + $0x70] sm:$0xff]
        %v600 = vld [vmem:[%s531 + $0x78] sm:$0xff]
        %v601 = vld [vmem:[%s531 + $0x80] sm:$0xff]
        %v602 = vld [vmem:[%s531 + $0x88] sm:$0xff]
        %v603 = vld [vmem:[%s531 + $0x90] sm:$0xff]
        %v604 = vld [vmem:[%s531 + $0x98] sm:$0xff]
        %v605 = vld [vmem:[%s531 + $0xa0] sm:$0xff]
        %v606 = vld [vmem:[%s531 + $0xa8] sm:$0xff]
        %v607 = vld [vmem:[%s531 + $0xb0] sm:$0xff]
        %v608 = vld [vmem:[%s531 + $0xb8] sm:$0xff]
        %v609 = vld [vmem:[%s531 + $0xc0] sm:$0xff]
        %v610 = vld [vmem:[%s531 + $0xc8] sm:$0xff]
        %v611 = vld [vmem:[%s531 + $0xd0] sm:$0xff]
        %v612 = vld [vmem:[%s531 + $0xd8] sm:$0xff]
        %v613 = vld [vmem:[%s531 + $0xe0] sm:$0xff]
        %v614 = vld [vmem:[%s531 + $0xe8] sm:$0xff]
        %v615 = vld [vmem:[%s531 + $0xf0] sm:$0xff]
        %v616 = vld [vmem:[%s531 + $0xf8] sm:$0xff]
        %v617 = vld [vmem:[%s531 + $0x100] sm:$0xff]
        %v618 = vld [vmem:[%s531 + $0x108] sm:$0xff]
        %v619 = vld [vmem:[%s531 + $0x110] sm:$0xff]
        %v620 = vld [vmem:[%s531 + $0x118] sm:$0xff]
        %v621 = vld [vmem:[%s531 + $0x120] sm:$0xff]
        %v622 = vld [vmem:[%s531 + $0x128] sm:$0xff]
        %v623 = vld [vmem:[%s531 + $0x130] sm:$0xff]
        %v624 = vld [vmem:[%s531 + $0x138] sm:$0xff]
        %v625 = vld [vmem:[%s531 + $0x140] sm:$0xff]
        %v626 = vld [vmem:[%s531 + $0x148] sm:$0xff]
        %v627 = vld [vmem:[%s531 + $0x150] sm:$0xff]
        %v628 = vld [vmem:[%s531 + $0x158] sm:$0xff]
        %v629 = vld [vmem:[%s531 + $0x160] sm:$0xff]
        %v630 = vld [vmem:[%s531 + $0x168] sm:$0xff]
        %v631 = vld [vmem:[%s531 + $0x170] sm:$0xff]
        %v632 = vld [vmem:[%s531 + $0x178] sm:$0xff]
        %v633 = vld [vmem:[%s531 + $0x180] sm:$0xff]
        %v634 = vld [vmem:[%s531 + $0x188] sm:$0xff]
        %v635 = vld [vmem:[%s531 + $0x190] sm:$0xff]
        %v636 = vld [vmem:[%s531 + $0x198] sm:$0xff]
        %v637 = vld [vmem:[%s531 + $0x1a0] sm:$0xff]
        %v638 = vld [vmem:[%s531 + $0x1a8] sm:$0xff]
        %v639 = vld [vmem:[%s531 + $0x1b0] sm:$0xff]
        %v640 = vld [vmem:[%s531 + $0x1b8] sm:$0xff]
        %v641 = vld [vmem:[%s531 + $0x1c0] sm:$0xff]
        %v642 = vld [vmem:[%s531 + $0x1c8] sm:$0xff]
        %v643 = vld [vmem:[%s531 + $0x1d0] sm:$0xff]
        %v644 = vld [vmem:[%s531 + $0x1d8] sm:$0xff]
        %v645 = vld [vmem:[%s531 + $0x1e0] sm:$0xff]
        %v646 = vld [vmem:[%s531 + $0x1e8] sm:$0xff]
        %v647 = vld [vmem:[%s531 + $0x1f0] sm:$0xff]
        %v648 = vld [vmem:[%s531 + $0x1f8] sm:$0xff]
        %vm649 = vcmask 31744
        %v650 = vsel %vm649, %v585, 0.0
        %v651 = vsel %vm649, %v586, 0.0
        %v652 = vadd.f32 %v650, %v651
        %v653 = vsel %vm649, %v587, 0.0
        %v654 = vadd.f32 %v652, %v653
        %v655 = vsel %vm649, %v588, 0.0
        %v656 = vadd.f32 %v654, %v655
        %v657 = vsel %vm649, %v589, 0.0
        %v658 = vadd.f32 %v656, %v657
        %v659 = vsel %vm649, %v590, 0.0
        %v660 = vadd.f32 %v658, %v659
        %v661 = vsel %vm649, %v591, 0.0
        %v662 = vadd.f32 %v660, %v661
        %v663 = vsel %vm649, %v592, 0.0
        %v664 = vadd.f32 %v662, %v663
        %v665 = vsel %vm649, %v593, 0.0
        %v666 = vadd.f32 %v664, %v665
        %v667 = vsel %vm649, %v594, 0.0
        %v668 = vadd.f32 %v666, %v667
        %v669 = vsel %vm649, %v595, 0.0
        %v670 = vadd.f32 %v668, %v669
        %v671 = vsel %vm649, %v596, 0.0
        %v672 = vadd.f32 %v670, %v671
        %v673 = vsel %vm649, %v597, 0.0
        %v674 = vadd.f32 %v672, %v673
        %v675 = vsel %vm649, %v598, 0.0
        %v676 = vadd.f32 %v674, %v675
        %v677 = vsel %vm649, %v599, 0.0
        %v678 = vadd.f32 %v676, %v677
        %v679 = vsel %vm649, %v600, 0.0
        %v680 = vadd.f32 %v678, %v679
        %v681 = vsel %vm649, %v601, 0.0
        %v682 = vadd.f32 %v680, %v681
        %v683 = vsel %vm649, %v602, 0.0
        %v684 = vadd.f32 %v682, %v683
        %v685 = vsel %vm649, %v603, 0.0
        %v686 = vadd.f32 %v684, %v685
        %v687 = vsel %vm649, %v604, 0.0
        %v688 = vadd.f32 %v686, %v687
        %v689 = vsel %vm649, %v605, 0.0
        %v690 = vadd.f32 %v688, %v689
        %v691 = vsel %vm649, %v606, 0.0
        %v692 = vadd.f32 %v690, %v691
        %v693 = vsel %vm649, %v607, 0.0
        %v694 = vadd.f32 %v692, %v693
        %v695 = vsel %vm649, %v608, 0.0
        %v696 = vadd.f32 %v694, %v695
        %v697 = vsel %vm649, %v609, 0.0
        %v698 = vadd.f32 %v696, %v697
        %v699 = vsel %vm649, %v610, 0.0
        %v700 = vadd.f32 %v698, %v699
        %v701 = vsel %vm649, %v611, 0.0
        %v702 = vadd.f32 %v700, %v701
        %v703 = vsel %vm649, %v612, 0.0
        %v704 = vadd.f32 %v702, %v703
        %v705 = vsel %vm649, %v613, 0.0
        %v706 = vadd.f32 %v704, %v705
        %v707 = vsel %vm649, %v614, 0.0
        %v708 = vadd.f32 %v706, %v707
        %v709 = vsel %vm649, %v615, 0.0
        %v710 = vadd.f32 %v708, %v709
        %v711 = vsel %vm649, %v616, 0.0
        %v712 = vadd.f32 %v710, %v711
        %v713 = vrot.slane %v712, 4
        %v714 = vadd.f32 %v712, %v713
        %v715 = vrot.slane %v714, 2
        %v716 = vadd.f32 %v714, %v715
        %v717 = vrot.slane %v716, 1
        %v718 = vadd.f32 %v716, %v717
        %v719 = vsel %vm649, %v617, 0.0
        %v720 = vsel %vm649, %v618, 0.0
        %v721 = vadd.f32 %v719, %v720
        %v722 = vsel %vm649, %v619, 0.0
        %v723 = vadd.f32 %v721, %v722
        %v724 = vsel %vm649, %v620, 0.0
        %v725 = vadd.f32 %v723, %v724
        %v726 = vsel %vm649, %v621, 0.0
        %v727 = vadd.f32 %v725, %v726
        %v728 = vsel %vm649, %v622, 0.0
        %v729 = vadd.f32 %v727, %v728
        %v730 = vsel %vm649, %v623, 0.0
        %v731 = vadd.f32 %v729, %v730
        %v732 = vsel %vm649, %v624, 0.0
        %v733 = vadd.f32 %v731, %v732
        %v734 = vsel %vm649, %v625, 0.0
        %v735 = vadd.f32 %v733, %v734
        %v736 = vsel %vm649, %v626, 0.0
        %v737 = vadd.f32 %v735, %v736
        %v738 = vsel %vm649, %v627, 0.0
        %v739 = vadd.f32 %v737, %v738
        %v740 = vsel %vm649, %v628, 0.0
        %v741 = vadd.f32 %v739, %v740
        %v742 = vsel %vm649, %v629, 0.0
        %v743 = vadd.f32 %v741, %v742
        %v744 = vsel %vm649, %v630, 0.0
        %v745 = vadd.f32 %v743, %v744
        %v746 = vsel %vm649, %v631, 0.0
        %v747 = vadd.f32 %v745, %v746
        %v748 = vsel %vm649, %v632, 0.0
        %v749 = vadd.f32 %v747, %v748
        %v750 = vsel %vm649, %v633, 0.0
        %v751 = vadd.f32 %v749, %v750
        %v752 = vsel %vm649, %v634, 0.0
        %v753 = vadd.f32 %v751, %v752
        %v754 = vsel %vm649, %v635, 0.0
        %v755 = vadd.f32 %v753, %v754
        %v756 = vsel %vm649, %v636, 0.0
        %v757 = vadd.f32 %v755, %v756
        %v758 = vsel %vm649, %v637, 0.0
        %v759 = vadd.f32 %v757, %v758
        %v760 = vsel %vm649, %v638, 0.0
        %v761 = vadd.f32 %v759, %v760
        %v762 = vsel %vm649, %v639, 0.0
        %v763 = vadd.f32 %v761, %v762
        %v764 = vsel %vm649, %v640, 0.0
        %v765 = vadd.f32 %v763, %v764
        %v766 = vsel %vm649, %v641, 0.0
        %v767 = vadd.f32 %v765, %v766
        %v768 = vsel %vm649, %v642, 0.0
        %v769 = vadd.f32 %v767, %v768
        %v770 = vsel %vm649, %v643, 0.0
        %v771 = vadd.f32 %v769, %v770
        %v772 = vsel %vm649, %v644, 0.0
        %v773 = vadd.f32 %v771, %v772
        %v774 = vsel %vm649, %v645, 0.0
        %v775 = vadd.f32 %v773, %v774
        %v776 = vsel %vm649, %v646, 0.0
        %v777 = vadd.f32 %v775, %v776
        %v778 = vsel %vm649, %v647, 0.0
        %v779 = vadd.f32 %v777, %v778
        %v780 = vsel %vm649, %v648, 0.0
        %v781 = vadd.f32 %v779, %v780
        %v782 = vrot.slane %v781, 4
        %v783 = vadd.f32 %v781, %v782
        %v784 = vrot.slane %v783, 2
        %v785 = vadd.f32 %v783, %v784
        %v786 = vrot.slane %v785, 1
        %v787 = vadd.f32 %v785, %v786
        %v788 = vpack.c.bf16 %v718, %v718
        %v789 = vpack.c.bf16 %v787, %v787
        %v790 = vld [vmem:[%s1] sm:$0x3]
        %v791 = vld [vmem:[%s2] sm:$0x1]
        %v793 = vlaneseq
        %v794 = vshrl.u32 %v793, 7
        %v795 = vsub.s32 0, %v794
        %v796 = vrot.slane %v791, %v795
        %v800 = vunpack.c.l.b16 %v788
        %v801 = vunpack.c.l.b16 %v789
        %vm802 = vcmask 1041409
        %v803 = vsel %vm802, %v801, %v800
        %v804 = vpack.c.b16 %v803, %v803
        %v806 = vsel %vm649, %v804, 0
        %vm808 = vcmask 1041408
        %v810 = vsel %vm808, %v790, 0
        %812 = vmatprep.subr.bf16.mxu0 0
        %813 = vmatpush1.bf16.msra.mxu0 %v810
        %814 = vmatprep.subr.bf16.mxu0 0
        %815 = vmatpush1.bf16.msra.mxu0 0
        %816 = vmatprep.subr.bf16.mxu0 0
        %817 = vmatpush1.bf16.msra.mxu0 0
        %818 = vmatprep.subr.bf16.mxu0 0
        %819 = vmatpush1.bf16.msra.mxu0 0
        %820 = vmatprep.subr.bf16.mxu0 0
        %821 = vmatpush1.bf16.msra.mxu0 0
        %822 = vmatprep.subr.bf16.mxu0 0
        %823 = vmatpush1.bf16.msra.mxu0 0
        %824 = vmatprep.subr.bf16.mxu0 0
        %825 = vmatpush1.bf16.msra.mxu0 0
        %826 = vmatprep.subr.bf16.mxu0 0
        %827 = vmatpush1.bf16.msra.mxu0 0
        %828 = vmatprep.subr.bf16.mxu0 0
        %829 = vmatpush1.bf16.msra.mxu0 0
        %830 = vmatprep.subr.bf16.mxu0 0
        %831 = vmatpush1.bf16.msra.mxu0 0
        %832 = vmatprep.subr.bf16.mxu0 0
        %833 = vmatpush1.bf16.msra.mxu0 0
        %834 = vmatprep.subr.bf16.mxu0 0
        %835 = vmatpush1.bf16.msra.mxu0 0
        %836 = vmatprep.subr.bf16.mxu0 0
        %837 = vmatpush1.bf16.msra.mxu0 0
        %838 = vmatprep.subr.bf16.mxu0 0
        %839 = vmatpush1.bf16.msra.mxu0 0
        %840 = vmatprep.subr.bf16.mxu0 0
        %841 = vmatpush1.bf16.msra.mxu0 0
        %842 = vmatprep.subr.bf16.mxu0 0
        %843 = vmatpush1.bf16.msra.mxu0 0
        %844 = vmatprep.mubr.bf16.mxu0 0
        %845 = vmatmul.mubr.bf16.gmra.mrb[0].mxu0 %v806
        %v846 = vpop.f32.mrb[0].mxu0
        %v847 = vadd.f32 %v796, %v846
        %v848 = vpop.f32.mrb[0].mxu0
        %v849 = vpop.f32.mrb[0].mxu0
        %v850 = vpop.f32.mrb[0].mxu0
        %851 = vdwg.mxu0
        %852 = vst [vmem:[%s575] sm:$0x3] %v847
        %v853 = vpack.c.bf16 %v847, %v847
        %v854 = vld [vmem:[%s3] sm:$0xff]
        %v855 = vld [vmem:[%s3 + $0x8] sm:$0xff]
        %v856 = vld [vmem:[%s3 + $0x10] sm:$0xff]
        %v857 = vld [vmem:[%s3 + $0x18] sm:$0xff]
        %v858 = vld [vmem:[%s3 + $0x20] sm:$0xff]
        %v859 = vld [vmem:[%s3 + $0x28] sm:$0xff]
        %v860 = vld [vmem:[%s3 + $0x30] sm:$0xff]
        %v861 = vld [vmem:[%s3 + $0x38] sm:$0xff]
        %v862 = vld [vmem:[%s3 + $0x40] sm:$0xff]
        %v863 = vld [vmem:[%s3 + $0x48] sm:$0xff]
        %v864 = vld [vmem:[%s3 + $0x50] sm:$0xff]
        %v865 = vld [vmem:[%s3 + $0x58] sm:$0xff]
        %v866 = vld [vmem:[%s3 + $0x60] sm:$0xff]
        %v867 = vld [vmem:[%s3 + $0x68] sm:$0xff]
        %v868 = vld [vmem:[%s3 + $0x70] sm:$0xff]
        %v869 = vld [vmem:[%s3 + $0x78] sm:$0xff]
        %v870 = vld [vmem:[%s3 + $0x80] sm:$0xff]
        %v871 = vld [vmem:[%s3 + $0x88] sm:$0xff]
        %v872 = vld [vmem:[%s3 + $0x90] sm:$0xff]
        %v873 = vld [vmem:[%s3 + $0x98] sm:$0xff]
        %v874 = vld [vmem:[%s3 + $0xa0] sm:$0xff]
        %v875 = vld [vmem:[%s3 + $0xa8] sm:$0xff]
        %v876 = vld [vmem:[%s3 + $0xb0] sm:$0xff]
        %v877 = vld [vmem:[%s3 + $0xb8] sm:$0xff]
        %v878 = vld [vmem:[%s3 + $0xc0] sm:$0xff]
        %v879 = vld [vmem:[%s3 + $0xc8] sm:$0xff]
        %v880 = vld [vmem:[%s3 + $0xd0] sm:$0xff]
        %v881 = vld [vmem:[%s3 + $0xd8] sm:$0xff]
        %v882 = vld [vmem:[%s3 + $0xe0] sm:$0xff]
        %v883 = vld [vmem:[%s3 + $0xe8] sm:$0xff]
        %v884 = vld [vmem:[%s3 + $0xf0] sm:$0xff]
        %v885 = vld [vmem:[%s3 + $0xf8] sm:$0xff]
        %v886 = vld [vmem:[%s4] sm:$0xf]
        %v888 = vlaneseq
        %v889 = vshrl.u32 %v888, 7
        %v890 = vsub.s32 0, %v889
        %v891 = vrot.slane %v886, %v890
        %v892 = vlaneseq
        %v893 = vshrl.u32 %v892, 7
        %v894 = vsub.s32 1, %v893
        %v895 = vrot.slane %v886, %v894
        %v896 = vlaneseq
        %v897 = vshrl.u32 %v896, 7
        %v898 = vsub.s32 2, %v897
        %v899 = vrot.slane %v886, %v898
        %v900 = vlaneseq
        %v901 = vshrl.u32 %v900, 7
        %v902 = vsub.s32 3, %v901
        %v903 = vrot.slane %v886, %v902
        %v940 = vunpack.c.l.b16 %v854
        %v941 = vunpack.c.h.b16 %v854
        %v942 = vunpack.c.l.b16 %v855
        %v943 = vunpack.c.h.b16 %v855
        %v944 = vunpack.c.l.b16 %v856
        %v945 = vunpack.c.h.b16 %v856
        %v946 = vunpack.c.l.b16 %v857
        %v947 = vunpack.c.h.b16 %v857
        %v948 = vunpack.c.l.b16 %v858
        %v949 = vunpack.c.h.b16 %v858
        %v950 = vunpack.c.l.b16 %v859
        %v951 = vunpack.c.h.b16 %v859
        %v952 = vunpack.c.l.b16 %v860
        %v953 = vunpack.c.h.b16 %v860
        %v954 = vunpack.c.l.b16 %v861
        %v955 = vunpack.c.h.b16 %v861
        %v956 = vunpack.c.l.b16 %v862
        %v957 = vunpack.c.h.b16 %v862
        %v958 = vunpack.c.l.b16 %v863
        %v959 = vunpack.c.h.b16 %v863
        %v960 = vunpack.c.l.b16 %v864
        %v961 = vunpack.c.h.b16 %v864
        %v962 = vunpack.c.l.b16 %v865
        %v963 = vunpack.c.h.b16 %v865
        %v964 = vunpack.c.l.b16 %v866
        %v965 = vunpack.c.h.b16 %v866
        %v966 = vunpack.c.l.b16 %v867
        %v967 = vunpack.c.h.b16 %v867
        %v968 = vunpack.c.l.b16 %v868
        %v969 = vunpack.c.h.b16 %v868
        %v970 = vunpack.c.l.b16 %v869
        %v971 = vunpack.c.h.b16 %v869
        %v972 = vunpack.c.l.b16 %v870
        %v973 = vunpack.c.h.b16 %v870
        %v974 = vunpack.c.l.b16 %v871
        %v975 = vunpack.c.h.b16 %v871
        %v976 = vunpack.c.l.b16 %v872
        %v977 = vunpack.c.h.b16 %v872
        %v978 = vunpack.c.l.b16 %v873
        %v979 = vunpack.c.h.b16 %v873
        %v980 = vunpack.c.l.b16 %v874
        %v981 = vunpack.c.h.b16 %v874
        %v982 = vunpack.c.l.b16 %v875
        %v983 = vunpack.c.h.b16 %v875
        %v984 = vunpack.c.l.b16 %v876
        %v985 = vunpack.c.h.b16 %v876
        %v986 = vunpack.c.l.b16 %v877
        %v987 = vunpack.c.h.b16 %v877
        %v988 = vunpack.c.l.b16 %v878
        %v989 = vunpack.c.h.b16 %v878
        %v990 = vunpack.c.l.b16 %v879
        %v991 = vunpack.c.h.b16 %v879
        %v992 = vunpack.c.l.b16 %v880
        %v993 = vunpack.c.h.b16 %v880
        %v994 = vunpack.c.l.b16 %v881
        %v995 = vunpack.c.h.b16 %v881
        %v996 = vunpack.c.l.b16 %v882
        %v997 = vunpack.c.h.b16 %v882
        %v998 = vunpack.c.l.b16 %v883
        %v999 = vunpack.c.h.b16 %v883
        %v1000 = vunpack.c.l.b16 %v884
        %v1001 = vunpack.c.h.b16 %v884
        %v1002 = vunpack.c.l.b16 %v885
        %v1003 = vunpack.c.h.b16 %v885
        %v1004 = vpack.c.b16 %v944, %v940
        %v1005 = vpack.c.b16 %v945, %v941
        %v1006 = vpack.c.b16 %v946, %v942
        %v1007 = vpack.c.b16 %v947, %v943
        %v1008 = vpack.c.b16 %v952, %v948
        %v1009 = vpack.c.b16 %v953, %v949
        %v1010 = vpack.c.b16 %v954, %v950
        %v1011 = vpack.c.b16 %v955, %v951
        %v1012 = vpack.c.b16 %v960, %v956
        %v1013 = vpack.c.b16 %v961, %v957
        %v1014 = vpack.c.b16 %v962, %v958
        %v1015 = vpack.c.b16 %v963, %v959
        %v1016 = vpack.c.b16 %v968, %v964
        %v1017 = vpack.c.b16 %v969, %v965
        %v1018 = vpack.c.b16 %v970, %v966
        %v1019 = vpack.c.b16 %v971, %v967
        %v1020 = vpack.c.b16 %v976, %v972
        %v1021 = vpack.c.b16 %v977, %v973
        %v1022 = vpack.c.b16 %v978, %v974
        %v1023 = vpack.c.b16 %v979, %v975
        %v1024 = vpack.c.b16 %v984, %v980
        %v1025 = vpack.c.b16 %v985, %v981
        %v1026 = vpack.c.b16 %v986, %v982
        %v1027 = vpack.c.b16 %v987, %v983
        %v1028 = vpack.c.b16 %v992, %v988
        %v1029 = vpack.c.b16 %v993, %v989
        %v1030 = vpack.c.b16 %v994, %v990
        %v1031 = vpack.c.b16 %v995, %v991
        %v1032 = vpack.c.b16 %v1000, %v996
        %v1033 = vpack.c.b16 %v1001, %v997
        %v1034 = vpack.c.b16 %v1002, %v998
        %v1035 = vpack.c.b16 %v1003, %v999
        %1068 = vmatprep.subr.bf16.mxu0 %v1005
        %1069 = vmatpush1.bf16.msra.mxu0 %v1004
        %1070 = vmatprep.subr.bf16.mxu0 %v1009
        %1071 = vmatpush1.bf16.msra.mxu0 %v1008
        %1072 = vmatprep.subr.bf16.mxu0 %v1013
        %1073 = vmatpush1.bf16.msra.mxu0 %v1012
        %1074 = vmatprep.subr.bf16.mxu0 %v1017
        %1075 = vmatpush1.bf16.msra.mxu0 %v1016
        %1076 = vmatprep.subr.bf16.mxu0 %v1021
        %1077 = vmatpush1.bf16.msra.mxu0 %v1020
        %1078 = vmatprep.subr.bf16.mxu0 %v1025
        %1079 = vmatpush1.bf16.msra.mxu0 %v1024
        %1080 = vmatprep.subr.bf16.mxu0 %v1029
        %1081 = vmatpush1.bf16.msra.mxu0 %v1028
        %1082 = vmatprep.subr.bf16.mxu0 %v1033
        %1083 = vmatpush1.bf16.msra.mxu0 %v1032
        %1084 = vmatprep.subr.bf16.mxu0 0
        %1085 = vmatpush1.bf16.msra.mxu0 0
        %1086 = vmatprep.subr.bf16.mxu0 0
        %1087 = vmatpush1.bf16.msra.mxu0 0
        %1088 = vmatprep.subr.bf16.mxu0 0
        %1089 = vmatpush1.bf16.msra.mxu0 0
        %1090 = vmatprep.subr.bf16.mxu0 0
        %1091 = vmatpush1.bf16.msra.mxu0 0
        %1092 = vmatprep.subr.bf16.mxu0 0
        %1093 = vmatpush1.bf16.msra.mxu0 0
        %1094 = vmatprep.subr.bf16.mxu0 0
        %1095 = vmatpush1.bf16.msra.mxu0 0
        %1096 = vmatprep.subr.bf16.mxu0 0
        %1097 = vmatpush1.bf16.msra.mxu0 0
        %1098 = vmatprep.subr.bf16.mxu0 0
        %1099 = vmatpush1.bf16.msra.mxu0 0
        %1100 = vmatprep.mubr.bf16.mxu0 0
        %1101 = vmatmul.mubr.bf16.gmra.mrb[0].mxu0 %v853
        %v1102 = vpop.f32.mrb[0].mxu0
        %v1103 = vadd.f32 %v891, %v1102
        %v1104 = vpop.f32.mrb[0].mxu0
        %v1105 = vadd.f32 %v895, %v1104
        %v1106 = vpop.f32.mrb[0].mxu0
        %v1107 = vpop.f32.mrb[0].mxu0
        %1108 = vdwg.mxu0
        %1109 = vmatprep.subr.bf16.mxu0 %v1007
        %1110 = vmatpush1.bf16.msra.mxu0 %v1006
        %1111 = vmatprep.subr.bf16.mxu0 %v1011
        %1112 = vmatpush1.bf16.msra.mxu0 %v1010
        %1113 = vmatprep.subr.bf16.mxu0 %v1015
        %1114 = vmatpush1.bf16.msra.mxu0 %v1014
        %1115 = vmatprep.subr.bf16.mxu0 %v1019
        %1116 = vmatpush1.bf16.msra.mxu0 %v1018
        %1117 = vmatprep.subr.bf16.mxu0 %v1023
        %1118 = vmatpush1.bf16.msra.mxu0 %v1022
        %1119 = vmatprep.subr.bf16.mxu0 %v1027
        %1120 = vmatpush1.bf16.msra.mxu0 %v1026
        %1121 = vmatprep.subr.bf16.mxu0 %v1031
        %1122 = vmatpush1.bf16.msra.mxu0 %v1030
        %1123 = vmatprep.subr.bf16.mxu0 %v1035
        %1124 = vmatpush1.bf16.msra.mxu0 %v1034
        %1125 = vmatprep.subr.bf16.mxu0 0
        %1126 = vmatpush1.bf16.msra.mxu0 0
        %1127 = vmatprep.subr.bf16.mxu0 0
        %1128 = vmatpush1.bf16.msra.mxu0 0
        %1129 = vmatprep.subr.bf16.mxu0 0
        %1130 = vmatpush1.bf16.msra.mxu0 0
        %1131 = vmatprep.subr.bf16.mxu0 0
        %1132 = vmatpush1.bf16.msra.mxu0 0
        %1133 = vmatprep.subr.bf16.mxu0 0
        %1134 = vmatpush1.bf16.msra.mxu0 0
        %1135 = vmatprep.subr.bf16.mxu0 0
        %1136 = vmatpush1.bf16.msra.mxu0 0
        %1137 = vmatprep.subr.bf16.mxu0 0
        %1138 = vmatpush1.bf16.msra.mxu0 0
        %1139 = vmatprep.subr.bf16.mxu0 0
        %1140 = vmatpush1.bf16.msra.mxu0 0
        %1141 = vmatprep.mubr.bf16.mxu0 0
        %1142 = vmatmul.mubr.bf16.gmra.mrb[0].mxu0 %v853
        %v1143 = vpop.f32.mrb[0].mxu0
        %v1144 = vadd.f32 %v899, %v1143
        %v1145 = vpop.f32.mrb[0].mxu0
        %v1146 = vadd.f32 %v903, %v1145
        %v1147 = vpop.f32.mrb[0].mxu0
        %v1148 = vpop.f32.mrb[0].mxu0
        %1149 = vdwg.mxu0
        %v1150 = vpack.c.bf16 %v1103, %v1103
        %v1151 = vpack.c.bf16 %v1105, %v1105
        %v1152 = vpack.c.bf16 %v1144, %v1144
        %v1153 = vpack.c.bf16 %v1146, %v1146
        %v1158 = vcombine.low %v1150, %v1151
        %v1159 = vcombine.low %v1152, %v1153
        %v1161 = vunpack.c.l.s4 1966171168
        %v1162 = vunpack.c.0.s8 %v1161
        %v1163 = vlaneseq
        %v1164 = vshrl.u32 %v1163, 7
        %v1165 = vsub.s32 %v1162, %v1164
        %v1166 = vrot.slane %v1158, %v1165
        %v1168 = vunpack.c.l.s4 1966171168
        %v1169 = vunpack.c.0.s8 %v1168
        %v1170 = vlaneseq
        %v1171 = vshrl.u32 %v1170, 7
        %v1172 = vsub.s32 %v1169, %v1171
        %v1173 = vrot.slane %v1159, %v1172
        %v1174 = vcombine.low %v1166, %v1173
        %v1176 = vunpack.c.l.s4 1966171168
        %v1177 = vunpack.c.0.s8 %v1176
        %v1178 = vlaneseq
        %v1179 = vshrl.u32 %v1178, 7
        %v1180 = vsub.s32 %v1177, %v1179
        %v1181 = vrot.slane %v1174, %v1180
        %1183 = vst [vmem:[%s583] sm:$0xf] %v1181
        %p1184 = scmp.lt.s32.totalorder %s22, 7
        %s1185 = scalar_select %p1184, %s22, 7
        %p1186 = scmp.lt.s32.totalorder %s23, 0
        %s1187 = scalar_select %p1186, %s23, 0
        %s1188 = sadd.s32 %s1187, %s1185
        %s1189 = smul.addr %s1188, 2
        %s1190 = scalar_lea.vmem %s5, %s1189
        %p1191 = scmp.lt.s32.totalorder %s22, 7
        %s1192 = scalar_select %p1191, %s22, 7
        %p1193 = scmp.lt.s32.totalorder %s23, 0
        %s1194 = scalar_select %p1193, %s23, 0
        %s1195 = smul.addr %s1194, 4
        %s1196 = smul.addr %s1192, 4
        %s1197 = sadd.s32 %s1195, %s1196
        %s1198 = scalar_lea.vmem %s6, %s1197
        // Predicated region
        $region79: #{vibe_lstm_forward.2} parent=73 // pred_check
          %p1199 = pneg %p162
        $region80: #{vibe_lstm_forward.2} parent=73 // pred_check_branch
          %1201 = sbr.rel (%p1199) target = $region82
        $region81: #{vibe_lstm_forward.2} parent=73 // pred_region
          _
        $region82: #{vibe_lstm_forward.2} parent=73 // pred_fallthru
          _
        // Predicated region
        $region83: #{vibe_lstm_forward.2} parent=73 // pred_check
          %p1202 = pneg %p190
        $region84: #{vibe_lstm_forward.2} parent=73 // pred_check_branch
          %1204 = sbr.rel (%p1202) target = $region86
        $region85: #{vibe_lstm_forward.2} parent=73 // pred_region
          _
        $region86: #{vibe_lstm_forward.2} parent=73 // pred_fallthru
          _
      $region74: #{vibe_lstm_forward.2} parent=5 // pred_fallthru
        _
      %p1205 = scmp.le.s32.totalorder 2, %s13
      // Predicated region
      $region87: #{vibe_lstm_forward.2} parent=5 // pred_check
        %p1206 = pneg %p1205
      $region88: #{vibe_lstm_forward.2} parent=5 // pred_check_branch
        %1208 = sbr.rel (%p1206) target = $region90
      $region89: #{vibe_lstm_forward.2} parent=5 // pred_region
        %s1209 = ssub.s32 %s13, 2
        // Predicated region
        $region91: #{vibe_lstm_forward.2} parent=89 // pred_check
          %p1210 = pneg %p168
        $region92: #{vibe_lstm_forward.2} parent=89 // pred_check_branch
          %1212 = sbr.rel (%p1210) target = $region94
        $region93: #{vibe_lstm_forward.2} parent=89 // pred_region
          %p1213 = scmp.lt.s32.totalorder %s24, 7
          %s1214 = scalar_select %p1213, %s24, 7
          %p1215 = scmp.lt.s32.totalorder %s25, 0
          %s1216 = scalar_select %p1215, %s25, 0
          %s1217 = sadd.s32 %s1216, %s1214
          %s1218 = smul.addr %s1217, 2
          %s1219 = scalar_lea.vmem %s5, %s1218
        $region94: #{vibe_lstm_forward.2} parent=89 // pred_fallthru
          _
        // Predicated region
        $region95: #{vibe_lstm_forward.2} parent=89 // pred_check
          %p1220 = pneg %p196
        $region96: #{vibe_lstm_forward.2} parent=89 // pred_check_branch
          %1222 = sbr.rel (%p1220) target = $region98
        $region97: #{vibe_lstm_forward.2} parent=89 // pred_region
          %p1223 = scmp.lt.s32.totalorder %s24, 7
          %s1224 = scalar_select %p1223, %s24, 7
          %p1225 = scmp.lt.s32.totalorder %s25, 0
          %s1226 = scalar_select %p1225, %s25, 0
          %s1227 = smul.addr %s1226, 4
          %s1228 = smul.addr %s1224, 4
          %s1229 = sadd.s32 %s1227, %s1228
          %s1230 = scalar_lea.vmem %s6, %s1229
        $region98: #{vibe_lstm_forward.2} parent=89 // pred_fallthru
          _
      $region90: #{vibe_lstm_forward.2} parent=5 // pred_fallthru
        _
    $region6: #{vibe_lstm_forward.2} parent=1 // loop_footer
      %s17 = sadd.s32 1, %s13
    $region7: #{vibe_lstm_forward.2} parent=1 // loop_footer_branch
      %12 = sbr.rel target = $region3
    $region8: #{vibe_lstm_forward.2} parent=1 // loop_exit
      _

// kernel: vibe_lstm_forward.3
$region0: #{vibe_lstm_forward.3}
  #allocation0 [shape = 'u32[]', space=smem, size = 0x4, offset = 0x4, fixed_abs, tag = 'smem constant byte address 0x4 - core index']
  #allocation1 [shape = 'u32[144,128]{1,0:T(1,128)}', space=vmem, size = 0x12000, scoped, tag = 'internal scratch']
  #allocation2 [shape = 'f32[8,128]{1,0:T(8,128)}', space=vmem, size = 0x1000, scoped, tag = 'scratch operand']
  #allocation3 [shape = 'f32[8,128]{1,0:T(8,128)}', space=vmem, size = 0x1000, scoped, tag = 'scratch operand']
  %s0 = inlined_call_operand.vmem [shape: bf16[8,8,512], index: 0, kind: input, shape index: {}]
  %s1 = inlined_call_operand.vmem [shape: f32[8,8,128], index: 1, kind: input, shape index: {}]
  %s2 = inlined_call_operand.vmem [shape: bf16[128,512], index: 2, kind: input, shape index: {}]
  %s3 = inlined_call_operand.vmem [shape: f32[8,8,128], index: 3, kind: output, shape index: {}]
  %s4 = sld [smem:[#allocation0]]
  $region26: #{vibe_lstm_forward.3} parent=0
    _
  %s6 = ssub.s32 1, %s4
  %s7 = scalar_select 0, %s6, %s4
  // Predicated region
  $region2: #{vibe_lstm_forward.3} parent=0 // pred_check
    _
  $region3: #{vibe_lstm_forward.3} parent=0 // pred_check_branch
    %9 = sbr.rel (0) target = $region5
  $region4: #{vibe_lstm_forward.3} parent=0 // pred_region
    _
  $region5: #{vibe_lstm_forward.3} parent=0 // pred_fallthru
    _
  // Predicated region
  $region6: #{vibe_lstm_forward.3} parent=0 // pred_check
    _
  $region7: #{vibe_lstm_forward.3} parent=0 // pred_check_branch
    %11 = sbr.rel (0) target = $region9
  $region8: #{vibe_lstm_forward.3} parent=0 // pred_region
    _
  $region9: #{vibe_lstm_forward.3} parent=0 // pred_fallthru
    _
  // Predicated region
  $region10: #{vibe_lstm_forward.3} parent=0 // pred_check
    _
  $region11: #{vibe_lstm_forward.3} parent=0 // pred_check_branch
    %13 = sbr.rel (0) target = $region13
  $region12: #{vibe_lstm_forward.3} parent=0 // pred_region
    _
  $region13: #{vibe_lstm_forward.3} parent=0 // pred_fallthru
    _
  %p15 = scmp.eq.s32.totalorder 0, 0
  // Predicated region
  $region14: #{vibe_lstm_forward.3} parent=0 // pred_check
    %p16 = pneg %p15
  $region15: #{vibe_lstm_forward.3} parent=0 // pred_check_branch
    %18 = sbr.rel (%p16) target = $region17
  $region16: #{vibe_lstm_forward.3} parent=0 // pred_region
    %19 = vst [vmem:[#allocation2] sm:$0xff] 0.0
    %20 = vst [vmem:[#allocation3] sm:$0xff] 0.0
  $region17: #{vibe_lstm_forward.3} parent=0 // pred_fallthru
    _
  %v21 = vld [vmem:[#allocation2] sm:$0xff]
  %v22 = vld [vmem:[#allocation3] sm:$0xff]
  %v23 = vld [vmem:[%s0] sm:$0xff]
  %v24 = vld [vmem:[%s0 + $0x8] sm:$0xff]
  %v25 = vunpack.c.l.bf16 %v23
  %v26 = vunpack.c.h.bf16 %v23
  %v27 = vunpack.c.l.bf16 %v24
  %v28 = vunpack.c.h.bf16 %v24
  %v29 = vpack.c.bf16 %v21, %v21
  %v30 = vld [vmem:[%s2] sm:$0xff]
  %v31 = vld [vmem:[%s2 + $0x8] sm:$0xff]
  %v32 = vld [vmem:[%s2 + $0x10] sm:$0xff]
  %v33 = vld [vmem:[%s2 + $0x18] sm:$0xff]
  %v34 = vld [vmem:[%s2 + $0x20] sm:$0xff]
  %v35 = vld [vmem:[%s2 + $0x28] sm:$0xff]
  %v36 = vld [vmem:[%s2 + $0x30] sm:$0xff]
  %v37 = vld [vmem:[%s2 + $0x38] sm:$0xff]
  %v38 = vld [vmem:[%s2 + $0x40] sm:$0xff]
  %v39 = vld [vmem:[%s2 + $0x48] sm:$0xff]
  %v40 = vld [vmem:[%s2 + $0x50] sm:$0xff]
  %v41 = vld [vmem:[%s2 + $0x58] sm:$0xff]
  %v42 = vld [vmem:[%s2 + $0x60] sm:$0xff]
  %v43 = vld [vmem:[%s2 + $0x68] sm:$0xff]
  %v44 = vld [vmem:[%s2 + $0x70] sm:$0xff]
  %v45 = vld [vmem:[%s2 + $0x78] sm:$0xff]
  %v46 = vld [vmem:[%s2 + $0x80] sm:$0xff]
  %v47 = vld [vmem:[%s2 + $0x88] sm:$0xff]
  %v48 = vld [vmem:[%s2 + $0x90] sm:$0xff]
  %v49 = vld [vmem:[%s2 + $0x98] sm:$0xff]
  %v50 = vld [vmem:[%s2 + $0xa0] sm:$0xff]
  %v51 = vld [vmem:[%s2 + $0xa8] sm:$0xff]
  %v52 = vld [vmem:[%s2 + $0xb0] sm:$0xff]
  %v53 = vld [vmem:[%s2 + $0xb8] sm:$0xff]
  %v54 = vld [vmem:[%s2 + $0xc0] sm:$0xff]
  %v55 = vld [vmem:[%s2 + $0xc8] sm:$0xff]
  %v56 = vld [vmem:[%s2 + $0xd0] sm:$0xff]
  %v57 = vld [vmem:[%s2 + $0xd8] sm:$0xff]
  %v58 = vld [vmem:[%s2 + $0xe0] sm:$0xff]
  %v59 = vld [vmem:[%s2 + $0xe8] sm:$0xff]
  %v60 = vld [vmem:[%s2 + $0xf0] sm:$0xff]
  %v61 = vld [vmem:[%s2 + $0xf8] sm:$0xff]
  %v94 = vunpack.c.l.b16 %v30
  %v95 = vunpack.c.h.b16 %v30
  %v96 = vunpack.c.l.b16 %v31
  %v97 = vunpack.c.h.b16 %v31
  %v98 = vunpack.c.l.b16 %v32
  %v99 = vunpack.c.h.b16 %v32
  %v100 = vunpack.c.l.b16 %v33
  %v101 = vunpack.c.h.b16 %v33
  %v102 = vunpack.c.l.b16 %v34
  %v103 = vunpack.c.h.b16 %v34
  %v104 = vunpack.c.l.b16 %v35
  %v105 = vunpack.c.h.b16 %v35
  %v106 = vunpack.c.l.b16 %v36
  %v107 = vunpack.c.h.b16 %v36
  %v108 = vunpack.c.l.b16 %v37
  %v109 = vunpack.c.h.b16 %v37
  %v110 = vunpack.c.l.b16 %v38
  %v111 = vunpack.c.h.b16 %v38
  %v112 = vunpack.c.l.b16 %v39
  %v113 = vunpack.c.h.b16 %v39
  %v114 = vunpack.c.l.b16 %v40
  %v115 = vunpack.c.h.b16 %v40
  %v116 = vunpack.c.l.b16 %v41
  %v117 = vunpack.c.h.b16 %v41
  %v118 = vunpack.c.l.b16 %v42
  %v119 = vunpack.c.h.b16 %v42
  %v120 = vunpack.c.l.b16 %v43
  %v121 = vunpack.c.h.b16 %v43
  %v122 = vunpack.c.l.b16 %v44
  %v123 = vunpack.c.h.b16 %v44
  %v124 = vunpack.c.l.b16 %v45
  %v125 = vunpack.c.h.b16 %v45
  %v126 = vunpack.c.l.b16 %v46
  %v127 = vunpack.c.h.b16 %v46
  %v128 = vunpack.c.l.b16 %v47
  %v129 = vunpack.c.h.b16 %v47
  %v130 = vunpack.c.l.b16 %v48
  %v131 = vunpack.c.h.b16 %v48
  %v132 = vunpack.c.l.b16 %v49
  %v133 = vunpack.c.h.b16 %v49
  %v134 = vunpack.c.l.b16 %v50
  %v135 = vunpack.c.h.b16 %v50
  %v136 = vunpack.c.l.b16 %v51
  %v137 = vunpack.c.h.b16 %v51
  %v138 = vunpack.c.l.b16 %v52
  %v139 = vunpack.c.h.b16 %v52
  %v140 = vunpack.c.l.b16 %v53
  %v141 = vunpack.c.h.b16 %v53
  %v142 = vunpack.c.l.b16 %v54
  %v143 = vunpack.c.h.b16 %v54
  %v144 = vunpack.c.l.b16 %v55
  %v145 = vunpack.c.h.b16 %v55
  %v146 = vunpack.c.l.b16 %v56
  %v147 = vunpack.c.h.b16 %v56
  %v148 = vunpack.c.l.b16 %v57
  %v149 = vunpack.c.h.b16 %v57
  %v150 = vunpack.c.l.b16 %v58
  %v151 = vunpack.c.h.b16 %v58
  %v152 = vunpack.c.l.b16 %v59
  %v153 = vunpack.c.h.b16 %v59
  %v154 = vunpack.c.l.b16 %v60
  %v155 = vunpack.c.h.b16 %v60
  %v156 = vunpack.c.l.b16 %v61
  %v157 = vunpack.c.h.b16 %v61
  %v158 = vpack.c.b16 %v98, %v94
  %v159 = vpack.c.b16 %v99, %v95
  %v160 = vpack.c.b16 %v100, %v96
  %v161 = vpack.c.b16 %v101, %v97
  %v162 = vpack.c.b16 %v106, %v102
  %v163 = vpack.c.b16 %v107, %v103
  %v164 = vpack.c.b16 %v108, %v104
  %v165 = vpack.c.b16 %v109, %v105
  %v166 = vpack.c.b16 %v114, %v110
  %v167 = vpack.c.b16 %v115, %v111
  %v168 = vpack.c.b16 %v116, %v112
  %v169 = vpack.c.b16 %v117, %v113
  %v170 = vpack.c.b16 %v122, %v118
  %v171 = vpack.c.b16 %v123, %v119
  %v172 = vpack.c.b16 %v124, %v120
  %v173 = vpack.c.b16 %v125, %v121
  %v174 = vpack.c.b16 %v130, %v126
  %v175 = vpack.c.b16 %v131, %v127
  %v176 = vpack.c.b16 %v132, %v128
  %v177 = vpack.c.b16 %v133, %v129
  %v178 = vpack.c.b16 %v138, %v134
  %v179 = vpack.c.b16 %v139, %v135
  %v180 = vpack.c.b16 %v140, %v136
  %v181 = vpack.c.b16 %v141, %v137
  %v182 = vpack.c.b16 %v146, %v142
  %v183 = vpack.c.b16 %v147, %v143
  %v184 = vpack.c.b16 %v148, %v144
  %v185 = vpack.c.b16 %v149, %v145
  %v186 = vpack.c.b16 %v154, %v150
  %v187 = vpack.c.b16 %v155, %v151
  %v188 = vpack.c.b16 %v156, %v152
  %v189 = vpack.c.b16 %v157, %v153
  %222 = vmatprep.subr.bf16.mxu0 %v159
  %223 = vmatpush1.bf16.msra.mxu0 %v158
  %224 = vmatprep.subr.bf16.mxu0 %v163
  %225 = vmatpush1.bf16.msra.mxu0 %v162
  %226 = vmatprep.subr.bf16.mxu0 %v167
  %227 = vmatpush1.bf16.msra.mxu0 %v166
  %228 = vmatprep.subr.bf16.mxu0 %v171
  %229 = vmatpush1.bf16.msra.mxu0 %v170
  %230 = vmatprep.subr.bf16.mxu0 %v175
  %231 = vmatpush1.bf16.msra.mxu0 %v174
  %232 = vmatprep.subr.bf16.mxu0 %v179
  %233 = vmatpush1.bf16.msra.mxu0 %v178
  %234 = vmatprep.subr.bf16.mxu0 %v183
  %235 = vmatpush1.bf16.msra.mxu0 %v182
  %236 = vmatprep.subr.bf16.mxu0 %v187
  %237 = vmatpush1.bf16.msra.mxu0 %v186
  %238 = vmatprep.subr.bf16.mxu0 0
  %239 = vmatpush1.bf16.msra.mxu0 0
  %240 = vmatprep.subr.bf16.mxu0 0
  %241 = vmatpush1.bf16.msra.mxu0 0
  %242 = vmatprep.subr.bf16.mxu0 0
  %243 = vmatpush1.bf16.msra.mxu0 0
  %244 = vmatprep.subr.bf16.mxu0 0
  %245 = vmatpush1.bf16.msra.mxu0 0
  %246 = vmatprep.subr.bf16.mxu0 0
  %247 = vmatpush1.bf16.msra.mxu0 0
  %248 = vmatprep.subr.bf16.mxu0 0
  %249 = vmatpush1.bf16.msra.mxu0 0
  %250 = vmatprep.subr.bf16.mxu0 0
  %251 = vmatpush1.bf16.msra.mxu0 0
  %252 = vmatprep.subr.bf16.mxu0 0
  %253 = vmatpush1.bf16.msra.mxu0 0
  %254 = vmatprep.mubr.bf16.mxu0 0
  %255 = vmatmul.mubr.bf16.gmra.mrb[0].mxu0 %v29
  %v256 = vpop.f32.mrb[0].mxu0
  %v257 = vadd.f32 0.0, %v256
  %v258 = vpop.f32.mrb[0].mxu0
  %v259 = vadd.f32 0.0, %v258
  %v260 = vpop.f32.mrb[0].mxu0
  %v261 = vpop.f32.mrb[0].mxu0
  %262 = vdwg.mxu0
  %263 = vmatprep.subr.bf16.mxu0 %v161
  %264 = vmatpush1.bf16.msra.mxu0 %v160
  %265 = vmatprep.subr.bf16.mxu0 %v165
  %266 = vmatpush1.bf16.msra.mxu0 %v164
  %267 = vmatprep.subr.bf16.mxu0 %v169
  %268 = vmatpush1.bf16.msra.mxu0 %v168
  %269 = vmatprep.subr.bf16.mxu0 %v173
  %270 = vmatpush1.bf16.msra.mxu0 %v172
  %271 = vmatprep.subr.bf16.mxu0 %v177
  %272 = vmatpush1.bf16.msra.mxu0 %v176
  %273 = vmatprep.subr.bf16.mxu0 %v181
  %274 = vmatpush1.bf16.msra.mxu0 %v180
  %275 = vmatprep.subr.bf16.mxu0 %v185
  %276 = vmatpush1.bf16.msra.mxu0 %v184
  %277 = vmatprep.subr.bf16.mxu0 %v189
  %278 = vmatpush1.bf16.msra.mxu0 %v188
  %279 = vmatprep.subr.bf16.mxu0 0
  %280 = vmatpush1.bf16.msra.mxu0 0
  %281 = vmatprep.subr.bf16.mxu0 0
  %282 = vmatpush1.bf16.msra.mxu0 0
  %283 = vmatprep.subr.bf16.mxu0 0
  %284 = vmatpush1.bf16.msra.mxu0 0
  %285 = vmatprep.subr.bf16.mxu0 0
  %286 = vmatpush1.bf16.msra.mxu0 0
  %287 = vmatprep.subr.bf16.mxu0 0
  %288 = vmatpush1.bf16.msra.mxu0 0
  %289 = vmatprep.subr.bf16.mxu0 0
  %290 = vmatpush1.bf16.msra.mxu0 0
  %291 = vmatprep.subr.bf16.mxu0 0
  %292 = vmatpush1.bf16.msra.mxu0 0
  %293 = vmatprep.subr.bf16.mxu0 0
  %294 = vmatpush1.bf16.msra.mxu0 0
  %295 = vmatprep.mubr.bf16.mxu0 0
  %296 = vmatmul.mubr.bf16.gmra.mrb[0].mxu0 %v29
  %v297 = vpop.f32.mrb[0].mxu0
  %v298 = vadd.f32 0.0, %v297
  %v299 = vpop.f32.mrb[0].mxu0
  %v300 = vadd.f32 0.0, %v299
  %v301 = vpop.f32.mrb[0].mxu0
  %v302 = vpop.f32.mrb[0].mxu0
  %303 = vdwg.mxu0
  %v304 = vadd.f32 %v25, %v257
  %v305 = vadd.f32 %v26, %v259
  %v306 = vadd.f32 %v27, %v298
  %v307 = vadd.f32 %v28, %v300
  %v308 = vxor.u32 %v304, 2147483648
  %v309 = vmul.f32 %v308, 1.442695
  %v310 = vpow.pop %v309
  %v311 = vadd.f32 %v310, 1.0
  %v312 = vrcp.pop %v311
  %v313 = vmul.f32 1.0, %v312
  %v314 = vxor.u32 %v305, 2147483648
  %v315 = vmul.f32 %v314, 1.442695
  %v316 = vpow.pop %v315
  %v317 = vadd.f32 %v316, 1.0
  %v318 = vrcp.pop %v317
  %v319 = vmul.f32 1.0, %v318
  %v320 = vtanh.pop %v306
  %v321 = vxor.u32 %v307, 2147483648
  %v322 = vmul.f32 %v321, 1.442695
  %v323 = vpow.pop %v322
  %v324 = vadd.f32 %v323, 1.0
  %v325 = vrcp.pop %v324
  %v326 = vmul.f32 1.0, %v325
  %v327 = vmul.f32 %v319, %v22
  %v328 = vmul.f32 %v313, %v320
  %v329 = vadd.f32 %v327, %v328
  %v330 = vtanh.pop %v329
  %v331 = vmul.f32 %v326, %v330
  %v332 = vld [vmem:[%s1] sm:$0xff]
  %v333 = vadd.f32 %v331, %v332
  %334 = vst [vmem:[%s3] sm:$0xff] %v333
  %s335 = scalar_lea.vmem %s0, 16
  %v336 = vld [vmem:[%s335] sm:$0xff]
  %v337 = vld [vmem:[%s335 + $0x8] sm:$0xff]
  %v338 = vunpack.c.l.bf16 %v336
  %v339 = vunpack.c.h.bf16 %v336
  %v340 = vunpack.c.l.bf16 %v337
  %v341 = vunpack.c.h.bf16 %v337
  %v342 = vpack.c.bf16 %v331, %v331
  %v343 = vld [vmem:[%s2] sm:$0xff]
  %v344 = vld [vmem:[%s2 + $0x8] sm:$0xff]
  %v345 = vld [vmem:[%s2 + $0x10] sm:$0xff]
  %v346 = vld [vmem:[%s2 + $0x18] sm:$0xff]
  %v347 = vld [vmem:[%s2 + $0x20] sm:$0xff]
  %v348 = vld [vmem:[%s2 + $0x28] sm:$0xff]
  %v349 = vld [vmem:[%s2 + $0x30] sm:$0xff]
  %v350 = vld [vmem:[%s2 + $0x38] sm:$0xff]
  %v351 = vld [vmem:[%s2 + $0x40] sm:$0xff]
  %v352 = vld [vmem:[%s2 + $0x48] sm:$0xff]
  %v353 = vld [vmem:[%s2 + $0x50] sm:$0xff]
  %v354 = vld [vmem:[%s2 + $0x58] sm:$0xff]
  %v355 = vld [vmem:[%s2 + $0x60] sm:$0xff]
  %v356 = vld [vmem:[%s2 + $0x68] sm:$0xff]
  %v357 = vld [vmem:[%s2 + $0x70] sm:$0xff]
  %v358 = vld [vmem:[%s2 + $0x78] sm:$0xff]
  %v359 = vld [vmem:[%s2 + $0x80] sm:$0xff]
  %v360 = vld [vmem:[%s2 + $0x88] sm:$0xff]
  %v361 = vld [vmem:[%s2 + $0x90] sm:$0xff]
  %v362 = vld [vmem:[%s2 + $0x98] sm:$0xff]
  %v363 = vld [vmem:[%s2 + $0xa0] sm:$0xff]
  %v364 = vld [vmem:[%s2 + $0xa8] sm:$0xff]
  %v365 = vld [vmem:[%s2 + $0xb0] sm:$0xff]
  %v366 = vld [vmem:[%s2 + $0xb8] sm:$0xff]
  %v367 = vld [vmem:[%s2 + $0xc0] sm:$0xff]
  %v368 = vld [vmem:[%s2 + $0xc8] sm:$0xff]
  %v369 = vld [vmem:[%s2 + $0xd0] sm:$0xff]
  %v370 = vld [vmem:[%s2 + $0xd8] sm:$0xff]
  %v371 = vld [vmem:[%s2 + $0xe0] sm:$0xff]
  %v372 = vld [vmem:[%s2 + $0xe8] sm:$0xff]
  %v373 = vld [vmem:[%s2 + $0xf0] sm:$0xff]
  %v374 = vld [vmem:[%s2 + $0xf8] sm:$0xff]
  %v407 = vunpack.c.l.b16 %v343
  %v408 = vunpack.c.h.b16 %v343
  %v409 = vunpack.c.l.b16 %v344
  %v410 = vunpack.c.h.b16 %v344
  %v411 = vunpack.c.l.b16 %v345
  %v412 = vunpack.c.h.b16 %v345
  %v413 = vunpack.c.l.b16 %v346
  %v414 = vunpack.c.h.b16 %v346
  %v415 = vunpack.c.l.b16 %v347
  %v416 = vunpack.c.h.b16 %v347
  %v417 = vunpack.c.l.b16 %v348
  %v418 = vunpack.c.h.b16 %v348
  %v419 = vunpack.c.l.b16 %v349
  %v420 = vunpack.c.h.b16 %v349
  %v421 = vunpack.c.l.b16 %v350
  %v422 = vunpack.c.h.b16 %v350
  %v423 = vunpack.c.l.b16 %v351
  %v424 = vunpack.c.h.b16 %v351
  %v425 = vunpack.c.l.b16 %v352
  %v426 = vunpack.c.h.b16 %v352
  %v427 = vunpack.c.l.b16 %v353
  %v428 = vunpack.c.h.b16 %v353
  %v429 = vunpack.c.l.b16 %v354
  %v430 = vunpack.c.h.b16 %v354
  %v431 = vunpack.c.l.b16 %v355
  %v432 = vunpack.c.h.b16 %v355
  %v433 = vunpack.c.l.b16 %v356
  %v434 = vunpack.c.h.b16 %v356
  %v435 = vunpack.c.l.b16 %v357
  %v436 = vunpack.c.h.b16 %v357
  %v437 = vunpack.c.l.b16 %v358
  %v438 = vunpack.c.h.b16 %v358
  %v439 = vunpack.c.l.b16 %v359
  %v440 = vunpack.c.h.b16 %v359
  %v441 = vunpack.c.l.b16 %v360
  %v442 = vunpack.c.h.b16 %v360
  %v443 = vunpack.c.l.b16 %v361
  %v444 = vunpack.c.h.b16 %v361
  %v445 = vunpack.c.l.b16 %v362
  %v446 = vunpack.c.h.b16 %v362
  %v447 = vunpack.c.l.b16 %v363
  %v448 = vunpack.c.h.b16 %v363
  %v449 = vunpack.c.l.b16 %v364
  %v450 = vunpack.c.h.b16 %v364
  %v451 = vunpack.c.l.b16 %v365
  %v452 = vunpack.c.h.b16 %v365
  %v453 = vunpack.c.l.b16 %v366
  %v454 = vunpack.c.h.b16 %v366
  %v455 = vunpack.c.l.b16 %v367
  %v456 = vunpack.c.h.b16 %v367
  %v457 = vunpack.c.l.b16 %v368
  %v458 = vunpack.c.h.b16 %v368
  %v459 = vunpack.c.l.b16 %v369
  %v460 = vunpack.c.h.b16 %v369
  %v461 = vunpack.c.l.b16 %v370
  %v462 = vunpack.c.h.b16 %v370
  %v463 = vunpack.c.l.b16 %v371
  %v464 = vunpack.c.h.b16 %v371
  %v465 = vunpack.c.l.b16 %v372
  %v466 = vunpack.c.h.b16 %v372
  %v467 = vunpack.c.l.b16 %v373
  %v468 = vunpack.c.h.b16 %v373
  %v469 = vunpack.c.l.b16 %v374
  %v470 = vunpack.c.h.b16 %v374
  %v471 = vpack.c.b16 %v411, %v407
  %v472 = vpack.c.b16 %v412, %v408
  %v473 = vpack.c.b16 %v413, %v409
  %v474 = vpack.c.b16 %v414, %v410
  %v475 = vpack.c.b16 %v419, %v415
  %v476 = vpack.c.b16 %v420, %v416
  %v477 = vpack.c.b16 %v421, %v417
  %v478 = vpack.c.b16 %v422, %v418
  %v479 = vpack.c.b16 %v427, %v423
  %v480 = vpack.c.b16 %v428, %v424
  %v481 = vpack.c.b16 %v429, %v425
  %v482 = vpack.c.b16 %v430, %v426
  %v483 = vpack.c.b16 %v435, %v431
  %v484 = vpack.c.b16 %v436, %v432
  %v485 = vpack.c.b16 %v437, %v433
  %v486 = vpack.c.b16 %v438, %v434
  %v487 = vpack.c.b16 %v443, %v439
  %v488 = vpack.c.b16 %v444, %v440
  %v489 = vpack.c.b16 %v445, %v441
  %v490 = vpack.c.b16 %v446, %v442
  %v491 = vpack.c.b16 %v451, %v447
  %v492 = vpack.c.b16 %v452, %v448
  %v493 = vpack.c.b16 %v453, %v449
  %v494 = vpack.c.b16 %v454, %v450
  %v495 = vpack.c.b16 %v459, %v455
  %v496 = vpack.c.b16 %v460, %v456
  %v497 = vpack.c.b16 %v461, %v457
  %v498 = vpack.c.b16 %v462, %v458
  %v499 = vpack.c.b16 %v467, %v463
  %v500 = vpack.c.b16 %v468, %v464
  %v501 = vpack.c.b16 %v469, %v465
  %v502 = vpack.c.b16 %v470, %v466
  %535 = vmatprep.subr.bf16.mxu0 %v472
  %536 = vmatpush1.bf16.msra.mxu0 %v471
  %537 = vmatprep.subr.bf16.mxu0 %v476
  %538 = vmatpush1.bf16.msra.mxu0 %v475
  %539 = vmatprep.subr.bf16.mxu0 %v480
  %540 = vmatpush1.bf16.msra.mxu0 %v479
  %541 = vmatprep.subr.bf16.mxu0 %v484
  %542 = vmatpush1.bf16.msra.mxu0 %v483
  %543 = vmatprep.subr.bf16.mxu0 %v488
  %544 = vmatpush1.bf16.msra.mxu0 %v487
  %545 = vmatprep.subr.bf16.mxu0 %v492
  %546 = vmatpush1.bf16.msra.mxu0 %v491
  %547 = vmatprep.subr.bf16.mxu0 %v496
  %548 = vmatpush1.bf16.msra.mxu0 %v495
  %549 = vmatprep.subr.bf16.mxu0 %v500
  %550 = vmatpush1.bf16.msra.mxu0 %v499
  %551 = vmatprep.subr.bf16.mxu0 0
  %552 = vmatpush1.bf16.msra.mxu0 0
  %553 = vmatprep.subr.bf16.mxu0 0
  %554 = vmatpush1.bf16.msra.mxu0 0
  %555 = vmatprep.subr.bf16.mxu0 0
  %556 = vmatpush1.bf16.msra.mxu0 0
  %557 = vmatprep.subr.bf16.mxu0 0
  %558 = vmatpush1.bf16.msra.mxu0 0
  %559 = vmatprep.subr.bf16.mxu0 0
  %560 = vmatpush1.bf16.msra.mxu0 0
  %561 = vmatprep.subr.bf16.mxu0 0
  %562 = vmatpush1.bf16.msra.mxu0 0
  %563 = vmatprep.subr.bf16.mxu0 0
  %564 = vmatpush1.bf16.msra.mxu0 0
  %565 = vmatprep.subr.bf16.mxu0 0
  %566 = vmatpush1.bf16.msra.mxu0 0
  %567 = vmatprep.mubr.bf16.mxu0 0
  %568 = vmatmul.mubr.bf16.gmra.mrb[0].mxu0 %v342
  %v569 = vpop.f32.mrb[0].mxu0
  %v570 = vadd.f32 0.0, %v569
  %v571 = vpop.f32.mrb[0].mxu0
  %v572 = vadd.f32 0.0, %v571
  %v573 = vpop.f32.mrb[0].mxu0
  %v574 = vpop.f32.mrb[0].mxu0
  %575 = vdwg.mxu0
  %576 = vmatprep.subr.bf16.mxu0 %v474
  %577 = vmatpush1.bf16.msra.mxu0 %v473
  %578 = vmatprep.subr.bf16.mxu0 %v478
  %579 = vmatpush1.bf16.msra.mxu0 %v477
  %580 = vmatprep.subr.bf16.mxu0 %v482
  %581 = vmatpush1.bf16.msra.mxu0 %v481
  %582 = vmatprep.subr.bf16.mxu0 %v486
  %583 = vmatpush1.bf16.msra.mxu0 %v485
  %584 = vmatprep.subr.bf16.mxu0 %v490
  %585 = vmatpush1.bf16.msra.mxu0 %v489
  %586 = vmatprep.subr.bf16.mxu0 %v494
  %587 = vmatpush1.bf16.msra.mxu0 %v493
  %588 = vmatprep.subr.bf16.mxu0 %v498
  %589 = vmatpush1.bf16.msra.mxu0 %v497
  %590 = vmatprep.subr.bf16.mxu0 %v502
  %591 = vmatpush1.bf16.msra.mxu0 %v501
  %592 = vmatprep.subr.bf16.mxu0 0
  %593 = vmatpush1.bf16.msra.mxu0 0
  %594 = vmatprep.subr.bf16.mxu0 0
  %595 = vmatpush1.bf16.msra.mxu0 0
  %596 = vmatprep.subr.bf16.mxu0 0
  %597 = vmatpush1.bf16.msra.mxu0 0
  %598 = vmatprep.subr.bf16.mxu0 0
  %599 = vmatpush1.bf16.msra.mxu0 0
  %600 = vmatprep.subr.bf16.mxu0 0
  %601 = vmatpush1.bf16.msra.mxu0 0
  %602 = vmatprep.subr.bf16.mxu0 0
  %603 = vmatpush1.bf16.msra.mxu0 0
  %604 = vmatprep.subr.bf16.mxu0 0
  %605 = vmatpush1.bf16.msra.mxu0 0
  %606 = vmatprep.subr.bf16.mxu0 0
  %607 = vmatpush1.bf16.msra.mxu0 0
  %608 = vmatprep.mubr.bf16.mxu0 0
  %609 = vmatmul.mubr.bf16.gmra.mrb[0].mxu0 %v342
  %v610 = vpop.f32.mrb[0].mxu0
  %v611 = vadd.f32 0.0, %v610
  %v612 = vpop.f32.mrb[0].mxu0
  %v613 = vadd.f32 0.0, %v612
  %v614 = vpop.f32.mrb[0].mxu0
  %v615 = vpop.f32.mrb[0].mxu0
  %616 = vdwg.mxu0
  %v617 = vadd.f32 %v338, %v570
  %v618 = vadd.f32 %v339, %v572
  %v619 = vadd.f32 %v340, %v611
  %v620 = vadd.f32 %v341, %v613
  %v621 = vxor.u32 %v617, 2147483648
  %v622 = vmul.f32 %v621, 1.442695
  %v623 = vpow.pop %v622
  %v624 = vadd.f32 %v623, 1.0
  %v625 = vrcp.pop %v624
  %v626 = vmul.f32 1.0, %v625
  %v627 = vxor.u32 %v618, 2147483648
  %v628 = vmul.f32 %v627, 1.442695
  %v629 = vpow.pop %v628
  %v630 = vadd.f32 %v629, 1.0
  %v631 = vrcp.pop %v630
  %v632 = vmul.f32 1.0, %v631
  %v633 = vtanh.pop %v619
  %v634 = vxor.u32 %v620, 2147483648
  %v635 = vmul.f32 %v634, 1.442695
  %v636 = vpow.pop %v635
  %v637 = vadd.f32 %v636, 1.0
  %v638 = vrcp.pop %v637
  %v639 = vmul.f32 1.0, %v638
  %v640 = vmul.f32 %v632, %v329
  %v641 = vmul.f32 %v626, %v633
  %v642 = vadd.f32 %v640, %v641
  %v643 = vtanh.pop %v642
  %v644 = vmul.f32 %v639, %v643
  %s645 = scalar_lea.vmem %s1, 8
  %v646 = vld [vmem:[%s645] sm:$0xff]
  %v647 = vadd.f32 %v644, %v646
  %s648 = scalar_lea.vmem %s3, 8
  %649 = vst [vmem:[%s648] sm:$0xff] %v647
  %s650 = scalar_lea.vmem %s0, 32
  %v651 = vld [vmem:[%s650] sm:$0xff]
  %v652 = vld [vmem:[%s650 + $0x8] sm:$0xff]
  %v653 = vunpack.c.l.bf16 %v651
  %v654 = vunpack.c.h.bf16 %v651
  %v655 = vunpack.c.l.bf16 %v652
  %v656 = vunpack.c.h.bf16 %v652
  %v657 = vpack.c.bf16 %v644, %v644
  %v658 = vld [vmem:[%s2] sm:$0xff]
  %v659 = vld [vmem:[%s2 + $0x8] sm:$0xff]
  %v660 = vld [vmem:[%s2 + $0x10] sm:$0xff]
  %v661 = vld [vmem:[%s2 + $0x18] sm:$0xff]
  %v662 = vld [vmem:[%s2 + $0x20] sm:$0xff]
  %v663 = vld [vmem:[%s2 + $0x28] sm:$0xff]
  %v664 = vld [vmem:[%s2 + $0x30] sm:$0xff]
  %v665 = vld [vmem:[%s2 + $0x38] sm:$0xff]
  %v666 = vld [vmem:[%s2 + $0x40] sm:$0xff]
  %v667 = vld [vmem:[%s2 + $0x48] sm:$0xff]
  %v668 = vld [vmem:[%s2 + $0x50] sm:$0xff]
  %v669 = vld [vmem:[%s2 + $0x58] sm:$0xff]
  %v670 = vld [vmem:[%s2 + $0x60] sm:$0xff]
  %v671 = vld [vmem:[%s2 + $0x68] sm:$0xff]
  %v672 = vld [vmem:[%s2 + $0x70] sm:$0xff]
  %v673 = vld [vmem:[%s2 + $0x78] sm:$0xff]
  %v674 = vld [vmem:[%s2 + $0x80] sm:$0xff]
  %v675 = vld [vmem:[%s2 + $0x88] sm:$0xff]
  %v676 = vld [vmem:[%s2 + $0x90] sm:$0xff]
  %v677 = vld [vmem:[%s2 + $0x98] sm:$0xff]
  %v678 = vld [vmem:[%s2 + $0xa0] sm:$0xff]
  %v679 = vld [vmem:[%s2 + $0xa8] sm:$0xff]
  %v680 = vld [vmem:[%s2 + $0xb0] sm:$0xff]
  %v681 = vld [vmem:[%s2 + $0xb8] sm:$0xff]
  %v682 = vld [vmem:[%s2 + $0xc0] sm:$0xff]
  %v683 = vld [vmem:[%s2 + $0xc8] sm:$0xff]
  %v684 = vld [vmem:[%s2 + $0xd0] sm:$0xff]
  %v685 = vld [vmem:[%s2 + $0xd8] sm:$0xff]
  %v686 = vld [vmem:[%s2 + $0xe0] sm:$0xff]
  %v687 = vld [vmem:[%s2 + $0xe8] sm:$0xff]
  %v688 = vld [vmem:[%s2 + $0xf0] sm:$0xff]
  %v689 = vld [vmem:[%s2 + $0xf8] sm:$0xff]
  %v722 = vunpack.c.l.b16 %v658
  %v723 = vunpack.c.h.b16 %v658
  %v724 = vunpack.c.l.b16 %v659
  %v725 = vunpack.c.h.b16 %v659
  %v726 = vunpack.c.l.b16 %v660
  %v727 = vunpack.c.h.b16 %v660
  %v728 = vunpack.c.l.b16 %v661
  %v729 = vunpack.c.h.b16 %v661
  %v730 = vunpack.c.l.b16 %v662
  %v731 = vunpack.c.h.b16 %v662
  %v732 = vunpack.c.l.b16 %v663
  %v733 = vunpack.c.h.b16 %v663
  %v734 = vunpack.c.l.b16 %v664
  %v735 = vunpack.c.h.b16 %v664
  %v736 = vunpack.c.l.b16 %v665
  %v737 = vunpack.c.h.b16 %v665
  %v738 = vunpack.c.l.b16 %v666
  %v739 = vunpack.c.h.b16 %v666
  %v740 = vunpack.c.l.b16 %v667
  %v741 = vunpack.c.h.b16 %v667
  %v742 = vunpack.c.l.b16 %v668
  %v743 = vunpack.c.h.b16 %v668
  %v744 = vunpack.c.l.b16 %v669
  %v745 = vunpack.c.h.b16 %v669
  %v746 = vunpack.c.l.b16 %v670
  %v747 = vunpack.c.h.b16 %v670
  %v748 = vunpack.c.l.b16 %v671
  %v749 = vunpack.c.h.b16 %v671
  %v750 = vunpack.c.l.b16 %v672
  %v751 = vunpack.c.h.b16 %v672
  %v752 = vunpack.c.l.b16 %v673
  %v753 = vunpack.c.h.b16 %v673
  %v754 = vunpack.c.l.b16 %v674
  %v755 = vunpack.c.h.b16 %v674
  %v756 = vunpack.c.l.b16 %v675
  %v757 = vunpack.c.h.b16 %v675
  %v758 = vunpack.c.l.b16 %v676
  %v759 = vunpack.c.h.b16 %v676
  %v760 = vunpack.c.l.b16 %v677
  %v761 = vunpack.c.h.b16 %v677
  %v762 = vunpack.c.l.b16 %v678
  %v763 = vunpack.c.h.b16 %v678
  %v764 = vunpack.c.l.b16 %v679
  %v765 = vunpack.c.h.b16 %v679
  %v766 = vunpack.c.l.b16 %v680
  %v767 = vunpack.c.h.b16 %v680
  %v768 = vunpack.c.l.b16 %v681
  %v769 = vunpack.c.h.b16 %v681
  %v770 = vunpack.c.l.b16 %v682
  %v771 = vunpack.c.h.b16 %v682
  %v772 = vunpack.c.l.b16 %v683
  %v773 = vunpack.c.h.b16 %v683
  %v774 = vunpack.c.l.b16 %v684
  %v775 = vunpack.c.h.b16 %v684
  %v776 = vunpack.c.l.b16 %v685
  %v777 = vunpack.c.h.b16 %v685
  %v778 = vunpack.c.l.b16 %v686
  %v779 = vunpack.c.h.b16 %v686
  %v780 = vunpack.c.l.b16 %v687
  %v781 = vunpack.c.h.b16 %v687
  %v782 = vunpack.c.l.b16 %v688
  %v783 = vunpack.c.h.b16 %v688
  %v784 = vunpack.c.l.b16 %v689
  %v785 = vunpack.c.h.b16 %v689
  %v786 = vpack.c.b16 %v726, %v722
  %v787 = vpack.c.b16 %v727, %v723
  %v788 = vpack.c.b16 %v728, %v724
  %v789 = vpack.c.b16 %v729, %v725
  %v790 = vpack.c.b16 %v734, %v730
  %v791 = vpack.c.b16 %v735, %v731
  %v792 = vpack.c.b16 %v736, %v732
  %v793 = vpack.c.b16 %v737, %v733
  %v794 = vpack.c.b16 %v742, %v738
  %v795 = vpack.c.b16 %v743, %v739
  %v796 = vpack.c.b16 %v744, %v740
  %v797 = vpack.c.b16 %v745, %v741
  %v798 = vpack.c.b16 %v750, %v746
  %v799 = vpack.c.b16 %v751, %v747
  %v800 = vpack.c.b16 %v752, %v748
  %v801 = vpack.c.b16 %v753, %v749
  %v802 = vpack.c.b16 %v758, %v754
  %v803 = vpack.c.b16 %v759, %v755
  %v804 = vpack.c.b16 %v760, %v756
  %v805 = vpack.c.b16 %v761, %v757
  %v806 = vpack.c.b16 %v766, %v762
  %v807 = vpack.c.b16 %v767, %v763
  %v808 = vpack.c.b16 %v768, %v764
  %v809 = vpack.c.b16 %v769, %v765
  %v810 = vpack.c.b16 %v774, %v770
  %v811 = vpack.c.b16 %v775, %v771
  %v812 = vpack.c.b16 %v776, %v772
  %v813 = vpack.c.b16 %v777, %v773
  %v814 = vpack.c.b16 %v782, %v778
  %v815 = vpack.c.b16 %v783, %v779
  %v816 = vpack.c.b16 %v784, %v780
  %v817 = vpack.c.b16 %v785, %v781
  %850 = vmatprep.subr.bf16.mxu0 %v787
  %851 = vmatpush1.bf16.msra.mxu0 %v786
  %852 = vmatprep.subr.bf16.mxu0 %v791
  %853 = vmatpush1.bf16.msra.mxu0 %v790
  %854 = vmatprep.subr.bf16.mxu0 %v795
  %855 = vmatpush1.bf16.msra.mxu0 %v794
  %856 = vmatprep.subr.bf16.mxu0 %v799
  %857 = vmatpush1.bf16.msra.mxu0 %v798
  %858 = vmatprep.subr.bf16.mxu0 %v803
  %859 = vmatpush1.bf16.msra.mxu0 %v802
  %860 = vmatprep.subr.bf16.mxu0 %v807
  %861 = vmatpush1.bf16.msra.mxu0 %v806
  %862 = vmatprep.subr.bf16.mxu0 %v811
  %863 = vmatpush1.bf16.msra.mxu0 %v810
  %864 = vmatprep.subr.bf16.mxu0 %v815
  %865 = vmatpush1.bf16.msra.mxu0 %v814
  %866 = vmatprep.subr.bf16.mxu0 0
  %867 = vmatpush1.bf16.msra.mxu0 0
  %868 = vmatprep.subr.bf16.mxu0 0
  %869 = vmatpush1.bf16.msra.mxu0 0
  %870 = vmatprep.subr.bf16.mxu0 0
  %871 = vmatpush1.bf16.msra.mxu0 0
  %872 = vmatprep.subr.bf16.mxu0 0
  %873 = vmatpush1.bf16.msra.mxu0 0
  %874 = vmatprep.subr.bf16.mxu0 0
  %875 = vmatpush1.bf16.msra.mxu0 0
  %876 = vmatprep.subr.bf16.mxu0 0
  %877 = vmatpush1.bf16.msra.mxu0 0
  %878 = vmatprep.subr.bf16.mxu0 0
  %879 = vmatpush1.bf16.msra.mxu0 0
  %880 = vmatprep.subr.bf16.mxu0 0
  %881 = vmatpush1.bf16.msra.mxu0 0
  %882 = vmatprep.mubr.bf16.mxu0 0
  %883 = vmatmul.mubr.bf16.gmra.mrb[0].mxu0 %v657
  %v884 = vpop.f32.mrb[0].mxu0
  %v885 = vadd.f32 0.0, %v884
  %v886 = vpop.f32.mrb[0].mxu0
  %v887 = vadd.f32 0.0, %v886
  %v888 = vpop.f32.mrb[0].mxu0
  %v889 = vpop.f32.mrb[0].mxu0
  %890 = vdwg.mxu0
  %891 = vmatprep.subr.bf16.mxu0 %v789
  %892 = vmatpush1.bf16.msra.mxu0 %v788
  %893 = vmatprep.subr.bf16.mxu0 %v793
  %894 = vmatpush1.bf16.msra.mxu0 %v792
  %895 = vmatprep.subr.bf16.mxu0 %v797
  %896 = vmatpush1.bf16.msra.mxu0 %v796
  %897 = vmatprep.subr.bf16.mxu0 %v801
  %898 = vmatpush1.bf16.msra.mxu0 %v800
  %899 = vmatprep.subr.bf16.mxu0 %v805
  %900 = vmatpush1.bf16.msra.mxu0 %v804
  %901 = vmatprep.subr.bf16.mxu0 %v809
  %902 = vmatpush1.bf16.msra.mxu0 %v808
  %903 = vmatprep.subr.bf16.mxu0 %v813
  %904 = vmatpush1.bf16.msra.mxu0 %v812
  %905 = vmatprep.subr.bf16.mxu0 %v817
  %906 = vmatpush1.bf16.msra.mxu0 %v816
  %907 = vmatprep.subr.bf16.mxu0 0
  %908 = vmatpush1.bf16.msra.mxu0 0
  %909 = vmatprep.subr.bf16.mxu0 0
  %910 = vmatpush1.bf16.msra.mxu0 0
  %911 = vmatprep.subr.bf16.mxu0 0
  %912 = vmatpush1.bf16.msra.mxu0 0
  %913 = vmatprep.subr.bf16.mxu0 0
  %914 = vmatpush1.bf16.msra.mxu0 0
  %915 = vmatprep.subr.bf16.mxu0 0
  %916 = vmatpush1.bf16.msra.mxu0 0
  %917 = vmatprep.subr.bf16.mxu0 0
  %918 = vmatpush1.bf16.msra.mxu0 0
  %919 = vmatprep.subr.bf16.mxu0 0
  %920 = vmatpush1.bf16.msra.mxu0 0
  %921 = vmatprep.subr.bf16.mxu0 0
  %922 = vmatpush1.bf16.msra.mxu0 0
  %923 = vmatprep.mubr.bf16.mxu0 0
  %924 = vmatmul.mubr.bf16.gmra.mrb[0].mxu0 %v657
  %v925 = vpop.f32.mrb[0].mxu0
  %v926 = vadd.f32 0.0, %v925
  %v927 = vpop.f32.mrb[0].mxu0
  %v928 = vadd.f32 0.0, %v927
  %v929 = vpop.f32.mrb[0].mxu0
  %v930 = vpop.f32.mrb[0].mxu0
  %931 = vdwg.mxu0
  %v932 = vadd.f32 %v653, %v885
  %v933 = vadd.f32 %v654, %v887
  %v934 = vadd.f32 %v655, %v926
  %v935 = vadd.f32 %v656, %v928
  %v936 = vxor.u32 %v932, 2147483648
  %v937 = vmul.f32 %v936, 1.442695
  %v938 = vpow.pop %v937
  %v939 = vadd.f32 %v938, 1.0
  %v940 = vrcp.pop %v939
  %v941 = vmul.f32 1.0, %v940
  %v942 = vxor.u32 %v933, 2147483648
  %v943 = vmul.f32 %v942, 1.442695
  %v944 = vpow.pop %v943
  %v945 = vadd.f32 %v944, 1.0
  %v946 = vrcp.pop %v945
  %v947 = vmul.f32 1.0, %v946
  %v948 = vtanh.pop %v934
  %v949 = vxor.u32 %v935, 2147483648
  %v950 = vmul.f32 %v949, 1.442695
  %v951 = vpow.pop %v950
  %v952 = vadd.f32 %v951, 1.0
  %v953 = vrcp.pop %v952
  %v954 = vmul.f32 1.0, %v953
  %v955 = vmul.f32 %v947, %v642
  %v956 = vmul.f32 %v941, %v948
  %v957 = vadd.f32 %v955, %v956
  %v958 = vtanh.pop %v957
  %v959 = vmul.f32 %v954, %v958
  %s960 = scalar_lea.vmem %s1, 16
  %v961 = vld [vmem:[%s960] sm:$0xff]
  %v962 = vadd.f32 %v959, %v961
  %s963 = scalar_lea.vmem %s3, 16
  %964 = vst [vmem:[%s963] sm:$0xff] %v962
  %s965 = scalar_lea.vmem %s0, 48
  %v966 = vld [vmem:[%s965] sm:$0xff]
  %v967 = vld [vmem:[%s965 + $0x8] sm:$0xff]
  %v968 = vunpack.c.l.bf16 %v966
  %v969 = vunpack.c.h.bf16 %v966
  %v970 = vunpack.c.l.bf16 %v967
  %v971 = vunpack.c.h.bf16 %v967
  %v972 = vpack.c.bf16 %v959, %v959
  %v973 = vld [vmem:[%s2] sm:$0xff]
  %v974 = vld [vmem:[%s2 + $0x8] sm:$0xff]
  %v975 = vld [vmem:[%s2 + $0x10] sm:$0xff]
  %v976 = vld [vmem:[%s2 + $0x18] sm:$0xff]
  %v977 = vld [vmem:[%s2 + $0x20] sm:$0xff]
  %v978 = vld [vmem:[%s2 + $0x28] sm:$0xff]
  %v979 = vld [vmem:[%s2 + $0x30] sm:$0xff]
  %v980 = vld [vmem:[%s2 + $0x38] sm:$0xff]
  %v981 = vld [vmem:[%s2 + $0x40] sm:$0xff]
  %v982 = vld [vmem:[%s2 + $0x48] sm:$0xff]
  %v983 = vld [vmem:[%s2 + $0x50] sm:$0xff]
  %v984 = vld [vmem:[%s2 + $0x58] sm:$0xff]
  %v985 = vld [vmem:[%s2 + $0x60] sm:$0xff]
  %v986 = vld [vmem:[%s2 + $0x68] sm:$0xff]
  %v987 = vld [vmem:[%s2 + $0x70] sm:$0xff]
  %v988 = vld [vmem:[%s2 + $0x78] sm:$0xff]
  %v989 = vld [vmem:[%s2 + $0x80] sm:$0xff]
  %v990 = vld [vmem:[%s2 + $0x88] sm:$0xff]
  %v991 = vld [vmem:[%s2 + $0x90] sm:$0xff]
  %v992 = vld [vmem:[%s2 + $0x98] sm:$0xff]
  %v993 = vld [vmem:[%s2 + $0xa0] sm:$0xff]
  %v994 = vld [vmem:[%s2 + $0xa8] sm:$0xff]
  %v995 = vld [vmem:[%s2 + $0xb0] sm:$0xff]
  %v996 = vld [vmem:[%s2 + $0xb8] sm:$0xff]
  %v997 = vld [vmem:[%s2 + $0xc0] sm:$0xff]
  %v998 = vld [vmem:[%s2 + $0xc8] sm:$0xff]
  %v999 = vld [vmem:[%s2 + $0xd0] sm:$0xff]
  %v1000 = vld [vmem:[%s2 + $0xd8] sm:$0xff]
  %v1001 = vld [vmem:[%s2 + $0xe0] sm:$0xff]
  %v1002 = vld [vmem:[%s2 + $0xe8] sm:$0xff]
  %v1003 = vld [vmem:[%s2 + $0xf0] sm:$0xff]
  %v1004 = vld [vmem:[%s2 + $0xf8] sm:$0xff]
  %v1037 = vunpack.c.l.b16 %v973
  %v1038 = vunpack.c.h.b16 %v973
  %v1039 = vunpack.c.l.b16 %v974
  %v1040 = vunpack.c.h.b16 %v974
  %v1041 = vunpack.c.l.b16 %v975
  %v1042 = vunpack.c.h.b16 %v975
  %v1043 = vunpack.c.l.b16 %v976
  %v1044 = vunpack.c.h.b16 %v976
  %v1045 = vunpack.c.l.b16 %v977
  %v1046 = vunpack.c.h.b16 %v977
  %v1047 = vunpack.c.l.b16 %v978
  %v1048 = vunpack.c.h.b16 %v978
  %v1049 = vunpack.c.l.b16 %v979
  %v1050 = vunpack.c.h.b16 %v979
  %v1051 = vunpack.c.l.b16 %v980
  %v1052 = vunpack.c.h.b16 %v980
  %v1053 = vunpack.c.l.b16 %v981
  %v1054 = vunpack.c.h.b16 %v981
  %v1055 = vunpack.c.l.b16 %v982
  %v1056 = vunpack.c.h.b16 %v982
  %v1057 = vunpack.c.l.b16 %v983
  %v1058 = vunpack.c.h.b16 %v983
  %v1059 = vunpack.c.l.b16 %v984
  %v1060 = vunpack.c.h.b16 %v984
  %v1061 = vunpack.c.l.b16 %v985
  %v1062 = vunpack.c.h.b16 %v985
  %v1063 = vunpack.c.l.b16 %v986
  %v1064 = vunpack.c.h.b16 %v986
  %v1065 = vunpack.c.l.b16 %v987
  %v1066 = vunpack.c.h.b16 %v987
  %v1067 = vunpack.c.l.b16 %v988
  %v1068 = vunpack.c.h.b16 %v988
  %v1069 = vunpack.c.l.b16 %v989
  %v1070 = vunpack.c.h.b16 %v989
  %v1071 = vunpack.c.l.b16 %v990
  %v1072 = vunpack.c.h.b16 %v990
  %v1073 = vunpack.c.l.b16 %v991
  %v1074 = vunpack.c.h.b16 %v991
  %v1075 = vunpack.c.l.b16 %v992
  %v1076 = vunpack.c.h.b16 %v992
  %v1077 = vunpack.c.l.b16 %v993
  %v1078 = vunpack.c.h.b16 %v993
  %v1079 = vunpack.c.l.b16 %v994
  %v1080 = vunpack.c.h.b16 %v994
  %v1081 = vunpack.c.l.b16 %v995
  %v1082 = vunpack.c.h.b16 %v995
  %v1083 = vunpack.c.l.b16 %v996
  %v1084 = vunpack.c.h.b16 %v996
  %v1085 = vunpack.c.l.b16 %v997
  %v1086 = vunpack.c.h.b16 %v997
  %v1087 = vunpack.c.l.b16 %v998
  %v1088 = vunpack.c.h.b16 %v998
  %v1089 = vunpack.c.l.b16 %v999
  %v1090 = vunpack.c.h.b16 %v999
  %v1091 = vunpack.c.l.b16 %v1000
  %v1092 = vunpack.c.h.b16 %v1000
  %v1093 = vunpack.c.l.b16 %v1001
  %v1094 = vunpack.c.h.b16 %v1001
  %v1095 = vunpack.c.l.b16 %v1002
  %v1096 = vunpack.c.h.b16 %v1002
  %v1097 = vunpack.c.l.b16 %v1003
  %v1098 = vunpack.c.h.b16 %v1003
  %v1099 = vunpack.c.l.b16 %v1004
  %v1100 = vunpack.c.h.b16 %v1004
  %v1101 = vpack.c.b16 %v1041, %v1037
  %v1102 = vpack.c.b16 %v1042, %v1038
  %v1103 = vpack.c.b16 %v1043, %v1039
  %v1104 = vpack.c.b16 %v1044, %v1040
  %v1105 = vpack.c.b16 %v1049, %v1045
  %v1106 = vpack.c.b16 %v1050, %v1046
  %v1107 = vpack.c.b16 %v1051, %v1047
  %v1108 = vpack.c.b16 %v1052, %v1048
  %v1109 = vpack.c.b16 %v1057, %v1053
  %v1110 = vpack.c.b16 %v1058, %v1054
  %v1111 = vpack.c.b16 %v1059, %v1055
  %v1112 = vpack.c.b16 %v1060, %v1056
  %v1113 = vpack.c.b16 %v1065, %v1061
  %v1114 = vpack.c.b16 %v1066, %v1062
  %v1115 = vpack.c.b16 %v1067, %v1063
  %v1116 = vpack.c.b16 %v1068, %v1064
  %v1117 = vpack.c.b16 %v1073, %v1069
  %v1118 = vpack.c.b16 %v1074, %v1070
  %v1119 = vpack.c.b16 %v1075, %v1071
  %v1120 = vpack.c.b16 %v1076, %v1072
  %v1121 = vpack.c.b16 %v1081, %v1077
  %v1122 = vpack.c.b16 %v1082, %v1078
  %v1123 = vpack.c.b16 %v1083, %v1079
  %v1124 = vpack.c.b16 %v1084, %v1080
  %v1125 = vpack.c.b16 %v1089, %v1085
  %v1126 = vpack.c.b16 %v1090, %v1086
  %v1127 = vpack.c.b16 %v1091, %v1087
  %v1128 = vpack.c.b16 %v1092, %v1088
  %v1129 = vpack.c.b16 %v1097, %v1093
  %v1130 = vpack.c.b16 %v1098, %v1094
  %v1131 = vpack.c.b16 %v1099, %v1095
  %v1132 = vpack.c.b16 %v1100, %v1096
  %1165 = vmatprep.subr.bf16.mxu0 %v1102
  %1166 = vmatpush1.bf16.msra.mxu0 %v1101
  %1167 = vmatprep.subr.bf16.mxu0 %v1106
  %1168 = vmatpush1.bf16.msra.mxu0 %v1105
  %1169 = vmatprep.subr.bf16.mxu0 %v1110
  %1170 = vmatpush1.bf16.msra.mxu0 %v1109
  %1171 = vmatprep.subr.bf16.mxu0 %v1114
  %1172 = vmatpush1.bf16.msra.mxu0 %v1113
  %1173 = vmatprep.subr.bf16.mxu0 %v1118
  %1174 = vmatpush1.bf16.msra.mxu0 %v1117
  %1175 = vmatprep.subr.bf16.mxu0 %v1122
  %1176 = vmatpush1.bf16.msra.mxu0 %v1121
  %1177 = vmatprep.subr.bf16.mxu0 %v1126
  %1178 = vmatpush1.bf16.msra.mxu0 %v1125
  %1179 = vmatprep.subr.bf16.mxu0 %v1130
  %1180 = vmatpush1.bf16.msra.mxu0 %v1129
  %1181 = vmatprep.subr.bf16.mxu0 0
  %1182 = vmatpush1.bf16.msra.mxu0 0
  %1183 = vmatprep.subr.bf16.mxu0 0
  %1184 = vmatpush1.bf16.msra.mxu0 0
  %1185 = vmatprep.subr.bf16.mxu0 0
  %1186 = vmatpush1.bf16.msra.mxu0 0
  %1187 = vmatprep.subr.bf16.mxu0 0
  %1188 = vmatpush1.bf16.msra.mxu0 0
  %1189 = vmatprep.subr.bf16.mxu0 0
  %1190 = vmatpush1.bf16.msra.mxu0 0
  %1191 = vmatprep.subr.bf16.mxu0 0
  %1192 = vmatpush1.bf16.msra.mxu0 0
  %1193 = vmatprep.subr.bf16.mxu0 0
  %1194 = vmatpush1.bf16.msra.mxu0 0
  %1195 = vmatprep.subr.bf16.mxu0 0
  %1196 = vmatpush1.bf16.msra.mxu0 0
  %1197 = vmatprep.mubr.bf16.mxu0 0
  %1198 = vmatmul.mubr.bf16.gmra.mrb[0].mxu0 %v972
  %v1199 = vpop.f32.mrb[0].mxu0
  %v1200 = vadd.f32 0.0, %v1199
  %v1201 = vpop.f32.mrb[0].mxu0
  %v1202 = vadd.f32 0.0, %v1201
  %v1203 = vpop.f32.mrb[0].mxu0
  %v1204 = vpop.f32.mrb[0].mxu0
  %1205 = vdwg.mxu0
  %1206 = vmatprep.subr.bf16.mxu0 %v1104
  %1207 = vmatpush1.bf16.msra.mxu0 %v1103
  %1208 = vmatprep.subr.bf16.mxu0 %v1108
  %1209 = vmatpush1.bf16.msra.mxu0 %v1107
  %1210 = vmatprep.subr.bf16.mxu0 %v1112
  %1211 = vmatpush1.bf16.msra.mxu0 %v1111
  %1212 = vmatprep.subr.bf16.mxu0 %v1116
  %1213 = vmatpush1.bf16.msra.mxu0 %v1115
  %1214 = vmatprep.subr.bf16.mxu0 %v1120
  %1215 = vmatpush1.bf16.msra.mxu0 %v1119
  %1216 = vmatprep.subr.bf16.mxu0 %v1124
  %1217 = vmatpush1.bf16.msra.mxu0 %v1123
  %1218 = vmatprep.subr.bf16.mxu0 %v1128
  %1219 = vmatpush1.bf16.msra.mxu0 %v1127
  %1220 = vmatprep.subr.bf16.mxu0 %v1132
  %1221 = vmatpush1.bf16.msra.mxu0 %v1131
  %1222 = vmatprep.subr.bf16.mxu0 0
  %1223 = vmatpush1.bf16.msra.mxu0 0
  %1224 = vmatprep.subr.bf16.mxu0 0
  %1225 = vmatpush1.bf16.msra.mxu0 0
  %1226 = vmatprep.subr.bf16.mxu0 0
  %1227 = vmatpush1.bf16.msra.mxu0 0
  %1228 = vmatprep.subr.bf16.mxu0 0
  %1229 = vmatpush1.bf16.msra.mxu0 0
  %1230 = vmatprep.subr.bf16.mxu0 0
  %1231 = vmatpush1.bf16.msra.mxu0 0
  %1232 = vmatprep.subr.bf16.mxu0 0
  %1233 = vmatpush1.bf16.msra.mxu0 0
  %1234 = vmatprep.subr.bf16.mxu0 0
  %1235 = vmatpush1.bf16.msra.mxu0 0
  %1236 = vmatprep.subr.bf16.mxu0 0
  %1237 = vmatpush1.bf16.msra.mxu0 0
  %1238 = vmatprep.mubr.bf16.mxu0 0
  %1239 = vmatmul.mubr.bf16.gmra.mrb[0].mxu0 %v972
  %v1240 = vpop.f32.mrb[0].mxu0
  %v1241 = vadd.f32 0.0, %v1240
  %v1242 = vpop.f32.mrb[0].mxu0
  %v1243 = vadd.f32 0.0, %v1242
  %v1244 = vpop.f32.mrb[0].mxu0
  %v1245 = vpop.f32.mrb[0].mxu0
  %1246 = vdwg.mxu0
  %v1247 = vadd.f32 %v968, %v1200
  %v1248 = vadd.f32 %v969, %v1202
  %v1249 = vadd.f32 %v970, %v1241
  %v1250 = vadd.f32 %v971, %v1243
  %v1251 = vxor.u32 %v1247, 2147483648
  %v1252 = vmul.f32 %v1251, 1.442695
  %v1253 = vpow.pop %v1252
  %v1254 = vadd.f32 %v1253, 1.0
  %v1255 = vrcp.pop %v1254
  %v1256 = vmul.f32 1.0, %v1255
  %v1257 = vxor.u32 %v1248, 2147483648
  %v1258 = vmul.f32 %v1257, 1.442695
  %v1259 = vpow.pop %v1258
  %v1260 = vadd.f32 %v1259, 1.0
  %v1261 = vrcp.pop %v1260
  %v1262 = vmul.f32 1.0, %v1261
  %v1263 = vtanh.pop %v1249
  %v1264 = vxor.u32 %v1250, 2147483648
  %v1265 = vmul.f32 %v1264, 1.442695
  %v1266 = vpow.pop %v1265
  %v1267 = vadd.f32 %v1266, 1.0
  %v1268 = vrcp.pop %v1267
  %v1269 = vmul.f32 1.0, %v1268
  %v1270 = vmul.f32 %v1262, %v957
  %v1271 = vmul.f32 %v1256, %v1263
  %v1272 = vadd.f32 %v1270, %v1271
  %v1273 = vtanh.pop %v1272
  %v1274 = vmul.f32 %v1269, %v1273
  %s1275 = scalar_lea.vmem %s1, 24
  %v1276 = vld [vmem:[%s1275] sm:$0xff]
  %v1277 = vadd.f32 %v1274, %v1276
  %s1278 = scalar_lea.vmem %s3, 24
  %1279 = vst [vmem:[%s1278] sm:$0xff] %v1277
  %s1280 = scalar_lea.vmem %s0, 64
  %v1281 = vld [vmem:[%s1280] sm:$0xff]
  %v1282 = vld [vmem:[%s1280 + $0x8] sm:$0xff]
  %v1283 = vunpack.c.l.bf16 %v1281
  %v1284 = vunpack.c.h.bf16 %v1281
  %v1285 = vunpack.c.l.bf16 %v1282
  %v1286 = vunpack.c.h.bf16 %v1282
  %v1287 = vpack.c.bf16 %v1274, %v1274
  %v1288 = vld [vmem:[%s2] sm:$0xff]
  %v1289 = vld [vmem:[%s2 + $0x8] sm:$0xff]
  %v1290 = vld [vmem:[%s2 + $0x10] sm:$0xff]
  %v1291 = vld [vmem:[%s2 + $0x18] sm:$0xff]
  %v1292 = vld [vmem:[%s2 + $0x20] sm:$0xff]
  %v1293 = vld [vmem:[%s2 + $0x28] sm:$0xff]
  %v1294 = vld [vmem:[%s2 + $0x30] sm:$0xff]
  %v1295 = vld [vmem:[%s2 + $0x38] sm:$0xff]
  %v1296 = vld [vmem:[%s2 + $0x40] sm:$0xff]
  %v1297 = vld [vmem:[%s2 + $0x48] sm:$0xff]
  %v1298 = vld [vmem:[%s2 + $0x50] sm:$0xff]
  %v1299 = vld [vmem:[%s2 + $0x58] sm:$0xff]
  %v1300 = vld [vmem:[%s2 + $0x60] sm:$0xff]
  %v1301 = vld [vmem:[%s2 + $0x68] sm:$0xff]
  %v1302 = vld [vmem:[%s2 + $0x70] sm:$0xff]
  %v1303 = vld [vmem:[%s2 + $0x78] sm:$0xff]
  %v1304 = vld [vmem:[%s2 + $0x80] sm:$0xff]
  %v1305 = vld [vmem:[%s2 + $0x88] sm:$0xff]
  %v1306 = vld [vmem:[%s2 + $0x90] sm:$0xff]
  %v1307 = vld [vmem:[%s2 + $0x98] sm:$0xff]
  %v1308 = vld [vmem:[%s2 + $0xa0] sm:$0xff]
  %v1309 = vld [vmem:[%s2 + $0xa8] sm:$0xff]
  %v1310 = vld [vmem:[%s2 + $0xb0] sm:$0xff]
  %v1311 = vld [vmem:[%s2 + $0xb8] sm:$0xff]
  %v1312 = vld [vmem:[%s2 + $0xc0] sm:$0xff]
  %v1313 = vld [vmem:[%s2 + $0xc8] sm:$0xff]
  %v1314 = vld [vmem:[%s2 + $0xd0] sm:$0xff]
  %v1315 = vld [vmem:[%s2 + $0xd8] sm:$0xff]
  %v1316 = vld [vmem:[%s2 + $0xe0] sm:$0xff]
  %v1317 = vld [vmem:[%s2 + $0xe8] sm:$0xff]
  %v1318 = vld [vmem:[%s2 + $0xf0] sm:$0xff]
  %v1319 = vld [vmem:[%s2 + $0xf8] sm:$0xff]
  %v1352 = vunpack.c.l.b16 %v1288
  %v1353 = vunpack.c.h.b16 %v1288
  %v1354 = vunpack.c.l.b16 %v1289
  %v1355 = vunpack.c.h.b16 %v1289
  %v1356 = vunpack.c.l.b16 %v1290
  %v1357 = vunpack.c.h.b16 %v1290
  %v1358 = vunpack.c.l.b16 %v1291
  %v1359 = vunpack.c.h.b16 %v1291
  %v1360 = vunpack.c.l.b16 %v1292
  %v1361 = vunpack.c.h.b16 %v1292
  %v1362 = vunpack.c.l.b16 %v1293
  %v1363 = vunpack.c.h.b16 %v1293
  %v1364 = vunpack.c.l.b16 %v1294
  %v1365 = vunpack.c.h.b16 %v1294
  %v1366 = vunpack.c.l.b16 %v1295
  %v1367 = vunpack.c.h.b16 %v1295
  %v1368 = vunpack.c.l.b16 %v1296
  %v1369 = vunpack.c.h.b16 %v1296
  %v1370 = vunpack.c.l.b16 %v1297
  %v1371 = vunpack.c.h.b16 %v1297
  %v1372 = vunpack.c.l.b16 %v1298
  %v1373 = vunpack.c.h.b16 %v1298
  %v1374 = vunpack.c.l.b16 %v1299
  %v1375 = vunpack.c.h.b16 %v1299
  %v1376 = vunpack.c.l.b16 %v1300
  %v1377 = vunpack.c.h.b16 %v1300
  %v1378 = vunpack.c.l.b16 %v1301
  %v1379 = vunpack.c.h.b16 %v1301
  %v1380 = vunpack.c.l.b16 %v1302
  %v1381 = vunpack.c.h.b16 %v1302
  %v1382 = vunpack.c.l.b16 %v1303
  %v1383 = vunpack.c.h.b16 %v1303
  %v1384 = vunpack.c.l.b16 %v1304
  %v1385 = vunpack.c.h.b16 %v1304
  %v1386 = vunpack.c.l.b16 %v1305
  %v1387 = vunpack.c.h.b16 %v1305
  %v1388 = vunpack.c.l.b16 %v1306
  %v1389 = vunpack.c.h.b16 %v1306
  %v1390 = vunpack.c.l.b16 %v1307
  %v1391 = vunpack.c.h.b16 %v1307
  %v1392 = vunpack.c.l.b16 %v1308
  %v1393 = vunpack.c.h.b16 %v1308
  %v1394 = vunpack.c.l.b16 %v1309
  %v1395 = vunpack.c.h.b16 %v1309
  %v1396 = vunpack.c.l.b16 %v1310
  %v1397 = vunpack.c.h.b16 %v1310
  %v1398 = vunpack.c.l.b16 %v1311
  %v1399 = vunpack.c.h.b16 %v1311
  %v1400 = vunpack.c.l.b16 %v1312
  %v1401 = vunpack.c.h.b16 %v1312
  %v1402 = vunpack.c.l.b16 %v1313
  %v1403 = vunpack.c.h.b16 %v1313
  %v1404 = vunpack.c.l.b16 %v1314
  %v1405 = vunpack.c.h.b16 %v1314
  %v1406 = vunpack.c.l.b16 %v1315
  %v1407 = vunpack.c.h.b16 %v1315
  %v1408 = vunpack.c.l.b16 %v1316
  %v1409 = vunpack.c.h.b16 %v1316
  %v1410 = vunpack.c.l.b16 %v1317
  %v1411 = vunpack.c.h.b16 %v1317
  %v1412 = vunpack.c.l.b16 %v1318
  %v1413 = vunpack.c.h.b16 %v1318
  %v1414 = vunpack.c.l.b16 %v1319
  %v1415 = vunpack.c.h.b16 %v1319
  %v1416 = vpack.c.b16 %v1356, %v1352
  %v1417 = vpack.c.b16 %v1357, %v1353
  %v1418 = vpack.c.b16 %v1358, %v1354
  %v1419 = vpack.c.b16 %v1359, %v1355
  %v1420 = vpack.c.b16 %v1364, %v1360
  %v1421 = vpack.c.b16 %v1365, %v1361
  %v1422 = vpack.c.b16 %v1366, %v1362
  %v1423 = vpack.c.b16 %v1367, %v1363
  %v1424 = vpack.c.b16 %v1372, %v1368
  %v1425 = vpack.c.b16 %v1373, %v1369
  %v1426 = vpack.c.b16 %v1374, %v1370
  %v1427 = vpack.c.b16 %v1375, %v1371
  %v1428 = vpack.c.b16 %v1380, %v1376
  %v1429 = vpack.c.b16 %v1381, %v1377
  %v1430 = vpack.c.b16 %v1382, %v1378
  %v1431 = vpack.c.b16 %v1383, %v1379
  %v1432 = vpack.c.b16 %v1388, %v1384
  %v1433 = vpack.c.b16 %v1389, %v1385
  %v1434 = vpack.c.b16 %v1390, %v1386
  %v1435 = vpack.c.b16 %v1391, %v1387
  %v1436 = vpack.c.b16 %v1396, %v1392
  %v1437 = vpack.c.b16 %v1397, %v1393
  %v1438 = vpack.c.b16 %v1398, %v1394
  %v1439 = vpack.c.b16 %v1399, %v1395
  %v1440 = vpack.c.b16 %v1404, %v1400
  %v1441 = vpack.c.b16 %v1405, %v1401
  %v1442 = vpack.c.b16 %v1406, %v1402
  %v1443 = vpack.c.b16 %v1407, %v1403
  %v1444 = vpack.c.b16 %v1412, %v1408
  %v1445 = vpack.c.b16 %v1413, %v1409
  %v1446 = vpack.c.b16 %v1414, %v1410
  %v1447 = vpack.c.b16 %v1415, %v1411
  %1480 = vmatprep.subr.bf16.mxu0 %v1417
  %1481 = vmatpush1.bf16.msra.mxu0 %v1416
  %1482 = vmatprep.subr.bf16.mxu0 %v1421
  %1483 = vmatpush1.bf16.msra.mxu0 %v1420
  %1484 = vmatprep.subr.bf16.mxu0 %v1425
  %1485 = vmatpush1.bf16.msra.mxu0 %v1424
  %1486 = vmatprep.subr.bf16.mxu0 %v1429
  %1487 = vmatpush1.bf16.msra.mxu0 %v1428
  %1488 = vmatprep.subr.bf16.mxu0 %v1433
  %1489 = vmatpush1.bf16.msra.mxu0 %v1432
  %1490 = vmatprep.subr.bf16.mxu0 %v1437
  %1491 = vmatpush1.bf16.msra.mxu0 %v1436
  %1492 = vmatprep.subr.bf16.mxu0 %v1441
  %1493 = vmatpush1.bf16.msra.mxu0 %v1440
  %1494 = vmatprep.subr.bf16.mxu0 %v1445
  %1495 = vmatpush1.bf16.msra.mxu0 %v1444
  %1496 = vmatprep.subr.bf16.mxu0 0
  %1497 = vmatpush1.bf16.msra.mxu0 0
  %1498 = vmatprep.subr.bf16.mxu0 0
  %1499 = vmatpush1.bf16.msra.mxu0 0
  %1500 = vmatprep.subr.bf16.mxu0 0
  %1501 = vmatpush1.bf16.msra.mxu0 0
  %1502 = vmatprep.subr.bf16.mxu0 0
  %1503 = vmatpush1.bf16.msra.mxu0 0
  %1504 = vmatprep.subr.bf16.mxu0 0
  %1505 = vmatpush1.bf16.msra.mxu0 0
  %1506 = vmatprep.subr.bf16.mxu0 0
  %1507 = vmatpush1.bf16.msra.mxu0 0
  %1508 = vmatprep.subr.bf16.mxu0 0
  %1509 = vmatpush1.bf16.msra.mxu0 0
  %1510 = vmatprep.subr.bf16.mxu0 0
  %1511 = vmatpush1.bf16.msra.mxu0 0
  %1512 = vmatprep.mubr.bf16.mxu0 0
  %1513 = vmatmul.mubr.bf16.gmra.mrb[0].mxu0 %v1287
  %v1514 = vpop.f32.mrb[0].mxu0
  %v1515 = vadd.f32 0.0, %v1514
  %v1516 = vpop.f32.mrb[0].mxu0
  %v1517 = vadd.f32 0.0, %v1516
  %v1518 = vpop.f32.mrb[0].mxu0
  %v1519 = vpop.f32.mrb[0].mxu0
  %1520 = vdwg.mxu0
  %1521 = vmatprep.subr.bf16.mxu0 %v1419
  %1522 = vmatpush1.bf16.msra.mxu0 %v1418
  %1523 = vmatprep.subr.bf16.mxu0 %v1423
  %1524 = vmatpush1.bf16.msra.mxu0 %v1422
  %1525 = vmatprep.subr.bf16.mxu0 %v1427
  %1526 = vmatpush1.bf16.msra.mxu0 %v1426
  %1527 = vmatprep.subr.bf16.mxu0 %v1431
  %1528 = vmatpush1.bf16.msra.mxu0 %v1430
  %1529 = vmatprep.subr.bf16.mxu0 %v1435
  %1530 = vmatpush1.bf16.msra.mxu0 %v1434
  %1531 = vmatprep.subr.bf16.mxu0 %v1439
  %1532 = vmatpush1.bf16.msra.mxu0 %v1438
  %1533 = vmatprep.subr.bf16.mxu0 %v1443
  %1534 = vmatpush1.bf16.msra.mxu0 %v1442
  %1535 = vmatprep.subr.bf16.mxu0 %v1447
  %1536 = vmatpush1.bf16.msra.mxu0 %v1446
  %1537 = vmatprep.subr.bf16.mxu0 0
  %1538 = vmatpush1.bf16.msra.mxu0 0
  %1539 = vmatprep.subr.bf16.mxu0 0
  %1540 = vmatpush1.bf16.msra.mxu0 0
  %1541 = vmatprep.subr.bf16.mxu0 0
  %1542 = vmatpush1.bf16.msra.mxu0 0
  %1543 = vmatprep.subr.bf16.mxu0 0
  %1544 = vmatpush1.bf16.msra.mxu0 0
  %1545 = vmatprep.subr.bf16.mxu0 0
  %1546 = vmatpush1.bf16.msra.mxu0 0
  %1547 = vmatprep.subr.bf16.mxu0 0
  %1548 = vmatpush1.bf16.msra.mxu0 0
  %1549 = vmatprep.subr.bf16.mxu0 0
  %1550 = vmatpush1.bf16.msra.mxu0 0
  %1551 = vmatprep.subr.bf16.mxu0 0
  %1552 = vmatpush1.bf16.msra.mxu0 0
  %1553 = vmatprep.mubr.bf16.mxu0 0
  %1554 = vmatmul.mubr.bf16.gmra.mrb[0].mxu0 %v1287
  %v1555 = vpop.f32.mrb[0].mxu0
  %v1556 = vadd.f32 0.0, %v1555
  %v1557 = vpop.f32.mrb[0].mxu0
  %v1558 = vadd.f32 0.0, %v1557
  %v1559 = vpop.f32.mrb[0].mxu0
  %v1560 = vpop.f32.mrb[0].mxu0
  %1561 = vdwg.mxu0
  %v1562 = vadd.f32 %v1283, %v1515
  %v1563 = vadd.f32 %v1284, %v1517
  %v1564 = vadd.f32 %v1285, %v1556
  %v1565 = vadd.f32 %v1286, %v1558
  %v1566 = vxor.u32 %v1562, 2147483648
  %v1567 = vmul.f32 %v1566, 1.442695
  %v1568 = vpow.pop %v1567
  %v1569 = vadd.f32 %v1568, 1.0
  %v1570 = vrcp.pop %v1569
  %v1571 = vmul.f32 1.0, %v1570
  %v1572 = vxor.u32 %v1563, 2147483648
  %v1573 = vmul.f32 %v1572, 1.442695
  %v1574 = vpow.pop %v1573
  %v1575 = vadd.f32 %v1574, 1.0
  %v1576 = vrcp.pop %v1575
  %v1577 = vmul.f32 1.0, %v1576
  %v1578 = vtanh.pop %v1564
  %v1579 = vxor.u32 %v1565, 2147483648
  %v1580 = vmul.f32 %v1579, 1.442695
  %v1581 = vpow.pop %v1580
  %v1582 = vadd.f32 %v1581, 1.0
  %v1583 = vrcp.pop %v1582
  %v1584 = vmul.f32 1.0, %v1583
  %v1585 = vmul.f32 %v1577, %v1272
  %v1586 = vmul.f32 %v1571, %v1578
  %v1587 = vadd.f32 %v1585, %v1586
  %v1588 = vtanh.pop %v1587
  %v1589 = vmul.f32 %v1584, %v1588
  %s1590 = scalar_lea.vmem %s1, 32
  %v1591 = vld [vmem:[%s1590] sm:$0xff]
  %v1592 = vadd.f32 %v1589, %v1591
  %s1593 = scalar_lea.vmem %s3, 32
  %1594 = vst [vmem:[%s1593] sm:$0xff] %v1592
  %s1595 = scalar_lea.vmem %s0, 80
  %v1596 = vld [vmem:[%s1595] sm:$0xff]
  %v1597 = vld [vmem:[%s1595 + $0x8] sm:$0xff]
  %v1598 = vunpack.c.l.bf16 %v1596
  %v1599 = vunpack.c.h.bf16 %v1596
  %v1600 = vunpack.c.l.bf16 %v1597
  %v1601 = vunpack.c.h.bf16 %v1597
  %v1602 = vpack.c.bf16 %v1589, %v1589
  %v1603 = vld [vmem:[%s2] sm:$0xff]
  %v1604 = vld [vmem:[%s2 + $0x8] sm:$0xff]
  %v1605 = vld [vmem:[%s2 + $0x10] sm:$0xff]
  %v1606 = vld [vmem:[%s2 + $0x18] sm:$0xff]
  %v1607 = vld [vmem:[%s2 + $0x20] sm:$0xff]
  %v1608 = vld [vmem:[%s2 + $0x28] sm:$0xff]
  %v1609 = vld [vmem:[%s2 + $0x30] sm:$0xff]
  %v1610 = vld [vmem:[%s2 + $0x38] sm:$0xff]
  %v1611 = vld [vmem:[%s2 + $0x40] sm:$0xff]
  %v1612 = vld [vmem:[%s2 + $0x48] sm:$0xff]
  %v1613 = vld [vmem:[%s2 + $0x50] sm:$0xff]
  %v1614 = vld [vmem:[%s2 + $0x58] sm:$0xff]
  %v1615 = vld [vmem:[%s2 + $0x60] sm:$0xff]
  %v1616 = vld [vmem:[%s2 + $0x68] sm:$0xff]
  %v1617 = vld [vmem:[%s2 + $0x70] sm:$0xff]
  %v1618 = vld [vmem:[%s2 + $0x78] sm:$0xff]
  %v1619 = vld [vmem:[%s2 + $0x80] sm:$0xff]
  %v1620 = vld [vmem:[%s2 + $0x88] sm:$0xff]
  %v1621 = vld [vmem:[%s2 + $0x90] sm:$0xff]
  %v1622 = vld [vmem:[%s2 + $0x98] sm:$0xff]
  %v1623 = vld [vmem:[%s2 + $0xa0] sm:$0xff]
  %v1624 = vld [vmem:[%s2 + $0xa8] sm:$0xff]
  %v1625 = vld [vmem:[%s2 + $0xb0] sm:$0xff]
  %v1626 = vld [vmem:[%s2 + $0xb8] sm:$0xff]
  %v1627 = vld [vmem:[%s2 + $0xc0] sm:$0xff]
  %v1628 = vld [vmem:[%s2 + $0xc8] sm:$0xff]
  %v1629 = vld [vmem:[%s2 + $0xd0] sm:$0xff]
  %v1630 = vld [vmem:[%s2 + $0xd8] sm:$0xff]
  %v1631 = vld [vmem:[%s2 + $0xe0] sm:$0xff]
  %v1632 = vld [vmem:[%s2 + $0xe8] sm:$0xff]
  %v1633 = vld [vmem:[%s2 + $0xf0] sm:$0xff]
  %v1634 = vld [vmem:[%s2 + $0xf8] sm:$0xff]
  %v1667 = vunpack.c.l.b16 %v1603
  %v1668 = vunpack.c.h.b16 %v1603
  %v1669 = vunpack.c.l.b16 %v1604
  %v1670 = vunpack.c.h.b16 %v1604
  %v1671 = vunpack.c.l.b16 %v1605
  %v1672 = vunpack.c.h.b16 %v1605
  %v1673 = vunpack.c.l.b16 %v1606
  %v1674 = vunpack.c.h.b16 %v1606
  %v1675 = vunpack.c.l.b16 %v1607
  %v1676 = vunpack.c.h.b16 %v1607
  %v1677 = vunpack.c.l.b16 %v1608
  %v1678 = vunpack.c.h.b16 %v1608
  %v1679 = vunpack.c.l.b16 %v1609
  %v1680 = vunpack.c.h.b16 %v1609
  %v1681 = vunpack.c.l.b16 %v1610
  %v1682 = vunpack.c.h.b16 %v1610
  %v1683 = vunpack.c.l.b16 %v1611
  %v1684 = vunpack.c.h.b16 %v1611
  %v1685 = vunpack.c.l.b16 %v1612
  %v1686 = vunpack.c.h.b16 %v1612
  %v1687 = vunpack.c.l.b16 %v1613
  %v1688 = vunpack.c.h.b16 %v1613
  %v1689 = vunpack.c.l.b16 %v1614
  %v1690 = vunpack.c.h.b16 %v1614
  %v1691 = vunpack.c.l.b16 %v1615
  %v1692 = vunpack.c.h.b16 %v1615
  %v1693 = vunpack.c.l.b16 %v1616
  %v1694 = vunpack.c.h.b16 %v1616
  %v1695 = vunpack.c.l.b16 %v1617
  %v1696 = vunpack.c.h.b16 %v1617
  %v1697 = vunpack.c.l.b16 %v1618
  %v1698 = vunpack.c.h.b16 %v1618
  %v1699 = vunpack.c.l.b16 %v1619
  %v1700 = vunpack.c.h.b16 %v1619
  %v1701 = vunpack.c.l.b16 %v1620
  %v1702 = vunpack.c.h.b16 %v1620
  %v1703 = vunpack.c.l.b16 %v1621
  %v1704 = vunpack.c.h.b16 %v1621
  %v1705 = vunpack.c.l.b16 %v1622
  %v1706 = vunpack.c.h.b16 %v1622
  %v1707 = vunpack.c.l.b16 %v1623
  %v1708 = vunpack.c.h.b16 %v1623
  %v1709 = vunpack.c.l.b16 %v1624
  %v1710 = vunpack.c.h.b16 %v1624
  %v1711 = vunpack.c.l.b16 %v1625
  %v1712 = vunpack.c.h.b16 %v1625
  %v1713 = vunpack.c.l.b16 %v1626
  %v1714 = vunpack.c.h.b16 %v1626
  %v1715 = vunpack.c.l.b16 %v1627
  %v1716 = vunpack.c.h.b16 %v1627
  %v1717 = vunpack.c.l.b16 %v1628
  %v1718 = vunpack.c.h.b16 %v1628
  %v1719 = vunpack.c.l.b16 %v1629
  %v1720 = vunpack.c.h.b16 %v1629
  %v1721 = vunpack.c.l.b16 %v1630
  %v1722 = vunpack.c.h.b16 %v1630
  %v1723 = vunpack.c.l.b16 %v1631
  %v1724 = vunpack.c.h.b16 %v1631
  %v1725 = vunpack.c.l.b16 %v1632
  %v1726 = vunpack.c.h.b16 %v1632
  %v1727 = vunpack.c.l.b16 %v1633
  %v1728 = vunpack.c.h.b16 %v1633
  %v1729 = vunpack.c.l.b16 %v1634
  %v1730 = vunpack.c.h.b16 %v1634
  %v1731 = vpack.c.b16 %v1671, %v1667
  %v1732 = vpack.c.b16 %v1672, %v1668
  %v1733 = vpack.c.b16 %v1673, %v1669
  %v1734 = vpack.c.b16 %v1674, %v1670
  %v1735 = vpack.c.b16 %v1679, %v1675
  %v1736 = vpack.c.b16 %v1680, %v1676
  %v1737 = vpack.c.b16 %v1681, %v1677
  %v1738 = vpack.c.b16 %v1682, %v1678
  %v1739 = vpack.c.b16 %v1687, %v1683
  %v1740 = vpack.c.b16 %v1688, %v1684
  %v1741 = vpack.c.b16 %v1689, %v1685
  %v1742 = vpack.c.b16 %v1690, %v1686
  %v1743 = vpack.c.b16 %v1695, %v1691
  %v1744 = vpack.c.b16 %v1696, %v1692
  %v1745 = vpack.c.b16 %v1697, %v1693
  %v1746 = vpack.c.b16 %v1698, %v1694
  %v1747 = vpack.c.b16 %v1703, %v1699
  %v1748 = vpack.c.b16 %v1704, %v1700
  %v1749 = vpack.c.b16 %v1705, %v1701
  %v1750 = vpack.c.b16 %v1706, %v1702
  %v1751 = vpack.c.b16 %v1711, %v1707
  %v1752 = vpack.c.b16 %v1712, %v1708
  %v1753 = vpack.c.b16 %v1713, %v1709
  %v1754 = vpack.c.b16 %v1714, %v1710
  %v1755 = vpack.c.b16 %v1719, %v1715
  %v1756 = vpack.c.b16 %v1720, %v1716
  %v1757 = vpack.c.b16 %v1721, %v1717
  %v1758 = vpack.c.b16 %v1722, %v1718
  %v1759 = vpack.c.b16 %v1727, %v1723
  %v1760 = vpack.c.b16 %v1728, %v1724
  %v1761 = vpack.c.b16 %v1729, %v1725
  %v1762 = vpack.c.b16 %v1730, %v1726
  %1795 = vmatprep.subr.bf16.mxu0 %v1732
  %1796 = vmatpush1.bf16.msra.mxu0 %v1731
  %1797 = vmatprep.subr.bf16.mxu0 %v1736
  %1798 = vmatpush1.bf16.msra.mxu0 %v1735
  %1799 = vmatprep.subr.bf16.mxu0 %v1740
  %1800 = vmatpush1.bf16.msra.mxu0 %v1739
  %1801 = vmatprep.subr.bf16.mxu0 %v1744
  %1802 = vmatpush1.bf16.msra.mxu0 %v1743
  %1803 = vmatprep.subr.bf16.mxu0 %v1748
  %1804 = vmatpush1.bf16.msra.mxu0 %v1747
  %1805 = vmatprep.subr.bf16.mxu0 %v1752
  %1806 = vmatpush1.bf16.msra.mxu0 %v1751
  %1807 = vmatprep.subr.bf16.mxu0 %v1756
  %1808 = vmatpush1.bf16.msra.mxu0 %v1755
  %1809 = vmatprep.subr.bf16.mxu0 %v1760
  %1810 = vmatpush1.bf16.msra.mxu0 %v1759
  %1811 = vmatprep.subr.bf16.mxu0 0
  %1812 = vmatpush1.bf16.msra.mxu0 0
  %1813 = vmatprep.subr.bf16.mxu0 0
  %1814 = vmatpush1.bf16.msra.mxu0 0
  %1815 = vmatprep.subr.bf16.mxu0 0
  %1816 = vmatpush1.bf16.msra.mxu0 0
  %1817 = vmatprep.subr.bf16.mxu0 0
  %1818 = vmatpush1.bf16.msra.mxu0 0
  %1819 = vmatprep.subr.bf16.mxu0 0
  %1820 = vmatpush1.bf16.msra.mxu0 0
  %1821 = vmatprep.subr.bf16.mxu0 0
  %1822 = vmatpush1.bf16.msra.mxu0 0
  %1823 = vmatprep.subr.bf16.mxu0 0
  %1824 = vmatpush1.bf16.msra.mxu0 0
  %1825 = vmatprep.subr.bf16.mxu0 0
  %1826 = vmatpush1.bf16.msra.mxu0 0
  %1827 = vmatprep.mubr.bf16.mxu0 0
  %1828 = vmatmul.mubr.bf16.gmra.mrb[0].mxu0 %v1602
  %v1829 = vpop.f32.mrb[0].mxu0
  %v1830 = vadd.f32 0.0, %v1829
  %v1831 = vpop.f32.mrb[0].mxu0
  %v1832 = vadd.f32 0.0, %v1831
  %v1833 = vpop.f32.mrb[0].mxu0
  %v1834 = vpop.f32.mrb[0].mxu0
  %1835 = vdwg.mxu0
  %1836 = vmatprep.subr.bf16.mxu0 %v1734
  %1837 = vmatpush1.bf16.msra.mxu0 %v1733
  %1838 = vmatprep.subr.bf16.mxu0 %v1738
  %1839 = vmatpush1.bf16.msra.mxu0 %v1737
  %1840 = vmatprep.subr.bf16.mxu0 %v1742
  %1841 = vmatpush1.bf16.msra.mxu0 %v1741
  %1842 = vmatprep.subr.bf16.mxu0 %v1746
  %1843 = vmatpush1.bf16.msra.mxu0 %v1745
  %1844 = vmatprep.subr.bf16.mxu0 %v1750
  %1845 = vmatpush1.bf16.msra.mxu0 %v1749
  %1846 = vmatprep.subr.bf16.mxu0 %v1754
  %1847 = vmatpush1.bf16.msra.mxu0 %v1753
  %1848 = vmatprep.subr.bf16.mxu0 %v1758
  %1849 = vmatpush1.bf16.msra.mxu0 %v1757
  %1850 = vmatprep.subr.bf16.mxu0 %v1762
  %1851 = vmatpush1.bf16.msra.mxu0 %v1761
  %1852 = vmatprep.subr.bf16.mxu0 0
  %1853 = vmatpush1.bf16.msra.mxu0 0
  %1854 = vmatprep.subr.bf16.mxu0 0
  %1855 = vmatpush1.bf16.msra.mxu0 0
  %1856 = vmatprep.subr.bf16.mxu0 0
  %1857 = vmatpush1.bf16.msra.mxu0 0
  %1858 = vmatprep.subr.bf16.mxu0 0
  %1859 = vmatpush1.bf16.msra.mxu0 0
  %1860 = vmatprep.subr.bf16.mxu0 0
  %1861 = vmatpush1.bf16.msra.mxu0 0
  %1862 = vmatprep.subr.bf16.mxu0 0
  %1863 = vmatpush1.bf16.msra.mxu0 0
  %1864 = vmatprep.subr.bf16.mxu0 0
  %1865 = vmatpush1.bf16.msra.mxu0 0
  %1866 = vmatprep.subr.bf16.mxu0 0
  %1867 = vmatpush1.bf16.msra.mxu0 0
  %1868 = vmatprep.mubr.bf16.mxu0 0
  %1869 = vmatmul.mubr.bf16.gmra.mrb[0].mxu0 %v1602
  %v1870 = vpop.f32.mrb[0].mxu0
  %v1871 = vadd.f32 0.0, %v1870
  %v1872 = vpop.f32.mrb[0].mxu0
  %v1873 = vadd.f32 0.0, %v1872
  %v1874 = vpop.f32.mrb[0].mxu0
  %v1875 = vpop.f32.mrb[0].mxu0
  %1876 = vdwg.mxu0
  %v1877 = vadd.f32 %v1598, %v1830
  %v1878 = vadd.f32 %v1599, %v1832
  %v1879 = vadd.f32 %v1600, %v1871
  %v1880 = vadd.f32 %v1601, %v1873
  %v1881 = vxor.u32 %v1877, 2147483648
  %v1882 = vmul.f32 %v1881, 1.442695
  %v1883 = vpow.pop %v1882
  %v1884 = vadd.f32 %v1883, 1.0
  %v1885 = vrcp.pop %v1884
  %v1886 = vmul.f32 1.0, %v1885
  %v1887 = vxor.u32 %v1878, 2147483648
  %v1888 = vmul.f32 %v1887, 1.442695
  %v1889 = vpow.pop %v1888
  %v1890 = vadd.f32 %v1889, 1.0
  %v1891 = vrcp.pop %v1890
  %v1892 = vmul.f32 1.0, %v1891
  %v1893 = vtanh.pop %v1879
  %v1894 = vxor.u32 %v1880, 2147483648
  %v1895 = vmul.f32 %v1894, 1.442695
  %v1896 = vpow.pop %v1895
  %v1897 = vadd.f32 %v1896, 1.0
  %v1898 = vrcp.pop %v1897
  %v1899 = vmul.f32 1.0, %v1898
  %v1900 = vmul.f32 %v1892, %v1587
  %v1901 = vmul.f32 %v1886, %v1893
  %v1902 = vadd.f32 %v1900, %v1901
  %v1903 = vtanh.pop %v1902
  %v1904 = vmul.f32 %v1899, %v1903
  %s1905 = scalar_lea.vmem %s1, 40
  %v1906 = vld [vmem:[%s1905] sm:$0xff]
  %v1907 = vadd.f32 %v1904, %v1906
  %s1908 = scalar_lea.vmem %s3, 40
  %1909 = vst [vmem:[%s1908] sm:$0xff] %v1907
  %s1910 = scalar_lea.vmem %s0, 96
  %v1911 = vld [vmem:[%s1910] sm:$0xff]
  %v1912 = vld [vmem:[%s1910 + $0x8] sm:$0xff]
  %v1913 = vunpack.c.l.bf16 %v1911
  %v1914 = vunpack.c.h.bf16 %v1911
  %v1915 = vunpack.c.l.bf16 %v1912
  %v1916 = vunpack.c.h.bf16 %v1912
  %v1917 = vpack.c.bf16 %v1904, %v1904
  %v1918 = vld [vmem:[%s2] sm:$0xff]
  %v1919 = vld [vmem:[%s2 + $0x8] sm:$0xff]
  %v1920 = vld [vmem:[%s2 + $0x10] sm:$0xff]
  %v1921 = vld [vmem:[%s2 + $0x18] sm:$0xff]
  %v1922 = vld [vmem:[%s2 + $0x20] sm:$0xff]
  %v1923 = vld [vmem:[%s2 + $0x28] sm:$0xff]
  %v1924 = vld [vmem:[%s2 + $0x30] sm:$0xff]
  %v1925 = vld [vmem:[%s2 + $0x38] sm:$0xff]
  %v1926 = vld [vmem:[%s2 + $0x40] sm:$0xff]
  %v1927 = vld [vmem:[%s2 + $0x48] sm:$0xff]
  %v1928 = vld [vmem:[%s2 + $0x50] sm:$0xff]
  %v1929 = vld [vmem:[%s2 + $0x58] sm:$0xff]
  %v1930 = vld [vmem:[%s2 + $0x60] sm:$0xff]
  %v1931 = vld [vmem:[%s2 + $0x68] sm:$0xff]
  %v1932 = vld [vmem:[%s2 + $0x70] sm:$0xff]
  %v1933 = vld [vmem:[%s2 + $0x78] sm:$0xff]
  %v1934 = vld [vmem:[%s2 + $0x80] sm:$0xff]
  %v1935 = vld [vmem:[%s2 + $0x88] sm:$0xff]
  %v1936 = vld [vmem:[%s2 + $0x90] sm:$0xff]
  %v1937 = vld [vmem:[%s2 + $0x98] sm:$0xff]
  %v1938 = vld [vmem:[%s2 + $0xa0] sm:$0xff]
  %v1939 = vld [vmem:[%s2 + $0xa8] sm:$0xff]
  %v1940 = vld [vmem:[%s2 + $0xb0] sm:$0xff]
  %v1941 = vld [vmem:[%s2 + $0xb8] sm:$0xff]
  %v1942 = vld [vmem:[%s2 + $0xc0] sm:$0xff]
  %v1943 = vld [vmem:[%s2 + $0xc8] sm:$0xff]
  %v1944 = vld [vmem:[%s2 + $0xd0] sm:$0xff]
  %v1945 = vld [vmem:[%s2 + $0xd8] sm:$0xff]
  %v1946 = vld [vmem:[%s2 + $0xe0] sm:$0xff]
  %v1947 = vld [vmem:[%s2 + $0xe8] sm:$0xff]
  %v1948 = vld [vmem:[%s2 + $0xf0] sm:$0xff]
  %v1949 = vld [vmem:[%s2 + $0xf8] sm:$0xff]
  %v1982 = vunpack.c.l.b16 %v1918
  %v1983 = vunpack.c.h.b16 %v1918
  %v1984 = vunpack.c.l.b16 %v1919
  %v1985 = vunpack.c.h.b16 %v1919
  %v1986 = vunpack.c.l.b16 %v1920
  %v1987 = vunpack.c.h.b16 %v1920
  %v1988 = vunpack.c.l.b16 %v1921
  %v1989 = vunpack.c.h.b16 %v1921
  %v1990 = vunpack.c.l.b16 %v1922
  %v1991 = vunpack.c.h.b16 %v1922
  %v1992 = vunpack.c.l.b16 %v1923
  %v1993 = vunpack.c.h.b16 %v1923
  %v1994 = vunpack.c.l.b16 %v1924
  %v1995 = vunpack.c.h.b16 %v1924
  %v1996 = vunpack.c.l.b16 %v1925
  %v1997 = vunpack.c.h.b16 %v1925
  %v1998 = vunpack.c.l.b16 %v1926
  %v1999 = vunpack.c.h.b16 %v1926
  %v2000 = vunpack.c.l.b16 %v1927
  %v2001 = vunpack.c.h.b16 %v1927
  %v2002 = vunpack.c.l.b16 %v1928
  %v2003 = vunpack.c.h.b16 %v1928
  %v2004 = vunpack.c.l.b16 %v1929
  %v2005 = vunpack.c.h.b16 %v1929
  %v2006 = vunpack.c.l.b16 %v1930
  %v2007 = vunpack.c.h.b16 %v1930
  %v2008 = vunpack.c.l.b16 %v1931
  %v2009 = vunpack.c.h.b16 %v1931
  %v2010 = vunpack.c.l.b16 %v1932
  %v2011 = vunpack.c.h.b16 %v1932
  %v2012 = vunpack.c.l.b16 %v1933
  %v2013 = vunpack.c.h.b16 %v1933
  %v2014 = vunpack.c.l.b16 %v1934
  %v2015 = vunpack.c.h.b16 %v1934
  %v2016 = vunpack.c.l.b16 %v1935
  %v2017 = vunpack.c.h.b16 %v1935
  %v2018 = vunpack.c.l.b16 %v1936
  %v2019 = vunpack.c.h.b16 %v1936
  %v2020 = vunpack.c.l.b16 %v1937
  %v2021 = vunpack.c.h.b16 %v1937
  %v2022 = vunpack.c.l.b16 %v1938
  %v2023 = vunpack.c.h.b16 %v1938
  %v2024 = vunpack.c.l.b16 %v1939
  %v2025 = vunpack.c.h.b16 %v1939
  %v2026 = vunpack.c.l.b16 %v1940
  %v2027 = vunpack.c.h.b16 %v1940
  %v2028 = vunpack.c.l.b16 %v1941
  %v2029 = vunpack.c.h.b16 %v1941
  %v2030 = vunpack.c.l.b16 %v1942
  %v2031 = vunpack.c.h.b16 %v1942
  %v2032 = vunpack.c.l.b16 %v1943
  %v2033 = vunpack.c.h.b16 %v1943
  %v2034 = vunpack.c.l.b16 %v1944
  %v2035 = vunpack.c.h.b16 %v1944
  %v2036 = vunpack.c.l.b16 %v1945
  %v2037 = vunpack.c.h.b16 %v1945
  %v2038 = vunpack.c.l.b16 %v1946
  %v2039 = vunpack.c.h.b16 %v1946
  %v2040 = vunpack.c.l.b16 %v1947
  %v2041 = vunpack.c.h.b16 %v1947
  %v2042 = vunpack.c.l.b16 %v1948
  %v2043 = vunpack.c.h.b16 %v1948
  %v2044 = vunpack.c.l.b16 %v1949
  %v2045 = vunpack.c.h.b16 %v1949
  %v2046 = vpack.c.b16 %v1986, %v1982
  %v2047 = vpack.c.b16 %v1987, %v1983
  %v2048 = vpack.c.b16 %v1988, %v1984
  %v2049 = vpack.c.b16 %v1989, %v1985
  %v2050 = vpack.c.b16 %v1994, %v1990
  %v2051 = vpack.c.b16 %v1995, %v1991
  %v2052 = vpack.c.b16 %v1996, %v1992
  %v2053 = vpack.c.b16 %v1997, %v1993
  %v2054 = vpack.c.b16 %v2002, %v1998
  %v2055 = vpack.c.b16 %v2003, %v1999
  %v2056 = vpack.c.b16 %v2004, %v2000
  %v2057 = vpack.c.b16 %v2005, %v2001
  %v2058 = vpack.c.b16 %v2010, %v2006
  %v2059 = vpack.c.b16 %v2011, %v2007
  %v2060 = vpack.c.b16 %v2012, %v2008
  %v2061 = vpack.c.b16 %v2013, %v2009
  %v2062 = vpack.c.b16 %v2018, %v2014
  %v2063 = vpack.c.b16 %v2019, %v2015
  %v2064 = vpack.c.b16 %v2020, %v2016
  %v2065 = vpack.c.b16 %v2021, %v2017
  %v2066 = vpack.c.b16 %v2026, %v2022
  %v2067 = vpack.c.b16 %v2027, %v2023
  %v2068 = vpack.c.b16 %v2028, %v2024
  %v2069 = vpack.c.b16 %v2029, %v2025
  %v2070 = vpack.c.b16 %v2034, %v2030
  %v2071 = vpack.c.b16 %v2035, %v2031
  %v2072 = vpack.c.b16 %v2036, %v2032
  %v2073 = vpack.c.b16 %v2037, %v2033
  %v2074 = vpack.c.b16 %v2042, %v2038
  %v2075 = vpack.c.b16 %v2043, %v2039
  %v2076 = vpack.c.b16 %v2044, %v2040
  %v2077 = vpack.c.b16 %v2045, %v2041
  %2110 = vmatprep.subr.bf16.mxu0 %v2047
  %2111 = vmatpush1.bf16.msra.mxu0 %v2046
  %2112 = vmatprep.subr.bf16.mxu0 %v2051
  %2113 = vmatpush1.bf16.msra.mxu0 %v2050
  %2114 = vmatprep.subr.bf16.mxu0 %v2055
  %2115 = vmatpush1.bf16.msra.mxu0 %v2054
  %2116 = vmatprep.subr.bf16.mxu0 %v2059
  %2117 = vmatpush1.bf16.msra.mxu0 %v2058
  %2118 = vmatprep.subr.bf16.mxu0 %v2063
  %2119 = vmatpush1.bf16.msra.mxu0 %v2062
  %2120 = vmatprep.subr.bf16.mxu0 %v2067
  %2121 = vmatpush1.bf16.msra.mxu0 %v2066
  %2122 = vmatprep.subr.bf16.mxu0 %v2071
  %2123 = vmatpush1.bf16.msra.mxu0 %v2070
  %2124 = vmatprep.subr.bf16.mxu0 %v2075
  %2125 = vmatpush1.bf16.msra.mxu0 %v2074
  %2126 = vmatprep.subr.bf16.mxu0 0
  %2127 = vmatpush1.bf16.msra.mxu0 0
  %2128 = vmatprep.subr.bf16.mxu0 0
  %2129 = vmatpush1.bf16.msra.mxu0 0
  %2130 = vmatprep.subr.bf16.mxu0 0
  %2131 = vmatpush1.bf16.msra.mxu0 0
  %2132 = vmatprep.subr.bf16.mxu0 0
  %2133 = vmatpush1.bf16.msra.mxu0 0
  %2134 = vmatprep.subr.bf16.mxu0 0
  %2135 = vmatpush1.bf16.msra.mxu0 0
  %2136 = vmatprep.subr.bf16.mxu0 0
  %2137 = vmatpush1.bf16.msra.mxu0 0
  %2138 = vmatprep.subr.bf16.mxu0 0
  %2139 = vmatpush1.bf16.msra.mxu0 0
  %2140 = vmatprep.subr.bf16.mxu0 0
  %2141 = vmatpush1.bf16.msra.mxu0 0
  %2142 = vmatprep.mubr.bf16.mxu0 0
  %2143 = vmatmul.mubr.bf16.gmra.mrb[0].mxu0 %v1917
  %v2144 = vpop.f32.mrb[0].mxu0
  %v2145 = vadd.f32 0.0, %v2144
  %v2146 = vpop.f32.mrb[0].mxu0
  %v2147 = vadd.f32 0.0, %v2146
  %v2148 = vpop.f32.mrb[0].mxu0
  %v2149 = vpop.f32.mrb[0].mxu0
  %2150 = vdwg.mxu0
  %2151 = vmatprep.subr.bf16.mxu0 %v2049
  %2152 = vmatpush1.bf16.msra.mxu0 %v2048
  %2153 = vmatprep.subr.bf16.mxu0 %v2053
  %2154 = vmatpush1.bf16.msra.mxu0 %v2052
  %2155 = vmatprep.subr.bf16.mxu0 %v2057
  %2156 = vmatpush1.bf16.msra.mxu0 %v2056
  %2157 = vmatprep.subr.bf16.mxu0 %v2061
  %2158 = vmatpush1.bf16.msra.mxu0 %v2060
  %2159 = vmatprep.subr.bf16.mxu0 %v2065
  %2160 = vmatpush1.bf16.msra.mxu0 %v2064
  %2161 = vmatprep.subr.bf16.mxu0 %v2069
  %2162 = vmatpush1.bf16.msra.mxu0 %v2068
  %2163 = vmatprep.subr.bf16.mxu0 %v2073
  %2164 = vmatpush1.bf16.msra.mxu0 %v2072
  %2165 = vmatprep.subr.bf16.mxu0 %v2077
  %2166 = vmatpush1.bf16.msra.mxu0 %v2076
  %2167 = vmatprep.subr.bf16.mxu0 0
  %2168 = vmatpush1.bf16.msra.mxu0 0
  %2169 = vmatprep.subr.bf16.mxu0 0
  %2170 = vmatpush1.bf16.msra.mxu0 0
  %2171 = vmatprep.subr.bf16.mxu0 0
  %2172 = vmatpush1.bf16.msra.mxu0 0
  %2173 = vmatprep.subr.bf16.mxu0 0
  %2174 = vmatpush1.bf16.msra.mxu0 0
  %2175 = vmatprep.subr.bf16.mxu0 0
  %2176 = vmatpush1.bf16.msra.mxu0 0
  %2177 = vmatprep.subr.bf16.mxu0 0
  %2178 = vmatpush1.bf16.msra.mxu0 0
  %2179 = vmatprep.subr.bf16.mxu0 0
  %2180 = vmatpush1.bf16.msra.mxu0 0
  %2181 = vmatprep.subr.bf16.mxu0 0
  %2182 = vmatpush1.bf16.msra.mxu0 0
  %2183 = vmatprep.mubr.bf16.mxu0 0
  %2184 = vmatmul.mubr.bf16.gmra.mrb[0].mxu0 %v1917
  %v2185 = vpop.f32.mrb[0].mxu0
  %v2186 = vadd.f32 0.0, %v2185
  %v2187 = vpop.f32.mrb[0].mxu0
  %v2188 = vadd.f32 0.0, %v2187
  %v2189 = vpop.f32.mrb[0].mxu0
  %v2190 = vpop.f32.mrb[0].mxu0
  %2191 = vdwg.mxu0
  %v2192 = vadd.f32 %v1913, %v2145
  %v2193 = vadd.f32 %v1914, %v2147
  %v2194 = vadd.f32 %v1915, %v2186
  %v2195 = vadd.f32 %v1916, %v2188
  %v2196 = vxor.u32 %v2192, 2147483648
  %v2197 = vmul.f32 %v2196, 1.442695
  %v2198 = vpow.pop %v2197
  %v2199 = vadd.f32 %v2198, 1.0
  %v2200 = vrcp.pop %v2199
  %v2201 = vmul.f32 1.0, %v2200
  %v2202 = vxor.u32 %v2193, 2147483648
  %v2203 = vmul.f32 %v2202, 1.442695
  %v2204 = vpow.pop %v2203
  %v2205 = vadd.f32 %v2204, 1.0
  %v2206 = vrcp.pop %v2205
  %v2207 = vmul.f32 1.0, %v2206
  %v2208 = vtanh.pop %v2194
  %v2209 = vxor.u32 %v2195, 2147483648
  %v2210 = vmul.f32 %v2209, 1.442695
  %v2211 = vpow.pop %v2210
  %v2212 = vadd.f32 %v2211, 1.0
  %v2213 = vrcp.pop %v2212
  %v2214 = vmul.f32 1.0, %v2213
  %v2215 = vmul.f32 %v2207, %v1902
  %v2216 = vmul.f32 %v2201, %v2208
  %v2217 = vadd.f32 %v2215, %v2216
  %v2218 = vtanh.pop %v2217
  %v2219 = vmul.f32 %v2214, %v2218
  %s2220 = scalar_lea.vmem %s1, 48
  %v2221 = vld [vmem:[%s2220] sm:$0xff]
  %v2222 = vadd.f32 %v2219, %v2221
  %s2223 = scalar_lea.vmem %s3, 48
  %2224 = vst [vmem:[%s2223] sm:$0xff] %v2222
  %s2225 = scalar_lea.vmem %s0, 112
  %v2226 = vld [vmem:[%s2225] sm:$0xff]
  %v2227 = vld [vmem:[%s2225 + $0x8] sm:$0xff]
  %v2228 = vunpack.c.l.bf16 %v2226
  %v2229 = vunpack.c.h.bf16 %v2226
  %v2230 = vunpack.c.l.bf16 %v2227
  %v2231 = vunpack.c.h.bf16 %v2227
  %v2232 = vpack.c.bf16 %v2219, %v2219
  %v2233 = vld [vmem:[%s2] sm:$0xff]
  %v2234 = vld [vmem:[%s2 + $0x8] sm:$0xff]
  %v2235 = vld [vmem:[%s2 + $0x10] sm:$0xff]
  %v2236 = vld [vmem:[%s2 + $0x18] sm:$0xff]
  %v2237 = vld [vmem:[%s2 + $0x20] sm:$0xff]
  %v2238 = vld [vmem:[%s2 + $0x28] sm:$0xff]
  %v2239 = vld [vmem:[%s2 + $0x30] sm:$0xff]
  %v2240 = vld [vmem:[%s2 + $0x38] sm:$0xff]
  %v2241 = vld [vmem:[%s2 + $0x40] sm:$0xff]
  %v2242 = vld [vmem:[%s2 + $0x48] sm:$0xff]
  %v2243 = vld [vmem:[%s2 + $0x50] sm:$0xff]
  %v2244 = vld [vmem:[%s2 + $0x58] sm:$0xff]
  %v2245 = vld [vmem:[%s2 + $0x60] sm:$0xff]
  %v2246 = vld [vmem:[%s2 + $0x68] sm:$0xff]
  %v2247 = vld [vmem:[%s2 + $0x70] sm:$0xff]
  %v2248 = vld [vmem:[%s2 + $0x78] sm:$0xff]
  %v2249 = vld [vmem:[%s2 + $0x80] sm:$0xff]
  %v2250 = vld [vmem:[%s2 + $0x88] sm:$0xff]
  %v2251 = vld [vmem:[%s2 + $0x90] sm:$0xff]
  %v2252 = vld [vmem:[%s2 + $0x98] sm:$0xff]
  %v2253 = vld [vmem:[%s2 + $0xa0] sm:$0xff]
  %v2254 = vld [vmem:[%s2 + $0xa8] sm:$0xff]
  %v2255 = vld [vmem:[%s2 + $0xb0] sm:$0xff]
  %v2256 = vld [vmem:[%s2 + $0xb8] sm:$0xff]
  %v2257 = vld [vmem:[%s2 + $0xc0] sm:$0xff]
  %v2258 = vld [vmem:[%s2 + $0xc8] sm:$0xff]
  %v2259 = vld [vmem:[%s2 + $0xd0] sm:$0xff]
  %v2260 = vld [vmem:[%s2 + $0xd8] sm:$0xff]
  %v2261 = vld [vmem:[%s2 + $0xe0] sm:$0xff]
  %v2262 = vld [vmem:[%s2 + $0xe8] sm:$0xff]
  %v2263 = vld [vmem:[%s2 + $0xf0] sm:$0xff]
  %v2264 = vld [vmem:[%s2 + $0xf8] sm:$0xff]
  %v2297 = vunpack.c.l.b16 %v2233
  %v2298 = vunpack.c.h.b16 %v2233
  %v2299 = vunpack.c.l.b16 %v2234
  %v2300 = vunpack.c.h.b16 %v2234
  %v2301 = vunpack.c.l.b16 %v2235
  %v2302 = vunpack.c.h.b16 %v2235
  %v2303 = vunpack.c.l.b16 %v2236
  %v2304 = vunpack.c.h.b16 %v2236
  %v2305 = vunpack.c.l.b16 %v2237
  %v2306 = vunpack.c.h.b16 %v2237
  %v2307 = vunpack.c.l.b16 %v2238
  %v2308 = vunpack.c.h.b16 %v2238
  %v2309 = vunpack.c.l.b16 %v2239
  %v2310 = vunpack.c.h.b16 %v2239
  %v2311 = vunpack.c.l.b16 %v2240
  %v2312 = vunpack.c.h.b16 %v2240
  %v2313 = vunpack.c.l.b16 %v2241
  %v2314 = vunpack.c.h.b16 %v2241
  %v2315 = vunpack.c.l.b16 %v2242
  %v2316 = vunpack.c.h.b16 %v2242
  %v2317 = vunpack.c.l.b16 %v2243
  %v2318 = vunpack.c.h.b16 %v2243
  %v2319 = vunpack.c.l.b16 %v2244
  %v2320 = vunpack.c.h.b16 %v2244
  %v2321 = vunpack.c.l.b16 %v2245
  %v2322 = vunpack.c.h.b16 %v2245
  %v2323 = vunpack.c.l.b16 %v2246
  %v2324 = vunpack.c.h.b16 %v2246
  %v2325 = vunpack.c.l.b16 %v2247
  %v2326 = vunpack.c.h.b16 %v2247
  %v2327 = vunpack.c.l.b16 %v2248
  %v2328 = vunpack.c.h.b16 %v2248
  %v2329 = vunpack.c.l.b16 %v2249
  %v2330 = vunpack.c.h.b16 %v2249
  %v2331 = vunpack.c.l.b16 %v2250
  %v2332 = vunpack.c.h.b16 %v2250
  %v2333 = vunpack.c.l.b16 %v2251
  %v2334 = vunpack.c.h.b16 %v2251
  %v2335 = vunpack.c.l.b16 %v2252
  %v2336 = vunpack.c.h.b16 %v2252
  %v2337 = vunpack.c.l.b16 %v2253
  %v2338 = vunpack.c.h.b16 %v2253
  %v2339 = vunpack.c.l.b16 %v2254
  %v2340 = vunpack.c.h.b16 %v2254
  %v2341 = vunpack.c.l.b16 %v2255
  %v2342 = vunpack.c.h.b16 %v2255
  %v2343 = vunpack.c.l.b16 %v2256
  %v2344 = vunpack.c.h.b16 %v2256
  %v2345 = vunpack.c.l.b16 %v2257
  %v2346 = vunpack.c.h.b16 %v2257
  %v2347 = vunpack.c.l.b16 %v2258
  %v2348 = vunpack.c.h.b16 %v2258
  %v2349 = vunpack.c.l.b16 %v2259
  %v2350 = vunpack.c.h.b16 %v2259
  %v2351 = vunpack.c.l.b16 %v2260
  %v2352 = vunpack.c.h.b16 %v2260
  %v2353 = vunpack.c.l.b16 %v2261
  %v2354 = vunpack.c.h.b16 %v2261
  %v2355 = vunpack.c.l.b16 %v2262
  %v2356 = vunpack.c.h.b16 %v2262
  %v2357 = vunpack.c.l.b16 %v2263
  %v2358 = vunpack.c.h.b16 %v2263
  %v2359 = vunpack.c.l.b16 %v2264
  %v2360 = vunpack.c.h.b16 %v2264
  %v2361 = vpack.c.b16 %v2301, %v2297
  %v2362 = vpack.c.b16 %v2302, %v2298
  %v2363 = vpack.c.b16 %v2303, %v2299
  %v2364 = vpack.c.b16 %v2304, %v2300
  %v2365 = vpack.c.b16 %v2309, %v2305
  %v2366 = vpack.c.b16 %v2310, %v2306
  %v2367 = vpack.c.b16 %v2311, %v2307
  %v2368 = vpack.c.b16 %v2312, %v2308
  %v2369 = vpack.c.b16 %v2317, %v2313
  %v2370 = vpack.c.b16 %v2318, %v2314
  %v2371 = vpack.c.b16 %v2319, %v2315
  %v2372 = vpack.c.b16 %v2320, %v2316
  %v2373 = vpack.c.b16 %v2325, %v2321
  %v2374 = vpack.c.b16 %v2326, %v2322
  %v2375 = vpack.c.b16 %v2327, %v2323
  %v2376 = vpack.c.b16 %v2328, %v2324
  %v2377 = vpack.c.b16 %v2333, %v2329
  %v2378 = vpack.c.b16 %v2334, %v2330
  %v2379 = vpack.c.b16 %v2335, %v2331
  %v2380 = vpack.c.b16 %v2336, %v2332
  %v2381 = vpack.c.b16 %v2341, %v2337
  %v2382 = vpack.c.b16 %v2342, %v2338
  %v2383 = vpack.c.b16 %v2343, %v2339
  %v2384 = vpack.c.b16 %v2344, %v2340
  %v2385 = vpack.c.b16 %v2349, %v2345
  %v2386 = vpack.c.b16 %v2350, %v2346
  %v2387 = vpack.c.b16 %v2351, %v2347
  %v2388 = vpack.c.b16 %v2352, %v2348
  %v2389 = vpack.c.b16 %v2357, %v2353
  %v2390 = vpack.c.b16 %v2358, %v2354
  %v2391 = vpack.c.b16 %v2359, %v2355
  %v2392 = vpack.c.b16 %v2360, %v2356
  %2425 = vmatprep.subr.bf16.mxu0 %v2362
  %2426 = vmatpush1.bf16.msra.mxu0 %v2361
  %2427 = vmatprep.subr.bf16.mxu0 %v2366
  %2428 = vmatpush1.bf16.msra.mxu0 %v2365
  %2429 = vmatprep.subr.bf16.mxu0 %v2370
  %2430 = vmatpush1.bf16.msra.mxu0 %v2369
  %2431 = vmatprep.subr.bf16.mxu0 %v2374
  %2432 = vmatpush1.bf16.msra.mxu0 %v2373
  %2433 = vmatprep.subr.bf16.mxu0 %v2378
  %2434 = vmatpush1.bf16.msra.mxu0 %v2377
  %2435 = vmatprep.subr.bf16.mxu0 %v2382
  %2436 = vmatpush1.bf16.msra.mxu0 %v2381
  %2437 = vmatprep.subr.bf16.mxu0 %v2386
  %2438 = vmatpush1.bf16.msra.mxu0 %v2385
  %2439 = vmatprep.subr.bf16.mxu0 %v2390
  %2440 = vmatpush1.bf16.msra.mxu0 %v2389
  %2441 = vmatprep.subr.bf16.mxu0 0
  %2442 = vmatpush1.bf16.msra.mxu0 0
  %2443 = vmatprep.subr.bf16.mxu0 0
  %2444 = vmatpush1.bf16.msra.mxu0 0
  %2445 = vmatprep.subr.bf16.mxu0 0
  %2446 = vmatpush1.bf16.msra.mxu0 0
  %2447 = vmatprep.subr.bf16.mxu0 0
  %2448 = vmatpush1.bf16.msra.mxu0 0
  %2449 = vmatprep.subr.bf16.mxu0 0
  %2450 = vmatpush1.bf16.msra.mxu0 0
  %2451 = vmatprep.subr.bf16.mxu0 0
  %2452 = vmatpush1.bf16.msra.mxu0 0
  %2453 = vmatprep.subr.bf16.mxu0 0
  %2454 = vmatpush1.bf16.msra.mxu0 0
  %2455 = vmatprep.subr.bf16.mxu0 0
  %2456 = vmatpush1.bf16.msra.mxu0 0
  %2457 = vmatprep.mubr.bf16.mxu0 0
  %2458 = vmatmul.mubr.bf16.gmra.mrb[0].mxu0 %v2232
  %v2459 = vpop.f32.mrb[0].mxu0
  %v2460 = vadd.f32 0.0, %v2459
  %v2461 = vpop.f32.mrb[0].mxu0
  %v2462 = vadd.f32 0.0, %v2461
  %v2463 = vpop.f32.mrb[0].mxu0
  %v2464 = vpop.f32.mrb[0].mxu0
  %2465 = vdwg.mxu0
  %2466 = vmatprep.subr.bf16.mxu0 %v2364
  %2467 = vmatpush1.bf16.msra.mxu0 %v2363
  %2468 = vmatprep.subr.bf16.mxu0 %v2368
  %2469 = vmatpush1.bf16.msra.mxu0 %v2367
  %2470 = vmatprep.subr.bf16.mxu0 %v2372
  %2471 = vmatpush1.bf16.msra.mxu0 %v2371
  %2472 = vmatprep.subr.bf16.mxu0 %v2376
  %2473 = vmatpush1.bf16.msra.mxu0 %v2375
  %2474 = vmatprep.subr.bf16.mxu0 %v2380
  %2475 = vmatpush1.bf16.msra.mxu0 %v2379
  %2476 = vmatprep.subr.bf16.mxu0 %v2384
  %2477 = vmatpush1.bf16.msra.mxu0 %v2383
  %2478 = vmatprep.subr.bf16.mxu0 %v2388
  %2479 = vmatpush1.bf16.msra.mxu0 %v2387
  %2480 = vmatprep.subr.bf16.mxu0 %v2392
  %2481 = vmatpush1.bf16.msra.mxu0 %v2391
  %2482 = vmatprep.subr.bf16.mxu0 0
  %2483 = vmatpush1.bf16.msra.mxu0 0
  %2484 = vmatprep.subr.bf16.mxu0 0
  %2485 = vmatpush1.bf16.msra.mxu0 0
  %2486 = vmatprep.subr.bf16.mxu0 0
  %2487 = vmatpush1.bf16.msra.mxu0 0
  %2488 = vmatprep.subr.bf16.mxu0 0
  %2489 = vmatpush1.bf16.msra.mxu0 0
  %2490 = vmatprep.subr.bf16.mxu0 0
  %2491 = vmatpush1.bf16.msra.mxu0 0
  %2492 = vmatprep.subr.bf16.mxu0 0
  %2493 = vmatpush1.bf16.msra.mxu0 0
  %2494 = vmatprep.subr.bf16.mxu0 0
  %2495 = vmatpush1.bf16.msra.mxu0 0
  %2496 = vmatprep.subr.bf16.mxu0 0
  %2497 = vmatpush1.bf16.msra.mxu0 0
  %2498 = vmatprep.mubr.bf16.mxu0 0
  %2499 = vmatmul.mubr.bf16.gmra.mrb[0].mxu0 %v2232
  %v2500 = vpop.f32.mrb[0].mxu0
  %v2501 = vadd.f32 0.0, %v2500
  %v2502 = vpop.f32.mrb[0].mxu0
  %v2503 = vadd.f32 0.0, %v2502
  %v2504 = vpop.f32.mrb[0].mxu0
  %v2505 = vpop.f32.mrb[0].mxu0
  %2506 = vdwg.mxu0
  %v2507 = vadd.f32 %v2228, %v2460
  %v2508 = vadd.f32 %v2229, %v2462
  %v2509 = vadd.f32 %v2230, %v2501
  %v2510 = vadd.f32 %v2231, %v2503
  %v2511 = vxor.u32 %v2507, 2147483648
  %v2512 = vmul.f32 %v2511, 1.442695
  %v2513 = vpow.pop %v2512
  %v2514 = vadd.f32 %v2513, 1.0
  %v2515 = vrcp.pop %v2514
  %v2516 = vmul.f32 1.0, %v2515
  %v2517 = vxor.u32 %v2508, 2147483648
  %v2518 = vmul.f32 %v2517, 1.442695
  %v2519 = vpow.pop %v2518
  %v2520 = vadd.f32 %v2519, 1.0
  %v2521 = vrcp.pop %v2520
  %v2522 = vmul.f32 1.0, %v2521
  %v2523 = vtanh.pop %v2509
  %v2524 = vxor.u32 %v2510, 2147483648
  %v2525 = vmul.f32 %v2524, 1.442695
  %v2526 = vpow.pop %v2525
  %v2527 = vadd.f32 %v2526, 1.0
  %v2528 = vrcp.pop %v2527
  %v2529 = vmul.f32 1.0, %v2528
  %v2530 = vmul.f32 %v2522, %v2217
  %v2531 = vmul.f32 %v2516, %v2523
  %v2532 = vadd.f32 %v2530, %v2531
  %v2533 = vtanh.pop %v2532
  %v2534 = vmul.f32 %v2529, %v2533
  %s2535 = scalar_lea.vmem %s1, 56
  %v2536 = vld [vmem:[%s2535] sm:$0xff]
  %v2537 = vadd.f32 %v2534, %v2536
  %s2538 = scalar_lea.vmem %s3, 56
  %2539 = vst [vmem:[%s2538] sm:$0xff] %v2537
  %2540 = vst [vmem:[#allocation2] sm:$0xff] %v2534
  %2541 = vst [vmem:[#allocation3] sm:$0xff] %v2532
  // Predicated region
  $region18: #{vibe_lstm_forward.3} parent=0 // pred_check
    _
  $region19: #{vibe_lstm_forward.3} parent=0 // pred_check_branch
    %2543 = sbr.rel (0) target = $region21
  $region20: #{vibe_lstm_forward.3} parent=0 // pred_region
    _
  $region21: #{vibe_lstm_forward.3} parent=0 // pred_fallthru
    _
  // Predicated region
  $region22: #{vibe_lstm_forward.3} parent=0 // pred_check
    _
  $region23: #{vibe_lstm_forward.3} parent=0 // pred_check_branch
    %2545 = sbr.rel (0) target = $region25
  $region24: #{vibe_lstm_forward.3} parent=0 // pred_region
    _
  $region25: #{vibe_lstm_forward.3} parent=0 // pred_fallthru
    _

</llo_original>
